<compile_context>
chip_gen: v5e
topology: v5e:2x2
jax: 0.10.0
libtpu: 0.0.40
codegen_flags: <defaults>
</compile_context>

<pallas_src>
import jax
import jax.numpy as jnp
from jax.experimental import pallas as pl
from jax.experimental.pallas import tpu as pltpu

_LANE = 128
_TB_ALIGN = 16          # batch-tile alignment (safe for bf16 sublane packing)
_WEIGHT_DTYPE = jnp.bfloat16
_HID = (256, 512, 1024)


def _round_up(n, m):
    return ((n + m - 1) // m) * m


def _cdiv(a, b):
    return (a + b - 1) // b


def _leaky_relu(h, slope=0.2):
    return jnp.where(h > 0, h, slope * h)


# --------------------------------------------------------------------------
# Kernel: fused 4-layer MLP. Weights are bf16 (f32 accumulation on the MXU),
# activations stay in f32 between layers, output is written in bf16.
# --------------------------------------------------------------------------
def generator_kernel(x_ref,
                     w1_ref, b1_ref,
                     w2_ref, b2_ref,
                     w3_ref, b3_ref,
                     w4_ref, b4_ref,
                     o_ref):
    wdt = w1_ref.dtype  # bf16
    # Layer 1: Linear(in_pad, 256) + LeakyReLU(0.2)   (x already bf16)
    h = jnp.dot(x_ref[...], w1_ref[...], preferred_element_type=jnp.float32)
    h = _leaky_relu(h + b1_ref[...])
    # Layer 2: Linear(256, 512) + LeakyReLU(0.2)
    h = jnp.dot(h.astype(wdt), w2_ref[...], preferred_element_type=jnp.float32)
    h = _leaky_relu(h + b2_ref[...])
    # Layer 3: Linear(512, 1024) + LeakyReLU(0.2)
    h = jnp.dot(h.astype(wdt), w3_ref[...], preferred_element_type=jnp.float32)
    h = _leaky_relu(h + b3_ref[...])
    # Layer 4: Linear(1024, out_pad) + Tanh
    h = jnp.dot(h.astype(wdt), w4_ref[...], preferred_element_type=jnp.float32)
    o_ref[...] = jnp.tanh(h + b4_ref[...]).astype(o_ref.dtype)


# --------------------------------------------------------------------------
# One-time parameter preparation (hoisted out of the forward pass).
# --------------------------------------------------------------------------
def prepare_params(params, *, weight_dtype=_WEIGHT_DTYPE):
    """Pad to lane multiples and quantize weights once. params: [(W, b) x 4]
    with W (in, out) and b (1, out)."""
    (w1, b1), (w2, b2), (w3, b3), (w4, b4) = params
    in_dim = int(w1.shape[0])
    out_dim = int(w4.shape[1])
    in_pad = _round_up(in_dim, _LANE)
    out_pad = _round_up(out_dim, _LANE)

    def pad2(a, rows, cols, dt):
        a = a.astype(dt)
        pr, pc = rows - a.shape[0], cols - a.shape[1]
        if pr or pc:
            a = jnp.pad(a, ((0, pr), (0, pc)))
        return a

    return dict(
        in_dim=in_dim, out_dim=out_dim, in_pad=in_pad, out_pad=out_pad,
        w1=pad2(w1, in_pad, _HID[0], weight_dtype),
        w2=w2.astype(weight_dtype),
        w3=w3.astype(weight_dtype),
        w4=pad2(w4, _HID[2], out_pad, weight_dtype),
        b1=b1.astype(jnp.float32),
        b2=b2.astype(jnp.float32),
        b3=b3.astype(jnp.float32),
        b4=pad2(b4, 1, out_pad, jnp.float32),
    )


# --------------------------------------------------------------------------
# Tiling / VMEM budgeting helpers.
# --------------------------------------------------------------------------
def _vmem_capacity_bytes():
    try:
        return int(pltpu.get_tpu_info().vmem_capacity_bytes)
    except Exception:
        return 64 << 20  # conservative fallback: v7x physical VMEM


def _choose_tiling(B, tb_max=1024):
    """Near-equal batch tiles; >=2 (even) steps so v7x's 2 TCs both get work."""
    b_aligned = _round_up(max(int(B), 1), _TB_ALIGN)
    n_steps = _cdiv(b_aligned, tb_max)
    if b_aligned > _TB_ALIGN:
        n_steps = _round_up(max(n_steps, 2), 2)
    tb = _round_up(_cdiv(b_aligned, n_steps), _TB_ALIGN)
    n_steps = _cdiv(b_aligned, tb)
    if b_aligned > _TB_ALIGN:
        n_steps = _round_up(n_steps, 2)
    return tb, n_steps, tb * n_steps


_BUFFERED_WEIGHTS_OK = [True]  # flipped to False if pl.Buffered(1) is rejected


def _build_call(tb, n_steps, b_pad, in_pad, out_pad, prepared, vmem_limit,
                buffered_weights):
    def resident(a):
        # Constant index_map: DMA'd once, VMEM-resident across grid steps.
        if buffered_weights:
            return pl.BlockSpec(a.shape, lambda i: (0,) * a.ndim,
                                pipeline_mode=pl.Buffered(1))
        return pl.BlockSpec(a.shape, lambda i: (0,) * a.ndim)

    return pl.pallas_call(
        generator_kernel,
        out_shape=jax.ShapeDtypeStruct((b_pad, out_pad), _WEIGHT_DTYPE),
        grid_spec=pltpu.PrefetchScalarGridSpec(
            num_scalar_prefetch=0,
            grid=(n_steps,),
            in_specs=[pl.BlockSpec((tb, in_pad), lambda i: (i, 0)),
                      resident(prepared["w1"]), resident(prepared["b1"]),
                      resident(prepared["w2"]), resident(prepared["b2"]),
                      resident(prepared["w3"]), resident(prepared["b3"]),
                      resident(prepared["w4"]), resident(prepared["b4"])],
            out_specs=pl.BlockSpec((tb, out_pad), lambda i: (i, 0)),
        ),
        compiler_params=pltpu.CompilerParams(
            dimension_semantics=("parallel",),
            vmem_limit_bytes=vmem_limit),
    )


# --------------------------------------------------------------------------
# Forward pass wrapper.
# --------------------------------------------------------------------------
def generator_forward(x, prepared, *, tb_max=1024):
    """x: (B, input_dim) f32/bf16. prepared: output of prepare_params()."""
    B, in_dim = x.shape
    assert in_dim == prepared["in_dim"], (in_dim, prepared["in_dim"])
    in_pad, out_pad = prepared["in_pad"], prepared["out_pad"]
    out_dim = prepared["out_dim"]

    tb, n_steps, b_pad = _choose_tiling(B, tb_max)

    # bf16 input halves x HBM traffic; skip the pad copy when already aligned.
    xb = x if x.dtype == _WEIGHT_DTYPE else x.astype(_WEIGHT_DTYPE)
    if b_pad != B or in_pad != in_dim:
        xb = jnp.pad(xb, ((0, b_pad - B), (0, in_pad - in_dim)))

    # Generation-aware VMEM budget: footprint estimate with margin, clamped to
    # 75% of physical VMEM (~48 MiB v7x, ~96 MiB v5e/v6e).
    wsize = sum(int(prepared[k].size) * prepared[k].dtype.itemsize
                for k in ("w1", "w2", "w3", "w4", "b1", "b2", "b3", "b4"))
    act_bytes = 4 * tb * (in_pad + sum(_HID) + out_pad)   # f32 intermediates
    io_bytes = 2 * 2 * tb * (in_pad + out_pad)            # double-buffered bf16 x/out
    needed = 2 * (2 * wsize + act_bytes + io_bytes)
    ceiling = int(0.75 * _vmem_capacity_bytes())
    vmem_limit = max(16 << 20, min(needed, ceiling))

    args = (xb,
            prepared["w1"], prepared["b1"], prepared["w2"], prepared["b2"],
            prepared["w3"], prepared["b3"], prepared["w4"], prepared["b4"])

    if _BUFFERED_WEIGHTS_OK[0]:
        try:
            call = _build_call(tb, n_steps, b_pad, in_pad, out_pad, prepared,
                               vmem_limit, buffered_weights=True)
            out_padded = jax.block_until_ready(call(*args))
            return out_padded[:B, :out_dim]
        except Exception:
            _BUFFERED_WEIGHTS_OK[0] = False  # fall back to default buffering
    call = _build_call(tb, n_steps, b_pad, in_pad, out_pad, prepared,
                       vmem_limit, buffered_weights=False)
    out_padded = call(*args)
    return out_padded[:B, :out_dim]


# --------------------------------------------------------------------------
# Deterministic init + pure-JAX reference.
# --------------------------------------------------------------------------
def init_params(key, input_dim, output_dim):
    dims = [(input_dim, _HID[0]), (_HID[0], _HID[1]),
            (_HID[1], _HID[2]), (_HID[2], output_dim)]
    params = []
    for i, (d_in, d_out) in enumerate(dims):
        kw, kb = jax.random.split(jax.random.fold_in(key, i))
        bound = 1.0 / jnp.sqrt(d_in)  # PyTorch nn.Linear default scale
        w = jax.random.uniform(kw, (d_in, d_out), jnp.float32, -bound, bound)
        b = jax.random.uniform(kb, (1, d_out), jnp.float32, -bound, bound)
        params.append((w, b))
    return params


def reference_forward(x, params, weight_dtype=_WEIGHT_DTYPE):
    """Pure-JAX reference with the same bf16-weight / f32-accumulate recipe."""
    h = x.astype(jnp.float32)
    for i, (w, b) in enumerate(params):
        h = jnp.dot(h.astype(weight_dtype), w.astype(weight_dtype),
                    preferred_element_type=jnp.float32) + b.astype(jnp.float32)
        h = jnp.where(h > 0, h, 0.2 * h) if i < 3 else jnp.tanh(h)
    return h


if __name__ == "__main__":
    key = jax.random.PRNGKey(0)
    # Small shapes; intentionally not lane/sublane aligned to exercise padding.
    batch, input_dim, output_dim = 6, 64, 100

    kx, kp = jax.random.split(key)
    x = jax.random.normal(kx, (batch, input_dim), jnp.float32)
    params = init_params(kp, input_dim, output_dim)

    prepared = prepare_params(params)   # pad + quantize weights once (hoisted)

    out = jax.block_until_ready(generator_forward(x, prepared))
    ref = reference_forward(x, params)

    assert out.shape == (batch, output_dim), out.shape
    err = float(jnp.max(jnp.abs(out.astype(jnp.float32) - ref)))
    assert err < 2e-2, err   # bf16 weights + bf16 output vs f32-accum reference

    print("KERNEL_OK")
</pallas_src>

<mosaic_0001>
module attributes {stable_mosaic.version = 11 : i64} {
  func.func @generator_kernel(%arg0: i32, %arg1: memref<16x128xbf16, #tpu.memory_space<vmem>>, %arg2: memref<128x256xbf16, #tpu.memory_space<vmem>>, %arg3: memref<1x256xf32, #tpu.memory_space<vmem>>, %arg4: memref<256x512xbf16, #tpu.memory_space<vmem>>, %arg5: memref<1x512xf32, #tpu.memory_space<vmem>>, %arg6: memref<512x1024xbf16, #tpu.memory_space<vmem>>, %arg7: memref<1x1024xf32, #tpu.memory_space<vmem>>, %arg8: memref<1024x128xbf16, #tpu.memory_space<vmem>>, %arg9: memref<1x128xf32, #tpu.memory_space<vmem>>, %arg10: memref<16x128xbf16, #tpu.memory_space<vmem>>) attributes {dimension_semantics = [#tpu.dimension_semantics<parallel>], iteration_bounds = array<i64: 1>, scalar_prefetch = 0 : i64, scratch_operands = 0 : i64, tpu.core_type = #tpu.core_type<tc>, window_params = [{transform_indices = @transform_0, window_bounds = array<i64: 16, 128>}, {pipeline_mode = #tpu.pipeline_mode<synchronous>, transform_indices = @transform_1, window_bounds = array<i64: 128, 256>}, {pipeline_mode = #tpu.pipeline_mode<synchronous>, transform_indices = @transform_2, window_bounds = array<i64: 1, 256>}, {pipeline_mode = #tpu.pipeline_mode<synchronous>, transform_indices = @transform_3, window_bounds = array<i64: 256, 512>}, {pipeline_mode = #tpu.pipeline_mode<synchronous>, transform_indices = @transform_4, window_bounds = array<i64: 1, 512>}, {pipeline_mode = #tpu.pipeline_mode<synchronous>, transform_indices = @transform_5, window_bounds = array<i64: 512, 1024>}, {pipeline_mode = #tpu.pipeline_mode<synchronous>, transform_indices = @transform_6, window_bounds = array<i64: 1, 1024>}, {pipeline_mode = #tpu.pipeline_mode<synchronous>, transform_indices = @transform_7, window_bounds = array<i64: 1024, 128>}, {pipeline_mode = #tpu.pipeline_mode<synchronous>, transform_indices = @transform_8, window_bounds = array<i64: 1, 128>}, {transform_indices = @transform_9, window_bounds = array<i64: 16, 128>}]} {
    %c0 = arith.constant 0 : index
    %c0_0 = arith.constant 0 : index
    %0 = vector.load %arg1[%c0, %c0_0] : memref<16x128xbf16, #tpu.memory_space<vmem>>, vector<16x128xbf16>
    %c0_1 = arith.constant 0 : index
    %c0_2 = arith.constant 0 : index
    %1 = vector.load %arg2[%c0_1, %c0_2] : memref<128x256xbf16, #tpu.memory_space<vmem>>, vector<128x256xbf16>
    %cst = arith.constant dense<0.000000e+00> : vector<16x256xf32>
    %2 = tpu.matmul %0, %1, %cst {dimension_numbers = #tpu.dot_dimension_numbers<[1], [0], [0], [1], [0, 0, 1, 1], [], []>} : vector<16x128xbf16>, vector<128x256xbf16>, vector<16x256xf32> -> vector<16x256xf32>
    %c0_3 = arith.constant 0 : index
    %c0_4 = arith.constant 0 : index
    %3 = vector.load %arg3[%c0_3, %c0_4] : memref<1x256xf32, #tpu.memory_space<vmem>>, vector<1x256xf32>
    %4 = vector.broadcast %3 : vector<1x256xf32> to vector<16x256xf32>
    %5 = arith.addf %2, %4 : vector<16x256xf32>
    %cst_5 = arith.constant 0.000000e+00 : f32
    %6 = vector.broadcast %cst_5 : f32 to vector<16x256xf32>
    %7 = arith.cmpf ogt, %5, %6 : vector<16x256xf32>
    %cst_6 = arith.constant 2.000000e-01 : f32
    %8 = vector.broadcast %cst_6 : f32 to vector<16x256xf32>
    %9 = arith.mulf %8, %5 : vector<16x256xf32>
    %10 = arith.select %7, %5, %9 : vector<16x256xi1>, vector<16x256xf32>
    %11 = arith.truncf %10 : vector<16x256xf32> to vector<16x256xbf16>
    %c0_7 = arith.constant 0 : index
    %c0_8 = arith.constant 0 : index
    %12 = vector.load %arg4[%c0_7, %c0_8] : memref<256x512xbf16, #tpu.memory_space<vmem>>, vector<256x512xbf16>
    %cst_9 = arith.constant dense<0.000000e+00> : vector<16x512xf32>
    %13 = tpu.matmul %11, %12, %cst_9 {dimension_numbers = #tpu.dot_dimension_numbers<[1], [0], [0], [1], [0, 0, 1, 1], [], []>} : vector<16x256xbf16>, vector<256x512xbf16>, vector<16x512xf32> -> vector<16x512xf32>
    %c0_10 = arith.constant 0 : index
    %c0_11 = arith.constant 0 : index
    %14 = vector.load %arg5[%c0_10, %c0_11] : memref<1x512xf32, #tpu.memory_space<vmem>>, vector<1x512xf32>
    %15 = vector.broadcast %14 : vector<1x512xf32> to vector<16x512xf32>
    %16 = arith.addf %13, %15 : vector<16x512xf32>
    %cst_12 = arith.constant 0.000000e+00 : f32
    %17 = vector.broadcast %cst_12 : f32 to vector<16x512xf32>
    %18 = arith.cmpf ogt, %16, %17 : vector<16x512xf32>
    %cst_13 = arith.constant 2.000000e-01 : f32
    %19 = vector.broadcast %cst_13 : f32 to vector<16x512xf32>
    %20 = arith.mulf %19, %16 : vector<16x512xf32>
    %21 = arith.select %18, %16, %20 : vector<16x512xi1>, vector<16x512xf32>
    %22 = arith.truncf %21 : vector<16x512xf32> to vector<16x512xbf16>
    %c0_14 = arith.constant 0 : index
    %c0_15 = arith.constant 0 : index
    %23 = vector.load %arg6[%c0_14, %c0_15] : memref<512x1024xbf16, #tpu.memory_space<vmem>>, vector<512x1024xbf16>
    %cst_16 = arith.constant dense<0.000000e+00> : vector<16x1024xf32>
    %24 = tpu.matmul %22, %23, %cst_16 {dimension_numbers = #tpu.dot_dimension_numbers<[1], [0], [0], [1], [0, 0, 1, 1], [], []>} : vector<16x512xbf16>, vector<512x1024xbf16>, vector<16x1024xf32> -> vector<16x1024xf32>
    %c0_17 = arith.constant 0 : index
    %c0_18 = arith.constant 0 : index
    %25 = vector.load %arg7[%c0_17, %c0_18] : memref<1x1024xf32, #tpu.memory_space<vmem>>, vector<1x1024xf32>
    %26 = vector.broadcast %25 : vector<1x1024xf32> to vector<16x1024xf32>
    %27 = arith.addf %24, %26 : vector<16x1024xf32>
    %cst_19 = arith.constant 0.000000e+00 : f32
    %28 = vector.broadcast %cst_19 : f32 to vector<16x1024xf32>
    %29 = arith.cmpf ogt, %27, %28 : vector<16x1024xf32>
    %cst_20 = arith.constant 2.000000e-01 : f32
    %30 = vector.broadcast %cst_20 : f32 to vector<16x1024xf32>
    %31 = arith.mulf %30, %27 : vector<16x1024xf32>
    %32 = arith.select %29, %27, %31 : vector<16x1024xi1>, vector<16x1024xf32>
    %33 = arith.truncf %32 : vector<16x1024xf32> to vector<16x1024xbf16>
    %c0_21 = arith.constant 0 : index
    %c0_22 = arith.constant 0 : index
    %34 = vector.load %arg8[%c0_21, %c0_22] : memref<1024x128xbf16, #tpu.memory_space<vmem>>, vector<1024x128xbf16>
    %cst_23 = arith.constant dense<0.000000e+00> : vector<16x128xf32>
    %35 = tpu.matmul %33, %34, %cst_23 {dimension_numbers = #tpu.dot_dimension_numbers<[1], [0], [0], [1], [0, 0, 1, 1], [], []>} : vector<16x1024xbf16>, vector<1024x128xbf16>, vector<16x128xf32> -> vector<16x128xf32>
    %c0_24 = arith.constant 0 : index
    %c0_25 = arith.constant 0 : index
    %36 = vector.load %arg9[%c0_24, %c0_25] : memref<1x128xf32, #tpu.memory_space<vmem>>, vector<1x128xf32>
    %37 = vector.broadcast %36 : vector<1x128xf32> to vector<16x128xf32>
    %38 = arith.addf %35, %37 : vector<16x128xf32>
    %39 = math.tanh %38 : vector<16x128xf32>
    %40 = arith.truncf %39 : vector<16x128xf32> to vector<16x128xbf16>
    %c0_26 = arith.constant 0 : index
    %c0_27 = arith.constant 0 : index
    %41 = vector.load %arg10[%c0_26, %c0_27] : memref<16x128xbf16, #tpu.memory_space<vmem>>, vector<16x128xbf16>
    tpu.vector_store %arg10[%c0_26, %c0_27], %40 {strides = array<i32>} : memref<16x128xbf16, #tpu.memory_space<vmem>>, vector<16x128xbf16>,
    return
  }
  func.func @transform_0(%arg0: i32) -> (i32, i32) {
    %c0_i32 = arith.constant 0 : i32
    %c0_i32_0 = arith.constant 0 : i32
    return %arg0, %c0_i32 : i32, i32
  }
  func.func @transform_1(%arg0: i32) -> (i32, i32) {
    %c0_i32 = arith.constant 0 : i32
    %c0_i32_0 = arith.constant 0 : i32
    %c0_i32_1 = arith.constant 0 : i32
    return %c0_i32, %c0_i32_0 : i32, i32
  }
  func.func @transform_2(%arg0: i32) -> (i32, i32) {
    %c0_i32 = arith.constant 0 : i32
    %c0_i32_0 = arith.constant 0 : i32
    %c0_i32_1 = arith.constant 0 : i32
    return %c0_i32, %c0_i32_0 : i32, i32
  }
  func.func @transform_3(%arg0: i32) -> (i32, i32) {
    %c0_i32 = arith.constant 0 : i32
    %c0_i32_0 = arith.constant 0 : i32
    %c0_i32_1 = arith.constant 0 : i32
    return %c0_i32, %c0_i32_0 : i32, i32
  }
  func.func @transform_4(%arg0: i32) -> (i32, i32) {
    %c0_i32 = arith.constant 0 : i32
    %c0_i32_0 = arith.constant 0 : i32
    %c0_i32_1 = arith.constant 0 : i32
    return %c0_i32, %c0_i32_0 : i32, i32
  }
  func.func @transform_5(%arg0: i32) -> (i32, i32) {
    %c0_i32 = arith.constant 0 : i32
    %c0_i32_0 = arith.constant 0 : i32
    %c0_i32_1 = arith.constant 0 : i32
    return %c0_i32, %c0_i32_0 : i32, i32
  }
  func.func @transform_6(%arg0: i32) -> (i32, i32) {
    %c0_i32 = arith.constant 0 : i32
    %c0_i32_0 = arith.constant 0 : i32
    %c0_i32_1 = arith.constant 0 : i32
    return %c0_i32, %c0_i32_0 : i32, i32
  }
  func.func @transform_7(%arg0: i32) -> (i32, i32) {
    %c0_i32 = arith.constant 0 : i32
    %c0_i32_0 = arith.constant 0 : i32
    %c0_i32_1 = arith.constant 0 : i32
    return %c0_i32, %c0_i32_0 : i32, i32
  }
  func.func @transform_8(%arg0: i32) -> (i32, i32) {
    %c0_i32 = arith.constant 0 : i32
    %c0_i32_0 = arith.constant 0 : i32
    %c0_i32_1 = arith.constant 0 : i32
    return %c0_i32, %c0_i32_0 : i32, i32
  }
  func.func @transform_9(%arg0: i32) -> (i32, i32) {
    %c0_i32 = arith.constant 0 : i32
    %c0_i32_0 = arith.constant 0 : i32
    return %arg0, %c0_i32 : i32, i32
  }
}

module attributes {stable_mosaic.version = 11 : i64} {
  func.func @generator_kernel(%arg0: i32, %arg1: memref<16x128xbf16, #tpu.memory_space<vmem>>, %arg2: memref<128x256xbf16, #tpu.memory_space<vmem>>, %arg3: memref<1x256xf32, #tpu.memory_space<vmem>>, %arg4: memref<256x512xbf16, #tpu.memory_space<vmem>>, %arg5: memref<1x512xf32, #tpu.memory_space<vmem>>, %arg6: memref<512x1024xbf16, #tpu.memory_space<vmem>>, %arg7: memref<1x1024xf32, #tpu.memory_space<vmem>>, %arg8: memref<1024x128xbf16, #tpu.memory_space<vmem>>, %arg9: memref<1x128xf32, #tpu.memory_space<vmem>>, %arg10: memref<16x128xbf16, #tpu.memory_space<vmem>>) attributes {dimension_semantics = [#tpu.dimension_semantics<parallel>], iteration_bounds = array<i64: 1>, scalar_prefetch = 0 : i64, scratch_operands = 0 : i64, tpu.core_type = #tpu.core_type<tc>, window_params = [{transform_indices = @transform_0, window_bounds = array<i64: 16, 128>}, {pipeline_mode = #tpu.pipeline_mode<synchronous>, transform_indices = @transform_1, window_bounds = array<i64: 128, 256>}, {pipeline_mode = #tpu.pipeline_mode<synchronous>, transform_indices = @transform_2, window_bounds = array<i64: 1, 256>}, {pipeline_mode = #tpu.pipeline_mode<synchronous>, transform_indices = @transform_3, window_bounds = array<i64: 256, 512>}, {pipeline_mode = #tpu.pipeline_mode<synchronous>, transform_indices = @transform_4, window_bounds = array<i64: 1, 512>}, {pipeline_mode = #tpu.pipeline_mode<synchronous>, transform_indices = @transform_5, window_bounds = array<i64: 512, 1024>}, {pipeline_mode = #tpu.pipeline_mode<synchronous>, transform_indices = @transform_6, window_bounds = array<i64: 1, 1024>}, {pipeline_mode = #tpu.pipeline_mode<synchronous>, transform_indices = @transform_7, window_bounds = array<i64: 1024, 128>}, {pipeline_mode = #tpu.pipeline_mode<synchronous>, transform_indices = @transform_8, window_bounds = array<i64: 1, 128>}, {transform_indices = @transform_9, window_bounds = array<i64: 16, 128>}]} {
    %c0 = arith.constant 0 : index
    %c0_0 = arith.constant 0 : index
    %0 = vector.load %arg1[%c0, %c0_0] : memref<16x128xbf16, #tpu.memory_space<vmem>>, vector<16x128xbf16>
    %c0_1 = arith.constant 0 : index
    %c0_2 = arith.constant 0 : index
    %1 = vector.load %arg2[%c0_1, %c0_2] : memref<128x256xbf16, #tpu.memory_space<vmem>>, vector<128x256xbf16>
    %cst = arith.constant dense<0.000000e+00> : vector<16x256xf32>
    %2 = tpu.matmul %0, %1, %cst {dimension_numbers = #tpu.dot_dimension_numbers<[1], [0], [0], [1], [0, 0, 1, 1], [], []>} : vector<16x128xbf16>, vector<128x256xbf16>, vector<16x256xf32> -> vector<16x256xf32>
    %c0_3 = arith.constant 0 : index
    %c0_4 = arith.constant 0 : index
    %3 = vector.load %arg3[%c0_3, %c0_4] : memref<1x256xf32, #tpu.memory_space<vmem>>, vector<1x256xf32>
    %4 = vector.broadcast %3 : vector<1x256xf32> to vector<16x256xf32>
    %5 = arith.addf %2, %4 : vector<16x256xf32>
    %cst_5 = arith.constant 0.000000e+00 : f32
    %6 = vector.broadcast %cst_5 : f32 to vector<16x256xf32>
    %7 = arith.cmpf ogt, %5, %6 : vector<16x256xf32>
    %cst_6 = arith.constant 2.000000e-01 : f32
    %8 = vector.broadcast %cst_6 : f32 to vector<16x256xf32>
    %9 = arith.mulf %8, %5 : vector<16x256xf32>
    %10 = arith.select %7, %5, %9 : vector<16x256xi1>, vector<16x256xf32>
    %11 = arith.truncf %10 : vector<16x256xf32> to vector<16x256xbf16>
    %c0_7 = arith.constant 0 : index
    %c0_8 = arith.constant 0 : index
    %12 = vector.load %arg4[%c0_7, %c0_8] : memref<256x512xbf16, #tpu.memory_space<vmem>>, vector<256x512xbf16>
    %cst_9 = arith.constant dense<0.000000e+00> : vector<16x512xf32>
    %13 = tpu.matmul %11, %12, %cst_9 {dimension_numbers = #tpu.dot_dimension_numbers<[1], [0], [0], [1], [0, 0, 1, 1], [], []>} : vector<16x256xbf16>, vector<256x512xbf16>, vector<16x512xf32> -> vector<16x512xf32>
    %c0_10 = arith.constant 0 : index
    %c0_11 = arith.constant 0 : index
    %14 = vector.load %arg5[%c0_10, %c0_11] : memref<1x512xf32, #tpu.memory_space<vmem>>, vector<1x512xf32>
    %15 = vector.broadcast %14 : vector<1x512xf32> to vector<16x512xf32>
    %16 = arith.addf %13, %15 : vector<16x512xf32>
    %cst_12 = arith.constant 0.000000e+00 : f32
    %17 = vector.broadcast %cst_12 : f32 to vector<16x512xf32>
    %18 = arith.cmpf ogt, %16, %17 : vector<16x512xf32>
    %cst_13 = arith.constant 2.000000e-01 : f32
    %19 = vector.broadcast %cst_13 : f32 to vector<16x512xf32>
    %20 = arith.mulf %19, %16 : vector<16x512xf32>
    %21 = arith.select %18, %16, %20 : vector<16x512xi1>, vector<16x512xf32>
    %22 = arith.truncf %21 : vector<16x512xf32> to vector<16x512xbf16>
    %c0_14 = arith.constant 0 : index
    %c0_15 = arith.constant 0 : index
    %23 = vector.load %arg6[%c0_14, %c0_15] : memref<512x1024xbf16, #tpu.memory_space<vmem>>, vector<512x1024xbf16>
    %cst_16 = arith.constant dense<0.000000e+00> : vector<16x1024xf32>
    %24 = tpu.matmul %22, %23, %cst_16 {dimension_numbers = #tpu.dot_dimension_numbers<[1], [0], [0], [1], [0, 0, 1, 1], [], []>} : vector<16x512xbf16>, vector<512x1024xbf16>, vector<16x1024xf32> -> vector<16x1024xf32>
    %c0_17 = arith.constant 0 : index
    %c0_18 = arith.constant 0 : index
    %25 = vector.load %arg7[%c0_17, %c0_18] : memref<1x1024xf32, #tpu.memory_space<vmem>>, vector<1x1024xf32>
    %26 = vector.broadcast %25 : vector<1x1024xf32> to vector<16x1024xf32>
    %27 = arith.addf %24, %26 : vector<16x1024xf32>
    %cst_19 = arith.constant 0.000000e+00 : f32
    %28 = vector.broadcast %cst_19 : f32 to vector<16x1024xf32>
    %29 = arith.cmpf ogt, %27, %28 : vector<16x1024xf32>
    %cst_20 = arith.constant 2.000000e-01 : f32
    %30 = vector.broadcast %cst_20 : f32 to vector<16x1024xf32>
    %31 = arith.mulf %30, %27 : vector<16x1024xf32>
    %32 = arith.select %29, %27, %31 : vector<16x1024xi1>, vector<16x1024xf32>
    %33 = arith.truncf %32 : vector<16x1024xf32> to vector<16x1024xbf16>
    %c0_21 = arith.constant 0 : index
    %c0_22 = arith.constant 0 : index
    %34 = vector.load %arg8[%c0_21, %c0_22] : memref<1024x128xbf16, #tpu.memory_space<vmem>>, vector<1024x128xbf16>
    %cst_23 = arith.constant dense<0.000000e+00> : vector<16x128xf32>
    %35 = tpu.matmul %33, %34, %cst_23 {dimension_numbers = #tpu.dot_dimension_numbers<[1], [0], [0], [1], [0, 0, 1, 1], [], []>} : vector<16x1024xbf16>, vector<1024x128xbf16>, vector<16x128xf32> -> vector<16x128xf32>
    %c0_24 = arith.constant 0 : index
    %c0_25 = arith.constant 0 : index
    %36 = vector.load %arg9[%c0_24, %c0_25] : memref<1x128xf32, #tpu.memory_space<vmem>>, vector<1x128xf32>
    %37 = vector.broadcast %36 : vector<1x128xf32> to vector<16x128xf32>
    %38 = arith.addf %35, %37 : vector<16x128xf32>
    %39 = math.tanh %38 : vector<16x128xf32>
    %40 = arith.truncf %39 : vector<16x128xf32> to vector<16x128xbf16>
    %c0_26 = arith.constant 0 : index
    %c0_27 = arith.constant 0 : index
    %41 = vector.load %arg10[%c0_26, %c0_27] : memref<16x128xbf16, #tpu.memory_space<vmem>>, vector<16x128xbf16>
    tpu.vector_store %arg10[%c0_26, %c0_27], %40 {strides = array<i32>} : memref<16x128xbf16, #tpu.memory_space<vmem>>, vector<16x128xbf16>,
    return
  }
  func.func @transform_0(%arg0: i32) -> (i32, i32) {
    %c0_i32 = arith.constant 0 : i32
    %c0_i32_0 = arith.constant 0 : i32
    return %arg0, %c0_i32 : i32, i32
  }
  func.func @transform_1(%arg0: i32) -> (i32, i32) {
    %c0_i32 = arith.constant 0 : i32
    %c0_i32_0 = arith.constant 0 : i32
    %c0_i32_1 = arith.constant 0 : i32
    return %c0_i32, %c0_i32_0 : i32, i32
  }
  func.func @transform_2(%arg0: i32) -> (i32, i32) {
    %c0_i32 = arith.constant 0 : i32
    %c0_i32_0 = arith.constant 0 : i32
    %c0_i32_1 = arith.constant 0 : i32
    return %c0_i32, %c0_i32_0 : i32, i32
  }
  func.func @transform_3(%arg0: i32) -> (i32, i32) {
    %c0_i32 = arith.constant 0 : i32
    %c0_i32_0 = arith.constant 0 : i32
    %c0_i32_1 = arith.constant 0 : i32
    return %c0_i32, %c0_i32_0 : i32, i32
  }
  func.func @transform_4(%arg0: i32) -> (i32, i32) {
    %c0_i32 = arith.constant 0 : i32
    %c0_i32_0 = arith.constant 0 : i32
    %c0_i32_1 = arith.constant 0 : i32
    return %c0_i32, %c0_i32_0 : i32, i32
  }
  func.func @transform_5(%arg0: i32) -> (i32, i32) {
    %c0_i32 = arith.constant 0 : i32
    %c0_i32_0 = arith.constant 0 : i32
    %c0_i32_1 = arith.constant 0 : i32
    return %c0_i32, %c0_i32_0 : i32, i32
  }
  func.func @transform_6(%arg0: i32) -> (i32, i32) {
    %c0_i32 = arith.constant 0 : i32
    %c0_i32_0 = arith.constant 0 : i32
    %c0_i32_1 = arith.constant 0 : i32
    return %c0_i32, %c0_i32_0 : i32, i32
  }
  func.func @transform_7(%arg0: i32) -> (i32, i32) {
    %c0_i32 = arith.constant 0 : i32
    %c0_i32_0 = arith.constant 0 : i32
    %c0_i32_1 = arith.constant 0 : i32
    return %c0_i32, %c0_i32_0 : i32, i32
  }
  func.func @transform_8(%arg0: i32) -> (i32, i32) {
    %c0_i32 = arith.constant 0 : i32
    %c0_i32_0 = arith.constant 0 : i32
    %c0_i32_1 = arith.constant 0 : i32
    return %c0_i32, %c0_i32_0 : i32, i32
  }
  func.func @transform_9(%arg0: i32) -> (i32, i32) {
    %c0_i32 = arith.constant 0 : i32
    %c0_i32_0 = arith.constant 0 : i32
    return %arg0, %c0_i32 : i32, i32
  }
}

</mosaic_0001>

<llo_original>
// kernel: tpu_custom_call.1
$region0: #{tpu_custom_call.1}
  #allocation0 [shape = 'u32[]', space=smem, size = 0x4, offset = 0x4, fixed_abs, tag = 'smem constant byte address 0x4 - core index']
  #allocation1 [shape = 'u32[72,128]{1,0:T(1,128)}', space=vmem, size = 0x9000, scoped, tag = 'internal scratch']
  %s0 = inlined_call_operand.hbm [shape: bf16[16,128], index: 0, kind: input, shape index: {}]
  %s1 = inlined_call_operand.hbm [shape: bf16[128,256], index: 1, kind: input, shape index: {}]
  %s2 = inlined_call_operand.hbm [shape: f32[1,256], index: 2, kind: input, shape index: {}]
  %s3 = inlined_call_operand.hbm [shape: bf16[256,512], index: 3, kind: input, shape index: {}]
  %s4 = inlined_call_operand.hbm [shape: f32[1,512], index: 4, kind: input, shape index: {}]
  %s5 = inlined_call_operand.hbm [shape: bf16[512,1024], index: 5, kind: input, shape index: {}]
  %s6 = inlined_call_operand.hbm [shape: f32[1,1024], index: 6, kind: input, shape index: {}]
  %s7 = inlined_call_operand.hbm [shape: bf16[1024,128], index: 7, kind: input, shape index: {}]
  %s8 = inlined_call_operand.vmem [shape: f32[1,128], index: 8, kind: input, shape index: {}]
  %s9 = inlined_call_operand.hbm [shape: bf16[16,128], index: 9, kind: output, shape index: {}]
  %s10 = sld [smem:[#allocation0]]
  $region78: #{tpu_custom_call.1} parent=0
    _
  %s12 = ssub.s32 1, %s10
  %s13 = scalar_select 0, %s12, %s10
  $region1: #{tpu_custom_call.1} parent=0
    #allocation2 [shape = 'u8[4096]{0}', space=vmem, size = 0x1000, scoped, tag = 'input window, operand 0, single buffered']
    #allocation3 [shape = 's32[1]{0}', space=sflag, size = 0x4, scoped, tag = 'scoped memory for tpu_custom_call.1']
    #allocation4 [shape = 's32[1]{0}', space=sflag, size = 0x4, scoped, tag = 'scoped memory for tpu_custom_call.1']
    #allocation5 [shape = 'u8[65536]{0}', space=vmem, size = 0x10000, scoped, tag = 'input window, operand 1, single buffered']
    #allocation6 [shape = 's32[1]{0}', space=sflag, size = 0x4, scoped, tag = 'scoped memory for tpu_custom_call.1']
    #allocation7 [shape = 'u8[1024]{0}', space=vmem, size = 0x400, scoped, tag = 'input window, operand 2, single buffered']
    #allocation8 [shape = 'u8[262144]{0}', space=vmem, size = 0x40000, scoped, tag = 'input window, operand 3, single buffered']
    #allocation9 [shape = 's32[1]{0}', space=sflag, size = 0x4, scoped, tag = 'scoped memory for tpu_custom_call.1']
    #allocation10 [shape = 'u8[2048]{0}', space=vmem, size = 0x800, scoped, tag = 'input window, operand 4, single buffered']
    #allocation11 [shape = 'u8[1048576]{0}', space=vmem, size = 0x100000, scoped, tag = 'input window, operand 5, single buffered']
    #allocation12 [shape = 's32[1]{0}', space=sflag, size = 0x4, scoped, tag = 'scoped memory for tpu_custom_call.1']
    #allocation13 [shape = 'u8[4096]{0}', space=vmem, size = 0x1000, scoped, tag = 'input window, operand 6, single buffered']
    #allocation14 [shape = 'u8[262144]{0}', space=vmem, size = 0x40000, scoped, tag = 'input window, operand 7, single buffered']
    #allocation15 [shape = 's32[1]{0}', space=sflag, size = 0x4, scoped, tag = 'scoped memory for tpu_custom_call.1']
    #allocation16 [shape = 'u8[4096]{0}', space=vmem, size = 0x1000, scoped, tag = 'output window, operand 0, single buffered']
    %14 = vsyncpa [#allocation3], 0
    %15 = vsyncpa [#allocation6], 0
    %16 = vsyncpa [#allocation9], 0
    %17 = vsyncpa [#allocation12], 0
    %18 = vsyncpa [#allocation15], 0
    %19 = vsyncpa [#allocation4], 0
    // Predicated region
    $region2: #{tpu_custom_call.1} parent=1 // pred_check
      _
    $region3: #{tpu_custom_call.1} parent=1 // pred_check_branch
      %21 = sbr.rel (0) target = $region5
    $region4: #{tpu_custom_call.1} parent=1 // pred_region
      %23 = vsyncadd [#allocation3], 0
      %s24 = sshll.u32 %s0, 4
      %s25 = int_to_ptr.hbm [resolvable:$true] %s24
      %s26 = sshll.u32 [#allocation2], 4
      %s27 = int_to_ptr.vmem [resolvable:$true] %s26
      %32 = dma.hbm_to_vmem [thread:$0]  %s25, 128, %s27, [#allocation3], 64, 64, 4
    $region5: #{tpu_custom_call.1} parent=1 // pred_fallthru
      _
    // Predicated region
    $region6: #{tpu_custom_call.1} parent=1 // pred_check
      _
    $region7: #{tpu_custom_call.1} parent=1 // pred_check_branch
      %34 = sbr.rel (0) target = $region9
    $region8: #{tpu_custom_call.1} parent=1 // pred_region
      %36 = vsyncadd [#allocation6], 0
      %s37 = sshll.u32 %s1, 4
      %s38 = int_to_ptr.hbm [resolvable:$true] %s37
      %s39 = sshll.u32 [#allocation5], 4
      %s40 = int_to_ptr.vmem [resolvable:$true] %s39
      %45 = dma.hbm_to_vmem [thread:$0]  %s38, 2048, %s40, [#allocation6], 128, 128, 8
    $region9: #{tpu_custom_call.1} parent=1 // pred_fallthru
      _
    // Predicated region
    $region10: #{tpu_custom_call.1} parent=1 // pred_check
      _
    $region11: #{tpu_custom_call.1} parent=1 // pred_check_branch
      %47 = sbr.rel (0) target = $region13
    $region12: #{tpu_custom_call.1} parent=1 // pred_region
      %49 = vsyncadd [#allocation6], 0
      %s51 = sshll.u32 %s2, 4
      %s52 = int_to_ptr.hbm [resolvable:$true] %s51
      %s53 = sshll.u32 [#allocation7], 4
      %s54 = int_to_ptr.vmem [resolvable:$true] %s53
      %56 = dma.hbm_to_vmem [thread:$0]  %s52, 32, %s54, [#allocation6]
    $region13: #{tpu_custom_call.1} parent=1 // pred_fallthru
      _
    // Predicated region
    $region14: #{tpu_custom_call.1} parent=1 // pred_check
      _
    $region15: #{tpu_custom_call.1} parent=1 // pred_check_branch
      %58 = sbr.rel (0) target = $region17
    $region16: #{tpu_custom_call.1} parent=1 // pred_region
      %60 = vsyncadd [#allocation9], 0
      %s61 = sshll.u32 %s3, 4
      %s62 = int_to_ptr.hbm [resolvable:$true] %s61
      %s63 = sshll.u32 [#allocation8], 4
      %s64 = int_to_ptr.vmem [resolvable:$true] %s63
      %69 = dma.hbm_to_vmem [thread:$0]  %s62, 8192, %s64, [#allocation9], 256, 256, 16
    $region17: #{tpu_custom_call.1} parent=1 // pred_fallthru
      _
    // Predicated region
    $region18: #{tpu_custom_call.1} parent=1 // pred_check
      _
    $region19: #{tpu_custom_call.1} parent=1 // pred_check_branch
      %71 = sbr.rel (0) target = $region21
    $region20: #{tpu_custom_call.1} parent=1 // pred_region
      %73 = vsyncadd [#allocation9], 0
      %s75 = sshll.u32 %s4, 4
      %s76 = int_to_ptr.hbm [resolvable:$true] %s75
      %s77 = sshll.u32 [#allocation10], 4
      %s78 = int_to_ptr.vmem [resolvable:$true] %s77
      %80 = dma.hbm_to_vmem [thread:$0]  %s76, 64, %s78, [#allocation9]
    $region21: #{tpu_custom_call.1} parent=1 // pred_fallthru
      _
    // Predicated region
    $region22: #{tpu_custom_call.1} parent=1 // pred_check
      _
    $region23: #{tpu_custom_call.1} parent=1 // pred_check_branch
      %82 = sbr.rel (0) target = $region25
    $region24: #{tpu_custom_call.1} parent=1 // pred_region
      %84 = vsyncadd [#allocation12], 0
      %s85 = sshll.u32 %s5, 4
      %s86 = int_to_ptr.hbm [resolvable:$true] %s85
      %s87 = sshll.u32 [#allocation11], 4
      %s88 = int_to_ptr.vmem [resolvable:$true] %s87
      %93 = dma.hbm_to_vmem [thread:$0]  %s86, 32768, %s88, [#allocation12], 512, 512, 32
    $region25: #{tpu_custom_call.1} parent=1 // pred_fallthru
      _
    // Predicated region
    $region26: #{tpu_custom_call.1} parent=1 // pred_check
      _
    $region27: #{tpu_custom_call.1} parent=1 // pred_check_branch
      %95 = sbr.rel (0) target = $region29
    $region28: #{tpu_custom_call.1} parent=1 // pred_region
      %97 = vsyncadd [#allocation12], 0
      %s99 = sshll.u32 %s6, 4
      %s100 = int_to_ptr.hbm [resolvable:$true] %s99
      %s101 = sshll.u32 [#allocation13], 4
      %s102 = int_to_ptr.vmem [resolvable:$true] %s101
      %104 = dma.hbm_to_vmem [thread:$0]  %s100, 128, %s102, [#allocation12]
    $region29: #{tpu_custom_call.1} parent=1 // pred_fallthru
      _
    // Predicated region
    $region30: #{tpu_custom_call.1} parent=1 // pred_check
      _
    $region31: #{tpu_custom_call.1} parent=1 // pred_check_branch
      %106 = sbr.rel (0) target = $region33
    $region32: #{tpu_custom_call.1} parent=1 // pred_region
      %108 = vsyncadd [#allocation15], 0
      %s109 = sshll.u32 %s7, 4
      %s110 = int_to_ptr.hbm [resolvable:$true] %s109
      %s111 = sshll.u32 [#allocation14], 4
      %s112 = int_to_ptr.vmem [resolvable:$true] %s111
      %117 = dma.hbm_to_vmem [thread:$0]  %s110, 8192, %s112, [#allocation15], 64, 64, 4
    $region33: #{tpu_custom_call.1} parent=1 // pred_fallthru
      _
    // Predicated region
    $region34: #{tpu_custom_call.1} parent=1 // pred_check
      _
    $region35: #{tpu_custom_call.1} parent=1 // pred_check_branch
      %119 = sbr.rel (0) target = $region37
    $region36: #{tpu_custom_call.1} parent=1 // pred_region
      _
    $region37: #{tpu_custom_call.1} parent=1 // pred_fallthru
      _
    // Predicated region
    $region38: #{tpu_custom_call.1} parent=1 // pred_check
      _
    $region39: #{tpu_custom_call.1} parent=1 // pred_check_branch
      %121 = sbr.rel (0) target = $region41
    $region40: #{tpu_custom_call.1} parent=1 // pred_region
      %123 = dma.done [#allocation3], 128
    $region41: #{tpu_custom_call.1} parent=1 // pred_fallthru
      _
    // Predicated region
    $region42: #{tpu_custom_call.1} parent=1 // pred_check
      _
    $region43: #{tpu_custom_call.1} parent=1 // pred_check_branch
      %125 = sbr.rel (0) target = $region45
    $region44: #{tpu_custom_call.1} parent=1 // pred_region
      %127 = dma.done [#allocation6], 2048
    $region45: #{tpu_custom_call.1} parent=1 // pred_fallthru
      _
    // Predicated region
    $region46: #{tpu_custom_call.1} parent=1 // pred_check
      _
    $region47: #{tpu_custom_call.1} parent=1 // pred_check_branch
      %129 = sbr.rel (0) target = $region49
    $region48: #{tpu_custom_call.1} parent=1 // pred_region
      %131 = dma.done [#allocation6], 32
    $region49: #{tpu_custom_call.1} parent=1 // pred_fallthru
      _
    // Predicated region
    $region50: #{tpu_custom_call.1} parent=1 // pred_check
      _
    $region51: #{tpu_custom_call.1} parent=1 // pred_check_branch
      %133 = sbr.rel (0) target = $region53
    $region52: #{tpu_custom_call.1} parent=1 // pred_region
      %135 = dma.done [#allocation9], 8192
    $region53: #{tpu_custom_call.1} parent=1 // pred_fallthru
      _
    // Predicated region
    $region54: #{tpu_custom_call.1} parent=1 // pred_check
      _
    $region55: #{tpu_custom_call.1} parent=1 // pred_check_branch
      %137 = sbr.rel (0) target = $region57
    $region56: #{tpu_custom_call.1} parent=1 // pred_region
      %139 = dma.done [#allocation9], 64
    $region57: #{tpu_custom_call.1} parent=1 // pred_fallthru
      _
    // Predicated region
    $region58: #{tpu_custom_call.1} parent=1 // pred_check
      _
    $region59: #{tpu_custom_call.1} parent=1 // pred_check_branch
      %141 = sbr.rel (0) target = $region61
    $region60: #{tpu_custom_call.1} parent=1 // pred_region
      %143 = dma.done [#allocation12], 32768
    $region61: #{tpu_custom_call.1} parent=1 // pred_fallthru
      _
    // Predicated region
    $region62: #{tpu_custom_call.1} parent=1 // pred_check
      _
    $region63: #{tpu_custom_call.1} parent=1 // pred_check_branch
      %145 = sbr.rel (0) target = $region65
    $region64: #{tpu_custom_call.1} parent=1 // pred_region
      %147 = dma.done [#allocation12], 128
    $region65: #{tpu_custom_call.1} parent=1 // pred_fallthru
      _
    // Predicated region
    $region66: #{tpu_custom_call.1} parent=1 // pred_check
      _
    $region67: #{tpu_custom_call.1} parent=1 // pred_check_branch
      %149 = sbr.rel (0) target = $region69
    $region68: #{tpu_custom_call.1} parent=1 // pred_region
      %151 = dma.done [#allocation15], 8192
    $region69: #{tpu_custom_call.1} parent=1 // pred_fallthru
      _
    %v152 = vld [vmem:[#allocation2] sm:$0xf]
    %v153 = vld [vmem:[#allocation2 + $0x4] sm:$0xf]
    %v154 = vld [vmem:[#allocation5] sm:$0xff]
    %v155 = vld [vmem:[#allocation5 + $0x8] sm:$0xff]
    %v156 = vld [vmem:[#allocation5 + $0x10] sm:$0xff]
    %v157 = vld [vmem:[#allocation5 + $0x18] sm:$0xff]
    %v158 = vld [vmem:[#allocation5 + $0x20] sm:$0xff]
    %v159 = vld [vmem:[#allocation5 + $0x28] sm:$0xff]
    %v160 = vld [vmem:[#allocation5 + $0x30] sm:$0xff]
    %v161 = vld [vmem:[#allocation5 + $0x38] sm:$0xff]
    %v162 = vld [vmem:[#allocation5 + $0x40] sm:$0xff]
    %v163 = vld [vmem:[#allocation5 + $0x48] sm:$0xff]
    %v164 = vld [vmem:[#allocation5 + $0x50] sm:$0xff]
    %v165 = vld [vmem:[#allocation5 + $0x58] sm:$0xff]
    %v166 = vld [vmem:[#allocation5 + $0x60] sm:$0xff]
    %v167 = vld [vmem:[#allocation5 + $0x68] sm:$0xff]
    %v168 = vld [vmem:[#allocation5 + $0x70] sm:$0xff]
    %v169 = vld [vmem:[#allocation5 + $0x78] sm:$0xff]
    %v170 = vld [vmem:[#allocation7] sm:$0x3]
    %v172 = vperm.slane %v170, 0
    %v173 = vperm.slane %v170, 1
    %v178 = vunpack.c.l.b16 %v152
    %v179 = vunpack.c.l.b16 %v153
    %v180 = vpack.c.b16 %v179, %v178
    %v198 = vunpack.c.l.b16 %v154
    %v199 = vunpack.c.h.b16 %v154
    %v200 = vunpack.c.l.b16 %v155
    %v201 = vunpack.c.h.b16 %v155
    %v202 = vunpack.c.l.b16 %v156
    %v203 = vunpack.c.h.b16 %v156
    %v204 = vunpack.c.l.b16 %v157
    %v205 = vunpack.c.h.b16 %v157
    %v206 = vunpack.c.l.b16 %v158
    %v207 = vunpack.c.h.b16 %v158
    %v208 = vunpack.c.l.b16 %v159
    %v209 = vunpack.c.h.b16 %v159
    %v210 = vunpack.c.l.b16 %v160
    %v211 = vunpack.c.h.b16 %v160
    %v212 = vunpack.c.l.b16 %v161
    %v213 = vunpack.c.h.b16 %v161
    %v214 = vunpack.c.l.b16 %v162
    %v215 = vunpack.c.h.b16 %v162
    %v216 = vunpack.c.l.b16 %v163
    %v217 = vunpack.c.h.b16 %v163
    %v218 = vunpack.c.l.b16 %v164
    %v219 = vunpack.c.h.b16 %v164
    %v220 = vunpack.c.l.b16 %v165
    %v221 = vunpack.c.h.b16 %v165
    %v222 = vunpack.c.l.b16 %v166
    %v223 = vunpack.c.h.b16 %v166
    %v224 = vunpack.c.l.b16 %v167
    %v225 = vunpack.c.h.b16 %v167
    %v226 = vunpack.c.l.b16 %v168
    %v227 = vunpack.c.h.b16 %v168
    %v228 = vunpack.c.l.b16 %v169
    %v229 = vunpack.c.h.b16 %v169
    %v230 = vpack.c.b16 %v200, %v198
    %v231 = vpack.c.b16 %v201, %v199
    %v232 = vpack.c.b16 %v204, %v202
    %v233 = vpack.c.b16 %v205, %v203
    %v234 = vpack.c.b16 %v208, %v206
    %v235 = vpack.c.b16 %v209, %v207
    %v236 = vpack.c.b16 %v212, %v210
    %v237 = vpack.c.b16 %v213, %v211
    %v238 = vpack.c.b16 %v216, %v214
    %v239 = vpack.c.b16 %v217, %v215
    %v240 = vpack.c.b16 %v220, %v218
    %v241 = vpack.c.b16 %v221, %v219
    %v242 = vpack.c.b16 %v224, %v222
    %v243 = vpack.c.b16 %v225, %v223
    %v244 = vpack.c.b16 %v228, %v226
    %v245 = vpack.c.b16 %v229, %v227
    %262 = vmatpush.bf16.msra.mxu0 %v244
    %263 = vmatpush.bf16.msra.mxu0 %v242
    %264 = vmatpush.bf16.msra.mxu0 %v240
    %265 = vmatpush.bf16.msra.mxu0 %v238
    %266 = vmatpush.bf16.msra.mxu0 %v236
    %267 = vmatpush.bf16.msra.mxu0 %v234
    %268 = vmatpush.bf16.msra.mxu0 %v232
    %269 = vmatpush.bf16.msra.mxu0 %v230
    %270 = vmatmul.bf16.gmra.mxu0 %v180
    %v271 = vpop.f32.mrf.mxu0
    %v272 = vadd.f32 %v172, %v271
    %v273 = vpop.f32.mrf.mxu0
    %v274 = vadd.f32 %v172, %v273
    %275 = vdwg.mxu0
    %276 = vmatpush.bf16.msra.mxu0 %v245
    %277 = vmatpush.bf16.msra.mxu0 %v243
    %278 = vmatpush.bf16.msra.mxu0 %v241
    %279 = vmatpush.bf16.msra.mxu0 %v239
    %280 = vmatpush.bf16.msra.mxu0 %v237
    %281 = vmatpush.bf16.msra.mxu0 %v235
    %282 = vmatpush.bf16.msra.mxu0 %v233
    %283 = vmatpush.bf16.msra.mxu0 %v231
    %284 = vmatmul.bf16.gmra.mxu0 %v180
    %v285 = vpop.f32.mrf.mxu0
    %v286 = vadd.f32 %v173, %v285
    %v287 = vpop.f32.mrf.mxu0
    %v288 = vadd.f32 %v173, %v287
    %289 = vdwg.mxu0
    %vm290 = vcmp.gt.f32.partialorder %v272, 0.0
    %vm291 = vcmp.gt.f32.partialorder %v286, 0.0
    %vm292 = vcmp.gt.f32.partialorder %v274, 0.0
    %vm293 = vcmp.gt.f32.partialorder %v288, 0.0
    %v294 = vmul.f32 %v272, 0.2
    %v295 = vmul.f32 %v286, 0.2
    %v296 = vmul.f32 %v274, 0.2
    %v297 = vmul.f32 %v288, 0.2
    %v298 = vsel %vm290, %v272, %v294
    %v299 = vsel %vm291, %v286, %v295
    %v300 = vsel %vm292, %v274, %v296
    %v301 = vsel %vm293, %v288, %v297
    %v302 = vpack.c.bf16 %v300, %v298
    %v303 = vpack.c.bf16 %v301, %v299
    %v304 = vld [vmem:[#allocation8] sm:$0xff]
    %v305 = vld [vmem:[#allocation8 + $0x8] sm:$0xff]
    %v306 = vld [vmem:[#allocation8 + $0x10] sm:$0xff]
    %v307 = vld [vmem:[#allocation8 + $0x18] sm:$0xff]
    %v308 = vld [vmem:[#allocation8 + $0x20] sm:$0xff]
    %v309 = vld [vmem:[#allocation8 + $0x28] sm:$0xff]
    %v310 = vld [vmem:[#allocation8 + $0x30] sm:$0xff]
    %v311 = vld [vmem:[#allocation8 + $0x38] sm:$0xff]
    %v312 = vld [vmem:[#allocation8 + $0x40] sm:$0xff]
    %v313 = vld [vmem:[#allocation8 + $0x48] sm:$0xff]
    %v314 = vld [vmem:[#allocation8 + $0x50] sm:$0xff]
    %v315 = vld [vmem:[#allocation8 + $0x58] sm:$0xff]
    %v316 = vld [vmem:[#allocation8 + $0x60] sm:$0xff]
    %v317 = vld [vmem:[#allocation8 + $0x68] sm:$0xff]
    %v318 = vld [vmem:[#allocation8 + $0x70] sm:$0xff]
    %v319 = vld [vmem:[#allocation8 + $0x78] sm:$0xff]
    %v320 = vld [vmem:[#allocation8 + $0x80] sm:$0xff]
    %v321 = vld [vmem:[#allocation8 + $0x88] sm:$0xff]
    %v322 = vld [vmem:[#allocation8 + $0x90] sm:$0xff]
    %v323 = vld [vmem:[#allocation8 + $0x98] sm:$0xff]
    %v324 = vld [vmem:[#allocation8 + $0xa0] sm:$0xff]
    %v325 = vld [vmem:[#allocation8 + $0xa8] sm:$0xff]
    %v326 = vld [vmem:[#allocation8 + $0xb0] sm:$0xff]
    %v327 = vld [vmem:[#allocation8 + $0xb8] sm:$0xff]
    %v328 = vld [vmem:[#allocation8 + $0xc0] sm:$0xff]
    %v329 = vld [vmem:[#allocation8 + $0xc8] sm:$0xff]
    %v330 = vld [vmem:[#allocation8 + $0xd0] sm:$0xff]
    %v331 = vld [vmem:[#allocation8 + $0xd8] sm:$0xff]
    %v332 = vld [vmem:[#allocation8 + $0xe0] sm:$0xff]
    %v333 = vld [vmem:[#allocation8 + $0xe8] sm:$0xff]
    %v334 = vld [vmem:[#allocation8 + $0xf0] sm:$0xff]
    %v335 = vld [vmem:[#allocation8 + $0xf8] sm:$0xff]
    %v336 = vld [vmem:[#allocation8 + $0x100] sm:$0xff]
    %v337 = vld [vmem:[#allocation8 + $0x108] sm:$0xff]
    %v338 = vld [vmem:[#allocation8 + $0x110] sm:$0xff]
    %v339 = vld [vmem:[#allocation8 + $0x118] sm:$0xff]
    %v340 = vld [vmem:[#allocation8 + $0x120] sm:$0xff]
    %v341 = vld [vmem:[#allocation8 + $0x128] sm:$0xff]
    %v342 = vld [vmem:[#allocation8 + $0x130] sm:$0xff]
    %v343 = vld [vmem:[#allocation8 + $0x138] sm:$0xff]
    %v344 = vld [vmem:[#allocation8 + $0x140] sm:$0xff]
    %v345 = vld [vmem:[#allocation8 + $0x148] sm:$0xff]
    %v346 = vld [vmem:[#allocation8 + $0x150] sm:$0xff]
    %v347 = vld [vmem:[#allocation8 + $0x158] sm:$0xff]
    %v348 = vld [vmem:[#allocation8 + $0x160] sm:$0xff]
    %v349 = vld [vmem:[#allocation8 + $0x168] sm:$0xff]
    %v350 = vld [vmem:[#allocation8 + $0x170] sm:$0xff]
    %v351 = vld [vmem:[#allocation8 + $0x178] sm:$0xff]
    %v352 = vld [vmem:[#allocation8 + $0x180] sm:$0xff]
    %v353 = vld [vmem:[#allocation8 + $0x188] sm:$0xff]
    %v354 = vld [vmem:[#allocation8 + $0x190] sm:$0xff]
    %v355 = vld [vmem:[#allocation8 + $0x198] sm:$0xff]
    %v356 = vld [vmem:[#allocation8 + $0x1a0] sm:$0xff]
    %v357 = vld [vmem:[#allocation8 + $0x1a8] sm:$0xff]
    %v358 = vld [vmem:[#allocation8 + $0x1b0] sm:$0xff]
    %v359 = vld [vmem:[#allocation8 + $0x1b8] sm:$0xff]
    %v360 = vld [vmem:[#allocation8 + $0x1c0] sm:$0xff]
    %v361 = vld [vmem:[#allocation8 + $0x1c8] sm:$0xff]
    %v362 = vld [vmem:[#allocation8 + $0x1d0] sm:$0xff]
    %v363 = vld [vmem:[#allocation8 + $0x1d8] sm:$0xff]
    %v364 = vld [vmem:[#allocation8 + $0x1e0] sm:$0xff]
    %v365 = vld [vmem:[#allocation8 + $0x1e8] sm:$0xff]
    %v366 = vld [vmem:[#allocation8 + $0x1f0] sm:$0xff]
    %v367 = vld [vmem:[#allocation8 + $0x1f8] sm:$0xff]
    %v368 = vld [vmem:[#allocation10] sm:$0xf]
    %v370 = vperm.slane %v368, 0
    %v371 = vperm.slane %v368, 1
    %v372 = vperm.slane %v368, 2
    %v373 = vperm.slane %v368, 3
    %v442 = vunpack.c.l.b16 %v304
    %v443 = vunpack.c.h.b16 %v304
    %v444 = vunpack.c.l.b16 %v305
    %v445 = vunpack.c.h.b16 %v305
    %v446 = vunpack.c.l.b16 %v306
    %v447 = vunpack.c.h.b16 %v306
    %v448 = vunpack.c.l.b16 %v307
    %v449 = vunpack.c.h.b16 %v307
    %v450 = vunpack.c.l.b16 %v308
    %v451 = vunpack.c.h.b16 %v308
    %v452 = vunpack.c.l.b16 %v309
    %v453 = vunpack.c.h.b16 %v309
    %v454 = vunpack.c.l.b16 %v310
    %v455 = vunpack.c.h.b16 %v310
    %v456 = vunpack.c.l.b16 %v311
    %v457 = vunpack.c.h.b16 %v311
    %v458 = vunpack.c.l.b16 %v312
    %v459 = vunpack.c.h.b16 %v312
    %v460 = vunpack.c.l.b16 %v313
    %v461 = vunpack.c.h.b16 %v313
    %v462 = vunpack.c.l.b16 %v314
    %v463 = vunpack.c.h.b16 %v314
    %v464 = vunpack.c.l.b16 %v315
    %v465 = vunpack.c.h.b16 %v315
    %v466 = vunpack.c.l.b16 %v316
    %v467 = vunpack.c.h.b16 %v316
    %v468 = vunpack.c.l.b16 %v317
    %v469 = vunpack.c.h.b16 %v317
    %v470 = vunpack.c.l.b16 %v318
    %v471 = vunpack.c.h.b16 %v318
    %v472 = vunpack.c.l.b16 %v319
    %v473 = vunpack.c.h.b16 %v319
    %v474 = vunpack.c.l.b16 %v320
    %v475 = vunpack.c.h.b16 %v320
    %v476 = vunpack.c.l.b16 %v321
    %v477 = vunpack.c.h.b16 %v321
    %v478 = vunpack.c.l.b16 %v322
    %v479 = vunpack.c.h.b16 %v322
    %v480 = vunpack.c.l.b16 %v323
    %v481 = vunpack.c.h.b16 %v323
    %v482 = vunpack.c.l.b16 %v324
    %v483 = vunpack.c.h.b16 %v324
    %v484 = vunpack.c.l.b16 %v325
    %v485 = vunpack.c.h.b16 %v325
    %v486 = vunpack.c.l.b16 %v326
    %v487 = vunpack.c.h.b16 %v326
    %v488 = vunpack.c.l.b16 %v327
    %v489 = vunpack.c.h.b16 %v327
    %v490 = vunpack.c.l.b16 %v328
    %v491 = vunpack.c.h.b16 %v328
    %v492 = vunpack.c.l.b16 %v329
    %v493 = vunpack.c.h.b16 %v329
    %v494 = vunpack.c.l.b16 %v330
    %v495 = vunpack.c.h.b16 %v330
    %v496 = vunpack.c.l.b16 %v331
    %v497 = vunpack.c.h.b16 %v331
    %v498 = vunpack.c.l.b16 %v332
    %v499 = vunpack.c.h.b16 %v332
    %v500 = vunpack.c.l.b16 %v333
    %v501 = vunpack.c.h.b16 %v333
    %v502 = vunpack.c.l.b16 %v334
    %v503 = vunpack.c.h.b16 %v334
    %v504 = vunpack.c.l.b16 %v335
    %v505 = vunpack.c.h.b16 %v335
    %v506 = vunpack.c.l.b16 %v336
    %v507 = vunpack.c.h.b16 %v336
    %v508 = vunpack.c.l.b16 %v337
    %v509 = vunpack.c.h.b16 %v337
    %v510 = vunpack.c.l.b16 %v338
    %v511 = vunpack.c.h.b16 %v338
    %v512 = vunpack.c.l.b16 %v339
    %v513 = vunpack.c.h.b16 %v339
    %v514 = vunpack.c.l.b16 %v340
    %v515 = vunpack.c.h.b16 %v340
    %v516 = vunpack.c.l.b16 %v341
    %v517 = vunpack.c.h.b16 %v341
    %v518 = vunpack.c.l.b16 %v342
    %v519 = vunpack.c.h.b16 %v342
    %v520 = vunpack.c.l.b16 %v343
    %v521 = vunpack.c.h.b16 %v343
    %v522 = vunpack.c.l.b16 %v344
    %v523 = vunpack.c.h.b16 %v344
    %v524 = vunpack.c.l.b16 %v345
    %v525 = vunpack.c.h.b16 %v345
    %v526 = vunpack.c.l.b16 %v346
    %v527 = vunpack.c.h.b16 %v346
    %v528 = vunpack.c.l.b16 %v347
    %v529 = vunpack.c.h.b16 %v347
    %v530 = vunpack.c.l.b16 %v348
    %v531 = vunpack.c.h.b16 %v348
    %v532 = vunpack.c.l.b16 %v349
    %v533 = vunpack.c.h.b16 %v349
    %v534 = vunpack.c.l.b16 %v350
    %v535 = vunpack.c.h.b16 %v350
    %v536 = vunpack.c.l.b16 %v351
    %v537 = vunpack.c.h.b16 %v351
    %v538 = vunpack.c.l.b16 %v352
    %v539 = vunpack.c.h.b16 %v352
    %v540 = vunpack.c.l.b16 %v353
    %v541 = vunpack.c.h.b16 %v353
    %v542 = vunpack.c.l.b16 %v354
    %v543 = vunpack.c.h.b16 %v354
    %v544 = vunpack.c.l.b16 %v355
    %v545 = vunpack.c.h.b16 %v355
    %v546 = vunpack.c.l.b16 %v356
    %v547 = vunpack.c.h.b16 %v356
    %v548 = vunpack.c.l.b16 %v357
    %v549 = vunpack.c.h.b16 %v357
    %v550 = vunpack.c.l.b16 %v358
    %v551 = vunpack.c.h.b16 %v358
    %v552 = vunpack.c.l.b16 %v359
    %v553 = vunpack.c.h.b16 %v359
    %v554 = vunpack.c.l.b16 %v360
    %v555 = vunpack.c.h.b16 %v360
    %v556 = vunpack.c.l.b16 %v361
    %v557 = vunpack.c.h.b16 %v361
    %v558 = vunpack.c.l.b16 %v362
    %v559 = vunpack.c.h.b16 %v362
    %v560 = vunpack.c.l.b16 %v363
    %v561 = vunpack.c.h.b16 %v363
    %v562 = vunpack.c.l.b16 %v364
    %v563 = vunpack.c.h.b16 %v364
    %v564 = vunpack.c.l.b16 %v365
    %v565 = vunpack.c.h.b16 %v365
    %v566 = vunpack.c.l.b16 %v366
    %v567 = vunpack.c.h.b16 %v366
    %v568 = vunpack.c.l.b16 %v367
    %v569 = vunpack.c.h.b16 %v367
    %v570 = vpack.c.b16 %v446, %v442
    %v571 = vpack.c.b16 %v447, %v443
    %v572 = vpack.c.b16 %v448, %v444
    %v573 = vpack.c.b16 %v449, %v445
    %v574 = vpack.c.b16 %v454, %v450
    %v575 = vpack.c.b16 %v455, %v451
    %v576 = vpack.c.b16 %v456, %v452
    %v577 = vpack.c.b16 %v457, %v453
    %v578 = vpack.c.b16 %v462, %v458
    %v579 = vpack.c.b16 %v463, %v459
    %v580 = vpack.c.b16 %v464, %v460
    %v581 = vpack.c.b16 %v465, %v461
    %v582 = vpack.c.b16 %v470, %v466
    %v583 = vpack.c.b16 %v471, %v467
    %v584 = vpack.c.b16 %v472, %v468
    %v585 = vpack.c.b16 %v473, %v469
    %v586 = vpack.c.b16 %v478, %v474
    %v587 = vpack.c.b16 %v479, %v475
    %v588 = vpack.c.b16 %v480, %v476
    %v589 = vpack.c.b16 %v481, %v477
    %v590 = vpack.c.b16 %v486, %v482
    %v591 = vpack.c.b16 %v487, %v483
    %v592 = vpack.c.b16 %v488, %v484
    %v593 = vpack.c.b16 %v489, %v485
    %v594 = vpack.c.b16 %v494, %v490
    %v595 = vpack.c.b16 %v495, %v491
    %v596 = vpack.c.b16 %v496, %v492
    %v597 = vpack.c.b16 %v497, %v493
    %v598 = vpack.c.b16 %v502, %v498
    %v599 = vpack.c.b16 %v503, %v499
    %v600 = vpack.c.b16 %v504, %v500
    %v601 = vpack.c.b16 %v505, %v501
    %v602 = vpack.c.b16 %v510, %v506
    %v603 = vpack.c.b16 %v511, %v507
    %v604 = vpack.c.b16 %v512, %v508
    %v605 = vpack.c.b16 %v513, %v509
    %v606 = vpack.c.b16 %v518, %v514
    %v607 = vpack.c.b16 %v519, %v515
    %v608 = vpack.c.b16 %v520, %v516
    %v609 = vpack.c.b16 %v521, %v517
    %v610 = vpack.c.b16 %v526, %v522
    %v611 = vpack.c.b16 %v527, %v523
    %v612 = vpack.c.b16 %v528, %v524
    %v613 = vpack.c.b16 %v529, %v525
    %v614 = vpack.c.b16 %v534, %v530
    %v615 = vpack.c.b16 %v535, %v531
    %v616 = vpack.c.b16 %v536, %v532
    %v617 = vpack.c.b16 %v537, %v533
    %v618 = vpack.c.b16 %v542, %v538
    %v619 = vpack.c.b16 %v543, %v539
    %v620 = vpack.c.b16 %v544, %v540
    %v621 = vpack.c.b16 %v545, %v541
    %v622 = vpack.c.b16 %v550, %v546
    %v623 = vpack.c.b16 %v551, %v547
    %v624 = vpack.c.b16 %v552, %v548
    %v625 = vpack.c.b16 %v553, %v549
    %v626 = vpack.c.b16 %v558, %v554
    %v627 = vpack.c.b16 %v559, %v555
    %v628 = vpack.c.b16 %v560, %v556
    %v629 = vpack.c.b16 %v561, %v557
    %v630 = vpack.c.b16 %v566, %v562
    %v631 = vpack.c.b16 %v567, %v563
    %v632 = vpack.c.b16 %v568, %v564
    %v633 = vpack.c.b16 %v569, %v565
    %698 = vmatpush.bf16.msra.mxu0 %v598
    %699 = vmatpush.bf16.msra.mxu0 %v594
    %700 = vmatpush.bf16.msra.mxu0 %v590
    %701 = vmatpush.bf16.msra.mxu0 %v586
    %702 = vmatpush.bf16.msra.mxu0 %v582
    %703 = vmatpush.bf16.msra.mxu0 %v578
    %704 = vmatpush.bf16.msra.mxu0 %v574
    %705 = vmatpush.bf16.msra.mxu0 %v570
    %706 = vmatmul.bf16.gmra.mxu0 %v302
    %v707 = vpop.f32.mrf.mxu0
    %v708 = vadd.f32 %v370, %v707
    %v709 = vpop.f32.mrf.mxu0
    %v710 = vadd.f32 %v370, %v709
    %711 = vdwg.mxu0
    %712 = vmatpush.bf16.msra.mxu0 %v630
    %713 = vmatpush.bf16.msra.mxu0 %v626
    %714 = vmatpush.bf16.msra.mxu0 %v622
    %715 = vmatpush.bf16.msra.mxu0 %v618
    %716 = vmatpush.bf16.msra.mxu0 %v614
    %717 = vmatpush.bf16.msra.mxu0 %v610
    %718 = vmatpush.bf16.msra.mxu0 %v606
    %719 = vmatpush.bf16.msra.mxu0 %v602
    %720 = vmatmul.bf16.gmra.mxu0 %v303
    %v721 = vpop.f32.mrf.mxu0
    %v722 = vadd.f32 %v708, %v721
    %v723 = vpop.f32.mrf.mxu0
    %v724 = vadd.f32 %v710, %v723
    %725 = vdwg.mxu0
    %726 = vmatpush.bf16.msra.mxu0 %v599
    %727 = vmatpush.bf16.msra.mxu0 %v595
    %728 = vmatpush.bf16.msra.mxu0 %v591
    %729 = vmatpush.bf16.msra.mxu0 %v587
    %730 = vmatpush.bf16.msra.mxu0 %v583
    %731 = vmatpush.bf16.msra.mxu0 %v579
    %732 = vmatpush.bf16.msra.mxu0 %v575
    %733 = vmatpush.bf16.msra.mxu0 %v571
    %734 = vmatmul.bf16.gmra.mxu0 %v302
    %v735 = vpop.f32.mrf.mxu0
    %v736 = vadd.f32 %v371, %v735
    %v737 = vpop.f32.mrf.mxu0
    %v738 = vadd.f32 %v371, %v737
    %739 = vdwg.mxu0
    %740 = vmatpush.bf16.msra.mxu0 %v631
    %741 = vmatpush.bf16.msra.mxu0 %v627
    %742 = vmatpush.bf16.msra.mxu0 %v623
    %743 = vmatpush.bf16.msra.mxu0 %v619
    %744 = vmatpush.bf16.msra.mxu0 %v615
    %745 = vmatpush.bf16.msra.mxu0 %v611
    %746 = vmatpush.bf16.msra.mxu0 %v607
    %747 = vmatpush.bf16.msra.mxu0 %v603
    %748 = vmatmul.bf16.gmra.mxu0 %v303
    %v749 = vpop.f32.mrf.mxu0
    %v750 = vadd.f32 %v736, %v749
    %v751 = vpop.f32.mrf.mxu0
    %v752 = vadd.f32 %v738, %v751
    %753 = vdwg.mxu0
    %754 = vmatpush.bf16.msra.mxu0 %v600
    %755 = vmatpush.bf16.msra.mxu0 %v596
    %756 = vmatpush.bf16.msra.mxu0 %v592
    %757 = vmatpush.bf16.msra.mxu0 %v588
    %758 = vmatpush.bf16.msra.mxu0 %v584
    %759 = vmatpush.bf16.msra.mxu0 %v580
    %760 = vmatpush.bf16.msra.mxu0 %v576
    %761 = vmatpush.bf16.msra.mxu0 %v572
    %762 = vmatmul.bf16.gmra.mxu0 %v302
    %v763 = vpop.f32.mrf.mxu0
    %v764 = vadd.f32 %v372, %v763
    %v765 = vpop.f32.mrf.mxu0
    %v766 = vadd.f32 %v372, %v765
    %767 = vdwg.mxu0
    %768 = vmatpush.bf16.msra.mxu0 %v632
    %769 = vmatpush.bf16.msra.mxu0 %v628
    %770 = vmatpush.bf16.msra.mxu0 %v624
    %771 = vmatpush.bf16.msra.mxu0 %v620
    %772 = vmatpush.bf16.msra.mxu0 %v616
    %773 = vmatpush.bf16.msra.mxu0 %v612
    %774 = vmatpush.bf16.msra.mxu0 %v608
    %775 = vmatpush.bf16.msra.mxu0 %v604
    %776 = vmatmul.bf16.gmra.mxu0 %v303
    %v777 = vpop.f32.mrf.mxu0
    %v778 = vadd.f32 %v764, %v777
    %v779 = vpop.f32.mrf.mxu0
    %v780 = vadd.f32 %v766, %v779
    %781 = vdwg.mxu0
    %782 = vmatpush.bf16.msra.mxu0 %v601
    %783 = vmatpush.bf16.msra.mxu0 %v597
    %784 = vmatpush.bf16.msra.mxu0 %v593
    %785 = vmatpush.bf16.msra.mxu0 %v589
    %786 = vmatpush.bf16.msra.mxu0 %v585
    %787 = vmatpush.bf16.msra.mxu0 %v581
    %788 = vmatpush.bf16.msra.mxu0 %v577
    %789 = vmatpush.bf16.msra.mxu0 %v573
    %790 = vmatmul.bf16.gmra.mxu0 %v302
    %v791 = vpop.f32.mrf.mxu0
    %v792 = vadd.f32 %v373, %v791
    %v793 = vpop.f32.mrf.mxu0
    %v794 = vadd.f32 %v373, %v793
    %795 = vdwg.mxu0
    %796 = vmatpush.bf16.msra.mxu0 %v633
    %797 = vmatpush.bf16.msra.mxu0 %v629
    %798 = vmatpush.bf16.msra.mxu0 %v625
    %799 = vmatpush.bf16.msra.mxu0 %v621
    %800 = vmatpush.bf16.msra.mxu0 %v617
    %801 = vmatpush.bf16.msra.mxu0 %v613
    %802 = vmatpush.bf16.msra.mxu0 %v609
    %803 = vmatpush.bf16.msra.mxu0 %v605
    %804 = vmatmul.bf16.gmra.mxu0 %v303
    %v805 = vpop.f32.mrf.mxu0
    %v806 = vadd.f32 %v792, %v805
    %v807 = vpop.f32.mrf.mxu0
    %v808 = vadd.f32 %v794, %v807
    %809 = vdwg.mxu0
    %vm810 = vcmp.gt.f32.partialorder %v722, 0.0
    %vm811 = vcmp.gt.f32.partialorder %v750, 0.0
    %vm812 = vcmp.gt.f32.partialorder %v778, 0.0
    %vm813 = vcmp.gt.f32.partialorder %v806, 0.0
    %vm814 = vcmp.gt.f32.partialorder %v724, 0.0
    %vm815 = vcmp.gt.f32.partialorder %v752, 0.0
    %vm816 = vcmp.gt.f32.partialorder %v780, 0.0
    %vm817 = vcmp.gt.f32.partialorder %v808, 0.0
    %v818 = vmul.f32 %v722, 0.2
    %v819 = vmul.f32 %v750, 0.2
    %v820 = vmul.f32 %v778, 0.2
    %v821 = vmul.f32 %v806, 0.2
    %v822 = vmul.f32 %v724, 0.2
    %v823 = vmul.f32 %v752, 0.2
    %v824 = vmul.f32 %v780, 0.2
    %v825 = vmul.f32 %v808, 0.2
    %v826 = vsel %vm810, %v722, %v818
    %v827 = vsel %vm811, %v750, %v819
    %v828 = vsel %vm812, %v778, %v820
    %v829 = vsel %vm813, %v806, %v821
    %v830 = vsel %vm814, %v724, %v822
    %v831 = vsel %vm815, %v752, %v823
    %v832 = vsel %vm816, %v780, %v824
    %v833 = vsel %vm817, %v808, %v825
    %v834 = vpack.c.bf16 %v830, %v826
    %v835 = vpack.c.bf16 %v831, %v827
    %v836 = vpack.c.bf16 %v832, %v828
    %v837 = vpack.c.bf16 %v833, %v829
    %v838 = vld [vmem:[#allocation11] sm:$0xff]
    %v839 = vld [vmem:[#allocation11 + $0x8] sm:$0xff]
    %v840 = vld [vmem:[#allocation11 + $0x10] sm:$0xff]
    %v841 = vld [vmem:[#allocation11 + $0x18] sm:$0xff]
    %v842 = vld [vmem:[#allocation11 + $0x20] sm:$0xff]
    %v843 = vld [vmem:[#allocation11 + $0x28] sm:$0xff]
    %v844 = vld [vmem:[#allocation11 + $0x30] sm:$0xff]
    %v845 = vld [vmem:[#allocation11 + $0x38] sm:$0xff]
    %v846 = vld [vmem:[#allocation11 + $0x40] sm:$0xff]
    %v847 = vld [vmem:[#allocation11 + $0x48] sm:$0xff]
    %v848 = vld [vmem:[#allocation11 + $0x50] sm:$0xff]
    %v849 = vld [vmem:[#allocation11 + $0x58] sm:$0xff]
    %v850 = vld [vmem:[#allocation11 + $0x60] sm:$0xff]
    %v851 = vld [vmem:[#allocation11 + $0x68] sm:$0xff]
    %v852 = vld [vmem:[#allocation11 + $0x70] sm:$0xff]
    %v853 = vld [vmem:[#allocation11 + $0x78] sm:$0xff]
    %v854 = vld [vmem:[#allocation11 + $0x80] sm:$0xff]
    %v855 = vld [vmem:[#allocation11 + $0x88] sm:$0xff]
    %v856 = vld [vmem:[#allocation11 + $0x90] sm:$0xff]
    %v857 = vld [vmem:[#allocation11 + $0x98] sm:$0xff]
    %v858 = vld [vmem:[#allocation11 + $0xa0] sm:$0xff]
    %v859 = vld [vmem:[#allocation11 + $0xa8] sm:$0xff]
    %v860 = vld [vmem:[#allocation11 + $0xb0] sm:$0xff]
    %v861 = vld [vmem:[#allocation11 + $0xb8] sm:$0xff]
    %v862 = vld [vmem:[#allocation11 + $0xc0] sm:$0xff]
    %v863 = vld [vmem:[#allocation11 + $0xc8] sm:$0xff]
    %v864 = vld [vmem:[#allocation11 + $0xd0] sm:$0xff]
    %v865 = vld [vmem:[#allocation11 + $0xd8] sm:$0xff]
    %v866 = vld [vmem:[#allocation11 + $0xe0] sm:$0xff]
    %v867 = vld [vmem:[#allocation11 + $0xe8] sm:$0xff]
    %v868 = vld [vmem:[#allocation11 + $0xf0] sm:$0xff]
    %v869 = vld [vmem:[#allocation11 + $0xf8] sm:$0xff]
    %v870 = vld [vmem:[#allocation11 + $0x100] sm:$0xff]
    %v871 = vld [vmem:[#allocation11 + $0x108] sm:$0xff]
    %v872 = vld [vmem:[#allocation11 + $0x110] sm:$0xff]
    %v873 = vld [vmem:[#allocation11 + $0x118] sm:$0xff]
    %v874 = vld [vmem:[#allocation11 + $0x120] sm:$0xff]
    %v875 = vld [vmem:[#allocation11 + $0x128] sm:$0xff]
    %v876 = vld [vmem:[#allocation11 + $0x130] sm:$0xff]
    %v877 = vld [vmem:[#allocation11 + $0x138] sm:$0xff]
    %v878 = vld [vmem:[#allocation11 + $0x140] sm:$0xff]
    %v879 = vld [vmem:[#allocation11 + $0x148] sm:$0xff]
    %v880 = vld [vmem:[#allocation11 + $0x150] sm:$0xff]
    %v881 = vld [vmem:[#allocation11 + $0x158] sm:$0xff]
    %v882 = vld [vmem:[#allocation11 + $0x160] sm:$0xff]
    %v883 = vld [vmem:[#allocation11 + $0x168] sm:$0xff]
    %v884 = vld [vmem:[#allocation11 + $0x170] sm:$0xff]
    %v885 = vld [vmem:[#allocation11 + $0x178] sm:$0xff]
    %v886 = vld [vmem:[#allocation11 + $0x180] sm:$0xff]
    %v887 = vld [vmem:[#allocation11 + $0x188] sm:$0xff]
    %v888 = vld [vmem:[#allocation11 + $0x190] sm:$0xff]
    %v889 = vld [vmem:[#allocation11 + $0x198] sm:$0xff]
    %v890 = vld [vmem:[#allocation11 + $0x1a0] sm:$0xff]
    %v891 = vld [vmem:[#allocation11 + $0x1a8] sm:$0xff]
    %v892 = vld [vmem:[#allocation11 + $0x1b0] sm:$0xff]
    %v893 = vld [vmem:[#allocation11 + $0x1b8] sm:$0xff]
    %v894 = vld [vmem:[#allocation11 + $0x1c0] sm:$0xff]
    %v895 = vld [vmem:[#allocation11 + $0x1c8] sm:$0xff]
    %v896 = vld [vmem:[#allocation11 + $0x1d0] sm:$0xff]
    %v897 = vld [vmem:[#allocation11 + $0x1d8] sm:$0xff]
    %v898 = vld [vmem:[#allocation11 + $0x1e0] sm:$0xff]
    %v899 = vld [vmem:[#allocation11 + $0x1e8] sm:$0xff]
    %v900 = vld [vmem:[#allocation11 + $0x1f0] sm:$0xff]
    %v901 = vld [vmem:[#allocation11 + $0x1f8] sm:$0xff]
    %v902 = vld [vmem:[#allocation11 + $0x200] sm:$0xff]
    %v903 = vld [vmem:[#allocation11 + $0x208] sm:$0xff]
    %v904 = vld [vmem:[#allocation11 + $0x210] sm:$0xff]
    %v905 = vld [vmem:[#allocation11 + $0x218] sm:$0xff]
    %v906 = vld [vmem:[#allocation11 + $0x220] sm:$0xff]
    %v907 = vld [vmem:[#allocation11 + $0x228] sm:$0xff]
    %v908 = vld [vmem:[#allocation11 + $0x230] sm:$0xff]
    %v909 = vld [vmem:[#allocation11 + $0x238] sm:$0xff]
    %v910 = vld [vmem:[#allocation11 + $0x240] sm:$0xff]
    %v911 = vld [vmem:[#allocation11 + $0x248] sm:$0xff]
    %v912 = vld [vmem:[#allocation11 + $0x250] sm:$0xff]
    %v913 = vld [vmem:[#allocation11 + $0x258] sm:$0xff]
    %v914 = vld [vmem:[#allocation11 + $0x260] sm:$0xff]
    %v915 = vld [vmem:[#allocation11 + $0x268] sm:$0xff]
    %v916 = vld [vmem:[#allocation11 + $0x270] sm:$0xff]
    %v917 = vld [vmem:[#allocation11 + $0x278] sm:$0xff]
    %v918 = vld [vmem:[#allocation11 + $0x280] sm:$0xff]
    %v919 = vld [vmem:[#allocation11 + $0x288] sm:$0xff]
    %v920 = vld [vmem:[#allocation11 + $0x290] sm:$0xff]
    %v921 = vld [vmem:[#allocation11 + $0x298] sm:$0xff]
    %v922 = vld [vmem:[#allocation11 + $0x2a0] sm:$0xff]
    %v923 = vld [vmem:[#allocation11 + $0x2a8] sm:$0xff]
    %v924 = vld [vmem:[#allocation11 + $0x2b0] sm:$0xff]
    %v925 = vld [vmem:[#allocation11 + $0x2b8] sm:$0xff]
    %v926 = vld [vmem:[#allocation11 + $0x2c0] sm:$0xff]
    %v927 = vld [vmem:[#allocation11 + $0x2c8] sm:$0xff]
    %v928 = vld [vmem:[#allocation11 + $0x2d0] sm:$0xff]
    %v929 = vld [vmem:[#allocation11 + $0x2d8] sm:$0xff]
    %v930 = vld [vmem:[#allocation11 + $0x2e0] sm:$0xff]
    %v931 = vld [vmem:[#allocation11 + $0x2e8] sm:$0xff]
    %v932 = vld [vmem:[#allocation11 + $0x2f0] sm:$0xff]
    %v933 = vld [vmem:[#allocation11 + $0x2f8] sm:$0xff]
    %v934 = vld [vmem:[#allocation11 + $0x300] sm:$0xff]
    %v935 = vld [vmem:[#allocation11 + $0x308] sm:$0xff]
    %v936 = vld [vmem:[#allocation11 + $0x310] sm:$0xff]
    %v937 = vld [vmem:[#allocation11 + $0x318] sm:$0xff]
    %v938 = vld [vmem:[#allocation11 + $0x320] sm:$0xff]
    %v939 = vld [vmem:[#allocation11 + $0x328] sm:$0xff]
    %v940 = vld [vmem:[#allocation11 + $0x330] sm:$0xff]
    %v941 = vld [vmem:[#allocation11 + $0x338] sm:$0xff]
    %v942 = vld [vmem:[#allocation11 + $0x340] sm:$0xff]
    %v943 = vld [vmem:[#allocation11 + $0x348] sm:$0xff]
    %v944 = vld [vmem:[#allocation11 + $0x350] sm:$0xff]
    %v945 = vld [vmem:[#allocation11 + $0x358] sm:$0xff]
    %v946 = vld [vmem:[#allocation11 + $0x360] sm:$0xff]
    %v947 = vld [vmem:[#allocation11 + $0x368] sm:$0xff]
    %v948 = vld [vmem:[#allocation11 + $0x370] sm:$0xff]
    %v949 = vld [vmem:[#allocation11 + $0x378] sm:$0xff]
    %v950 = vld [vmem:[#allocation11 + $0x380] sm:$0xff]
    %v951 = vld [vmem:[#allocation11 + $0x388] sm:$0xff]
    %v952 = vld [vmem:[#allocation11 + $0x390] sm:$0xff]
    %v953 = vld [vmem:[#allocation11 + $0x398] sm:$0xff]
    %v954 = vld [vmem:[#allocation11 + $0x3a0] sm:$0xff]
    %v955 = vld [vmem:[#allocation11 + $0x3a8] sm:$0xff]
    %v956 = vld [vmem:[#allocation11 + $0x3b0] sm:$0xff]
    %v957 = vld [vmem:[#allocation11 + $0x3b8] sm:$0xff]
    %v958 = vld [vmem:[#allocation11 + $0x3c0] sm:$0xff]
    %v959 = vld [vmem:[#allocation11 + $0x3c8] sm:$0xff]
    %v960 = vld [vmem:[#allocation11 + $0x3d0] sm:$0xff]
    %v961 = vld [vmem:[#allocation11 + $0x3d8] sm:$0xff]
    %v962 = vld [vmem:[#allocation11 + $0x3e0] sm:$0xff]
    %v963 = vld [vmem:[#allocation11 + $0x3e8] sm:$0xff]
    %v964 = vld [vmem:[#allocation11 + $0x3f0] sm:$0xff]
    %v965 = vld [vmem:[#allocation11 + $0x3f8] sm:$0xff]
    %v966 = vld [vmem:[#allocation11 + $0x400] sm:$0xff]
    %v967 = vld [vmem:[#allocation11 + $0x408] sm:$0xff]
    %v968 = vld [vmem:[#allocation11 + $0x410] sm:$0xff]
    %v969 = vld [vmem:[#allocation11 + $0x418] sm:$0xff]
    %v970 = vld [vmem:[#allocation11 + $0x420] sm:$0xff]
    %v971 = vld [vmem:[#allocation11 + $0x428] sm:$0xff]
    %v972 = vld [vmem:[#allocation11 + $0x430] sm:$0xff]
    %v973 = vld [vmem:[#allocation11 + $0x438] sm:$0xff]
    %v974 = vld [vmem:[#allocation11 + $0x440] sm:$0xff]
    %v975 = vld [vmem:[#allocation11 + $0x448] sm:$0xff]
    %v976 = vld [vmem:[#allocation11 + $0x450] sm:$0xff]
    %v977 = vld [vmem:[#allocation11 + $0x458] sm:$0xff]
    %v978 = vld [vmem:[#allocation11 + $0x460] sm:$0xff]
    %v979 = vld [vmem:[#allocation11 + $0x468] sm:$0xff]
    %v980 = vld [vmem:[#allocation11 + $0x470] sm:$0xff]
    %v981 = vld [vmem:[#allocation11 + $0x478] sm:$0xff]
    %v982 = vld [vmem:[#allocation11 + $0x480] sm:$0xff]
    %v983 = vld [vmem:[#allocation11 + $0x488] sm:$0xff]
    %v984 = vld [vmem:[#allocation11 + $0x490] sm:$0xff]
    %v985 = vld [vmem:[#allocation11 + $0x498] sm:$0xff]
    %v986 = vld [vmem:[#allocation11 + $0x4a0] sm:$0xff]
    %v987 = vld [vmem:[#allocation11 + $0x4a8] sm:$0xff]
    %v988 = vld [vmem:[#allocation11 + $0x4b0] sm:$0xff]
    %v989 = vld [vmem:[#allocation11 + $0x4b8] sm:$0xff]
    %v990 = vld [vmem:[#allocation11 + $0x4c0] sm:$0xff]
    %v991 = vld [vmem:[#allocation11 + $0x4c8] sm:$0xff]
    %v992 = vld [vmem:[#allocation11 + $0x4d0] sm:$0xff]
    %v993 = vld [vmem:[#allocation11 + $0x4d8] sm:$0xff]
    %v994 = vld [vmem:[#allocation11 + $0x4e0] sm:$0xff]
    %v995 = vld [vmem:[#allocation11 + $0x4e8] sm:$0xff]
    %v996 = vld [vmem:[#allocation11 + $0x4f0] sm:$0xff]
    %v997 = vld [vmem:[#allocation11 + $0x4f8] sm:$0xff]
    %v998 = vld [vmem:[#allocation11 + $0x500] sm:$0xff]
    %v999 = vld [vmem:[#allocation11 + $0x508] sm:$0xff]
    %v1000 = vld [vmem:[#allocation11 + $0x510] sm:$0xff]
    %v1001 = vld [vmem:[#allocation11 + $0x518] sm:$0xff]
    %v1002 = vld [vmem:[#allocation11 + $0x520] sm:$0xff]
    %v1003 = vld [vmem:[#allocation11 + $0x528] sm:$0xff]
    %v1004 = vld [vmem:[#allocation11 + $0x530] sm:$0xff]
    %v1005 = vld [vmem:[#allocation11 + $0x538] sm:$0xff]
    %v1006 = vld [vmem:[#allocation11 + $0x540] sm:$0xff]
    %v1007 = vld [vmem:[#allocation11 + $0x548] sm:$0xff]
    %v1008 = vld [vmem:[#allocation11 + $0x550] sm:$0xff]
    %v1009 = vld [vmem:[#allocation11 + $0x558] sm:$0xff]
    %v1010 = vld [vmem:[#allocation11 + $0x560] sm:$0xff]
    %v1011 = vld [vmem:[#allocation11 + $0x568] sm:$0xff]
    %v1012 = vld [vmem:[#allocation11 + $0x570] sm:$0xff]
    %v1013 = vld [vmem:[#allocation11 + $0x578] sm:$0xff]
    %v1014 = vld [vmem:[#allocation11 + $0x580] sm:$0xff]
    %v1015 = vld [vmem:[#allocation11 + $0x588] sm:$0xff]
    %v1016 = vld [vmem:[#allocation11 + $0x590] sm:$0xff]
    %v1017 = vld [vmem:[#allocation11 + $0x598] sm:$0xff]
    %v1018 = vld [vmem:[#allocation11 + $0x5a0] sm:$0xff]
    %v1019 = vld [vmem:[#allocation11 + $0x5a8] sm:$0xff]
    %v1020 = vld [vmem:[#allocation11 + $0x5b0] sm:$0xff]
    %v1021 = vld [vmem:[#allocation11 + $0x5b8] sm:$0xff]
    %v1022 = vld [vmem:[#allocation11 + $0x5c0] sm:$0xff]
    %v1023 = vld [vmem:[#allocation11 + $0x5c8] sm:$0xff]
    %v1024 = vld [vmem:[#allocation11 + $0x5d0] sm:$0xff]
    %v1025 = vld [vmem:[#allocation11 + $0x5d8] sm:$0xff]
    %v1026 = vld [vmem:[#allocation11 + $0x5e0] sm:$0xff]
    %v1027 = vld [vmem:[#allocation11 + $0x5e8] sm:$0xff]
    %v1028 = vld [vmem:[#allocation11 + $0x5f0] sm:$0xff]
    %v1029 = vld [vmem:[#allocation11 + $0x5f8] sm:$0xff]
    %v1030 = vld [vmem:[#allocation11 + $0x600] sm:$0xff]
    %v1031 = vld [vmem:[#allocation11 + $0x608] sm:$0xff]
    %v1032 = vld [vmem:[#allocation11 + $0x610] sm:$0xff]
    %v1033 = vld [vmem:[#allocation11 + $0x618] sm:$0xff]
    %v1034 = vld [vmem:[#allocation11 + $0x620] sm:$0xff]
    %v1035 = vld [vmem:[#allocation11 + $0x628] sm:$0xff]
    %v1036 = vld [vmem:[#allocation11 + $0x630] sm:$0xff]
    %v1037 = vld [vmem:[#allocation11 + $0x638] sm:$0xff]
    %v1038 = vld [vmem:[#allocation11 + $0x640] sm:$0xff]
    %v1039 = vld [vmem:[#allocation11 + $0x648] sm:$0xff]
    %v1040 = vld [vmem:[#allocation11 + $0x650] sm:$0xff]
    %v1041 = vld [vmem:[#allocation11 + $0x658] sm:$0xff]
    %v1042 = vld [vmem:[#allocation11 + $0x660] sm:$0xff]
    %v1043 = vld [vmem:[#allocation11 + $0x668] sm:$0xff]
    %v1044 = vld [vmem:[#allocation11 + $0x670] sm:$0xff]
    %v1045 = vld [vmem:[#allocation11 + $0x678] sm:$0xff]
    %v1046 = vld [vmem:[#allocation11 + $0x680] sm:$0xff]
    %v1047 = vld [vmem:[#allocation11 + $0x688] sm:$0xff]
    %v1048 = vld [vmem:[#allocation11 + $0x690] sm:$0xff]
    %v1049 = vld [vmem:[#allocation11 + $0x698] sm:$0xff]
    %v1050 = vld [vmem:[#allocation11 + $0x6a0] sm:$0xff]
    %v1051 = vld [vmem:[#allocation11 + $0x6a8] sm:$0xff]
    %v1052 = vld [vmem:[#allocation11 + $0x6b0] sm:$0xff]
    %v1053 = vld [vmem:[#allocation11 + $0x6b8] sm:$0xff]
    %v1054 = vld [vmem:[#allocation11 + $0x6c0] sm:$0xff]
    %v1055 = vld [vmem:[#allocation11 + $0x6c8] sm:$0xff]
    %v1056 = vld [vmem:[#allocation11 + $0x6d0] sm:$0xff]
    %v1057 = vld [vmem:[#allocation11 + $0x6d8] sm:$0xff]
    %v1058 = vld [vmem:[#allocation11 + $0x6e0] sm:$0xff]
    %v1059 = vld [vmem:[#allocation11 + $0x6e8] sm:$0xff]
    %v1060 = vld [vmem:[#allocation11 + $0x6f0] sm:$0xff]
    %v1061 = vld [vmem:[#allocation11 + $0x6f8] sm:$0xff]
    %v1062 = vld [vmem:[#allocation11 + $0x700] sm:$0xff]
    %v1063 = vld [vmem:[#allocation11 + $0x708] sm:$0xff]
    %v1064 = vld [vmem:[#allocation11 + $0x710] sm:$0xff]
    %v1065 = vld [vmem:[#allocation11 + $0x718] sm:$0xff]
    %v1066 = vld [vmem:[#allocation11 + $0x720] sm:$0xff]
    %v1067 = vld [vmem:[#allocation11 + $0x728] sm:$0xff]
    %v1068 = vld [vmem:[#allocation11 + $0x730] sm:$0xff]
    %v1069 = vld [vmem:[#allocation11 + $0x738] sm:$0xff]
    %v1070 = vld [vmem:[#allocation11 + $0x740] sm:$0xff]
    %v1071 = vld [vmem:[#allocation11 + $0x748] sm:$0xff]
    %v1072 = vld [vmem:[#allocation11 + $0x750] sm:$0xff]
    %v1073 = vld [vmem:[#allocation11 + $0x758] sm:$0xff]
    %v1074 = vld [vmem:[#allocation11 + $0x760] sm:$0xff]
    %v1075 = vld [vmem:[#allocation11 + $0x768] sm:$0xff]
    %v1076 = vld [vmem:[#allocation11 + $0x770] sm:$0xff]
    %v1077 = vld [vmem:[#allocation11 + $0x778] sm:$0xff]
    %v1078 = vld [vmem:[#allocation11 + $0x780] sm:$0xff]
    %v1079 = vld [vmem:[#allocation11 + $0x788] sm:$0xff]
    %v1080 = vld [vmem:[#allocation11 + $0x790] sm:$0xff]
    %v1081 = vld [vmem:[#allocation11 + $0x798] sm:$0xff]
    %v1082 = vld [vmem:[#allocation11 + $0x7a0] sm:$0xff]
    %v1083 = vld [vmem:[#allocation11 + $0x7a8] sm:$0xff]
    %v1084 = vld [vmem:[#allocation11 + $0x7b0] sm:$0xff]
    %v1085 = vld [vmem:[#allocation11 + $0x7b8] sm:$0xff]
    %v1086 = vld [vmem:[#allocation11 + $0x7c0] sm:$0xff]
    %v1087 = vld [vmem:[#allocation11 + $0x7c8] sm:$0xff]
    %v1088 = vld [vmem:[#allocation11 + $0x7d0] sm:$0xff]
    %v1089 = vld [vmem:[#allocation11 + $0x7d8] sm:$0xff]
    %v1090 = vld [vmem:[#allocation11 + $0x7e0] sm:$0xff]
    %v1091 = vld [vmem:[#allocation11 + $0x7e8] sm:$0xff]
    %v1092 = vld [vmem:[#allocation11 + $0x7f0] sm:$0xff]
    %v1093 = vld [vmem:[#allocation11 + $0x7f8] sm:$0xff]
    %v1094 = vld [vmem:[#allocation13] sm:$0xff]
    %v1096 = vperm.slane %v1094, 0
    %v1097 = vperm.slane %v1094, 1
    %v1098 = vperm.slane %v1094, 2
    %v1099 = vperm.slane %v1094, 3
    %v1100 = vperm.slane %v1094, 4
    %v1101 = vperm.slane %v1094, 5
    %v1102 = vperm.slane %v1094, 6
    %v1103 = vperm.slane %v1094, 7
    %v1368 = vunpack.c.l.b16 %v838
    %v1369 = vunpack.c.h.b16 %v838
    %v1370 = vunpack.c.l.b16 %v839
    %v1371 = vunpack.c.h.b16 %v839
    %v1372 = vunpack.c.l.b16 %v840
    %v1373 = vunpack.c.h.b16 %v840
    %v1374 = vunpack.c.l.b16 %v841
    %v1375 = vunpack.c.h.b16 %v841
    %v1376 = vunpack.c.l.b16 %v842
    %v1377 = vunpack.c.h.b16 %v842
    %v1378 = vunpack.c.l.b16 %v843
    %v1379 = vunpack.c.h.b16 %v843
    %v1380 = vunpack.c.l.b16 %v844
    %v1381 = vunpack.c.h.b16 %v844
    %v1382 = vunpack.c.l.b16 %v845
    %v1383 = vunpack.c.h.b16 %v845
    %v1384 = vunpack.c.l.b16 %v846
    %v1385 = vunpack.c.h.b16 %v846
    %v1386 = vunpack.c.l.b16 %v847
    %v1387 = vunpack.c.h.b16 %v847
    %v1388 = vunpack.c.l.b16 %v848
    %v1389 = vunpack.c.h.b16 %v848
    %v1390 = vunpack.c.l.b16 %v849
    %v1391 = vunpack.c.h.b16 %v849
    %v1392 = vunpack.c.l.b16 %v850
    %v1393 = vunpack.c.h.b16 %v850
    %v1394 = vunpack.c.l.b16 %v851
    %v1395 = vunpack.c.h.b16 %v851
    %v1396 = vunpack.c.l.b16 %v852
    %v1397 = vunpack.c.h.b16 %v852
    %v1398 = vunpack.c.l.b16 %v853
    %v1399 = vunpack.c.h.b16 %v853
    %v1400 = vunpack.c.l.b16 %v854
    %v1401 = vunpack.c.h.b16 %v854
    %v1402 = vunpack.c.l.b16 %v855
    %v1403 = vunpack.c.h.b16 %v855
    %v1404 = vunpack.c.l.b16 %v856
    %v1405 = vunpack.c.h.b16 %v856
    %v1406 = vunpack.c.l.b16 %v857
    %v1407 = vunpack.c.h.b16 %v857
    %v1408 = vunpack.c.l.b16 %v858
    %v1409 = vunpack.c.h.b16 %v858
    %v1410 = vunpack.c.l.b16 %v859
    %v1411 = vunpack.c.h.b16 %v859
    %v1412 = vunpack.c.l.b16 %v860
    %v1413 = vunpack.c.h.b16 %v860
    %v1414 = vunpack.c.l.b16 %v861
    %v1415 = vunpack.c.h.b16 %v861
    %v1416 = vunpack.c.l.b16 %v862
    %v1417 = vunpack.c.h.b16 %v862
    %v1418 = vunpack.c.l.b16 %v863
    %v1419 = vunpack.c.h.b16 %v863
    %v1420 = vunpack.c.l.b16 %v864
    %v1421 = vunpack.c.h.b16 %v864
    %v1422 = vunpack.c.l.b16 %v865
    %v1423 = vunpack.c.h.b16 %v865
    %v1424 = vunpack.c.l.b16 %v866
    %v1425 = vunpack.c.h.b16 %v866
    %v1426 = vunpack.c.l.b16 %v867
    %v1427 = vunpack.c.h.b16 %v867
    %v1428 = vunpack.c.l.b16 %v868
    %v1429 = vunpack.c.h.b16 %v868
    %v1430 = vunpack.c.l.b16 %v869
    %v1431 = vunpack.c.h.b16 %v869
    %v1432 = vunpack.c.l.b16 %v870
    %v1433 = vunpack.c.h.b16 %v870
    %v1434 = vunpack.c.l.b16 %v871
    %v1435 = vunpack.c.h.b16 %v871
    %v1436 = vunpack.c.l.b16 %v872
    %v1437 = vunpack.c.h.b16 %v872
    %v1438 = vunpack.c.l.b16 %v873
    %v1439 = vunpack.c.h.b16 %v873
    %v1440 = vunpack.c.l.b16 %v874
    %v1441 = vunpack.c.h.b16 %v874
    %v1442 = vunpack.c.l.b16 %v875
    %v1443 = vunpack.c.h.b16 %v875
    %v1444 = vunpack.c.l.b16 %v876
    %v1445 = vunpack.c.h.b16 %v876
    %v1446 = vunpack.c.l.b16 %v877
    %v1447 = vunpack.c.h.b16 %v877
    %v1448 = vunpack.c.l.b16 %v878
    %v1449 = vunpack.c.h.b16 %v878
    %v1450 = vunpack.c.l.b16 %v879
    %v1451 = vunpack.c.h.b16 %v879
    %v1452 = vunpack.c.l.b16 %v880
    %v1453 = vunpack.c.h.b16 %v880
    %v1454 = vunpack.c.l.b16 %v881
    %v1455 = vunpack.c.h.b16 %v881
    %v1456 = vunpack.c.l.b16 %v882
    %v1457 = vunpack.c.h.b16 %v882
    %v1458 = vunpack.c.l.b16 %v883
    %v1459 = vunpack.c.h.b16 %v883
    %v1460 = vunpack.c.l.b16 %v884
    %v1461 = vunpack.c.h.b16 %v884
    %v1462 = vunpack.c.l.b16 %v885
    %v1463 = vunpack.c.h.b16 %v885
    %v1464 = vunpack.c.l.b16 %v886
    %v1465 = vunpack.c.h.b16 %v886
    %v1466 = vunpack.c.l.b16 %v887
    %v1467 = vunpack.c.h.b16 %v887
    %v1468 = vunpack.c.l.b16 %v888
    %v1469 = vunpack.c.h.b16 %v888
    %v1470 = vunpack.c.l.b16 %v889
    %v1471 = vunpack.c.h.b16 %v889
    %v1472 = vunpack.c.l.b16 %v890
    %v1473 = vunpack.c.h.b16 %v890
    %v1474 = vunpack.c.l.b16 %v891
    %v1475 = vunpack.c.h.b16 %v891
    %v1476 = vunpack.c.l.b16 %v892
    %v1477 = vunpack.c.h.b16 %v892
    %v1478 = vunpack.c.l.b16 %v893
    %v1479 = vunpack.c.h.b16 %v893
    %v1480 = vunpack.c.l.b16 %v894
    %v1481 = vunpack.c.h.b16 %v894
    %v1482 = vunpack.c.l.b16 %v895
    %v1483 = vunpack.c.h.b16 %v895
    %v1484 = vunpack.c.l.b16 %v896
    %v1485 = vunpack.c.h.b16 %v896
    %v1486 = vunpack.c.l.b16 %v897
    %v1487 = vunpack.c.h.b16 %v897
    %v1488 = vunpack.c.l.b16 %v898
    %v1489 = vunpack.c.h.b16 %v898
    %v1490 = vunpack.c.l.b16 %v899
    %v1491 = vunpack.c.h.b16 %v899
    %v1492 = vunpack.c.l.b16 %v900
    %v1493 = vunpack.c.h.b16 %v900
    %v1494 = vunpack.c.l.b16 %v901
    %v1495 = vunpack.c.h.b16 %v901
    %v1496 = vunpack.c.l.b16 %v902
    %v1497 = vunpack.c.h.b16 %v902
    %v1498 = vunpack.c.l.b16 %v903
    %v1499 = vunpack.c.h.b16 %v903
    %v1500 = vunpack.c.l.b16 %v904
    %v1501 = vunpack.c.h.b16 %v904
    %v1502 = vunpack.c.l.b16 %v905
    %v1503 = vunpack.c.h.b16 %v905
    %v1504 = vunpack.c.l.b16 %v906
    %v1505 = vunpack.c.h.b16 %v906
    %v1506 = vunpack.c.l.b16 %v907
    %v1507 = vunpack.c.h.b16 %v907
    %v1508 = vunpack.c.l.b16 %v908
    %v1509 = vunpack.c.h.b16 %v908
    %v1510 = vunpack.c.l.b16 %v909
    %v1511 = vunpack.c.h.b16 %v909
    %v1512 = vunpack.c.l.b16 %v910
    %v1513 = vunpack.c.h.b16 %v910
    %v1514 = vunpack.c.l.b16 %v911
    %v1515 = vunpack.c.h.b16 %v911
    %v1516 = vunpack.c.l.b16 %v912
    %v1517 = vunpack.c.h.b16 %v912
    %v1518 = vunpack.c.l.b16 %v913
    %v1519 = vunpack.c.h.b16 %v913
    %v1520 = vunpack.c.l.b16 %v914
    %v1521 = vunpack.c.h.b16 %v914
    %v1522 = vunpack.c.l.b16 %v915
    %v1523 = vunpack.c.h.b16 %v915
    %v1524 = vunpack.c.l.b16 %v916
    %v1525 = vunpack.c.h.b16 %v916
    %v1526 = vunpack.c.l.b16 %v917
    %v1527 = vunpack.c.h.b16 %v917
    %v1528 = vunpack.c.l.b16 %v918
    %v1529 = vunpack.c.h.b16 %v918
    %v1530 = vunpack.c.l.b16 %v919
    %v1531 = vunpack.c.h.b16 %v919
    %v1532 = vunpack.c.l.b16 %v920
    %v1533 = vunpack.c.h.b16 %v920
    %v1534 = vunpack.c.l.b16 %v921
    %v1535 = vunpack.c.h.b16 %v921
    %v1536 = vunpack.c.l.b16 %v922
    %v1537 = vunpack.c.h.b16 %v922
    %v1538 = vunpack.c.l.b16 %v923
    %v1539 = vunpack.c.h.b16 %v923
    %v1540 = vunpack.c.l.b16 %v924
    %v1541 = vunpack.c.h.b16 %v924
    %v1542 = vunpack.c.l.b16 %v925
    %v1543 = vunpack.c.h.b16 %v925
    %v1544 = vunpack.c.l.b16 %v926
    %v1545 = vunpack.c.h.b16 %v926
    %v1546 = vunpack.c.l.b16 %v927
    %v1547 = vunpack.c.h.b16 %v927
    %v1548 = vunpack.c.l.b16 %v928
    %v1549 = vunpack.c.h.b16 %v928
    %v1550 = vunpack.c.l.b16 %v929
    %v1551 = vunpack.c.h.b16 %v929
    %v1552 = vunpack.c.l.b16 %v930
    %v1553 = vunpack.c.h.b16 %v930
    %v1554 = vunpack.c.l.b16 %v931
    %v1555 = vunpack.c.h.b16 %v931
    %v1556 = vunpack.c.l.b16 %v932
    %v1557 = vunpack.c.h.b16 %v932
    %v1558 = vunpack.c.l.b16 %v933
    %v1559 = vunpack.c.h.b16 %v933
    %v1560 = vunpack.c.l.b16 %v934
    %v1561 = vunpack.c.h.b16 %v934
    %v1562 = vunpack.c.l.b16 %v935
    %v1563 = vunpack.c.h.b16 %v935
    %v1564 = vunpack.c.l.b16 %v936
    %v1565 = vunpack.c.h.b16 %v936
    %v1566 = vunpack.c.l.b16 %v937
    %v1567 = vunpack.c.h.b16 %v937
    %v1568 = vunpack.c.l.b16 %v938
    %v1569 = vunpack.c.h.b16 %v938
    %v1570 = vunpack.c.l.b16 %v939
    %v1571 = vunpack.c.h.b16 %v939
    %v1572 = vunpack.c.l.b16 %v940
    %v1573 = vunpack.c.h.b16 %v940
    %v1574 = vunpack.c.l.b16 %v941
    %v1575 = vunpack.c.h.b16 %v941
    %v1576 = vunpack.c.l.b16 %v942
    %v1577 = vunpack.c.h.b16 %v942
    %v1578 = vunpack.c.l.b16 %v943
    %v1579 = vunpack.c.h.b16 %v943
    %v1580 = vunpack.c.l.b16 %v944
    %v1581 = vunpack.c.h.b16 %v944
    %v1582 = vunpack.c.l.b16 %v945
    %v1583 = vunpack.c.h.b16 %v945
    %v1584 = vunpack.c.l.b16 %v946
    %v1585 = vunpack.c.h.b16 %v946
    %v1586 = vunpack.c.l.b16 %v947
    %v1587 = vunpack.c.h.b16 %v947
    %v1588 = vunpack.c.l.b16 %v948
    %v1589 = vunpack.c.h.b16 %v948
    %v1590 = vunpack.c.l.b16 %v949
    %v1591 = vunpack.c.h.b16 %v949
    %v1592 = vunpack.c.l.b16 %v950
    %v1593 = vunpack.c.h.b16 %v950
    %v1594 = vunpack.c.l.b16 %v951
    %v1595 = vunpack.c.h.b16 %v951
    %v1596 = vunpack.c.l.b16 %v952
    %v1597 = vunpack.c.h.b16 %v952
    %v1598 = vunpack.c.l.b16 %v953
    %v1599 = vunpack.c.h.b16 %v953
    %v1600 = vunpack.c.l.b16 %v954
    %v1601 = vunpack.c.h.b16 %v954
    %v1602 = vunpack.c.l.b16 %v955
    %v1603 = vunpack.c.h.b16 %v955
    %v1604 = vunpack.c.l.b16 %v956
    %v1605 = vunpack.c.h.b16 %v956
    %v1606 = vunpack.c.l.b16 %v957
    %v1607 = vunpack.c.h.b16 %v957
    %v1608 = vunpack.c.l.b16 %v958
    %v1609 = vunpack.c.h.b16 %v958
    %v1610 = vunpack.c.l.b16 %v959
    %v1611 = vunpack.c.h.b16 %v959
    %v1612 = vunpack.c.l.b16 %v960
    %v1613 = vunpack.c.h.b16 %v960
    %v1614 = vunpack.c.l.b16 %v961
    %v1615 = vunpack.c.h.b16 %v961
    %v1616 = vunpack.c.l.b16 %v962
    %v1617 = vunpack.c.h.b16 %v962
    %v1618 = vunpack.c.l.b16 %v963
    %v1619 = vunpack.c.h.b16 %v963
    %v1620 = vunpack.c.l.b16 %v964
    %v1621 = vunpack.c.h.b16 %v964
    %v1622 = vunpack.c.l.b16 %v965
    %v1623 = vunpack.c.h.b16 %v965
    %v1624 = vunpack.c.l.b16 %v966
    %v1625 = vunpack.c.h.b16 %v966
    %v1626 = vunpack.c.l.b16 %v967
    %v1627 = vunpack.c.h.b16 %v967
    %v1628 = vunpack.c.l.b16 %v968
    %v1629 = vunpack.c.h.b16 %v968
    %v1630 = vunpack.c.l.b16 %v969
    %v1631 = vunpack.c.h.b16 %v969
    %v1632 = vunpack.c.l.b16 %v970
    %v1633 = vunpack.c.h.b16 %v970
    %v1634 = vunpack.c.l.b16 %v971
    %v1635 = vunpack.c.h.b16 %v971
    %v1636 = vunpack.c.l.b16 %v972
    %v1637 = vunpack.c.h.b16 %v972
    %v1638 = vunpack.c.l.b16 %v973
    %v1639 = vunpack.c.h.b16 %v973
    %v1640 = vunpack.c.l.b16 %v974
    %v1641 = vunpack.c.h.b16 %v974
    %v1642 = vunpack.c.l.b16 %v975
    %v1643 = vunpack.c.h.b16 %v975
    %v1644 = vunpack.c.l.b16 %v976
    %v1645 = vunpack.c.h.b16 %v976
    %v1646 = vunpack.c.l.b16 %v977
    %v1647 = vunpack.c.h.b16 %v977
    %v1648 = vunpack.c.l.b16 %v978
    %v1649 = vunpack.c.h.b16 %v978
    %v1650 = vunpack.c.l.b16 %v979
    %v1651 = vunpack.c.h.b16 %v979
    %v1652 = vunpack.c.l.b16 %v980
    %v1653 = vunpack.c.h.b16 %v980
    %v1654 = vunpack.c.l.b16 %v981
    %v1655 = vunpack.c.h.b16 %v981
    %v1656 = vunpack.c.l.b16 %v982
    %v1657 = vunpack.c.h.b16 %v982
    %v1658 = vunpack.c.l.b16 %v983
    %v1659 = vunpack.c.h.b16 %v983
    %v1660 = vunpack.c.l.b16 %v984
    %v1661 = vunpack.c.h.b16 %v984
    %v1662 = vunpack.c.l.b16 %v985
    %v1663 = vunpack.c.h.b16 %v985
    %v1664 = vunpack.c.l.b16 %v986
    %v1665 = vunpack.c.h.b16 %v986
    %v1666 = vunpack.c.l.b16 %v987
    %v1667 = vunpack.c.h.b16 %v987
    %v1668 = vunpack.c.l.b16 %v988
    %v1669 = vunpack.c.h.b16 %v988
    %v1670 = vunpack.c.l.b16 %v989
    %v1671 = vunpack.c.h.b16 %v989
    %v1672 = vunpack.c.l.b16 %v990
    %v1673 = vunpack.c.h.b16 %v990
    %v1674 = vunpack.c.l.b16 %v991
    %v1675 = vunpack.c.h.b16 %v991
    %v1676 = vunpack.c.l.b16 %v992
    %v1677 = vunpack.c.h.b16 %v992
    %v1678 = vunpack.c.l.b16 %v993
    %v1679 = vunpack.c.h.b16 %v993
    %v1680 = vunpack.c.l.b16 %v994
    %v1681 = vunpack.c.h.b16 %v994
    %v1682 = vunpack.c.l.b16 %v995
    %v1683 = vunpack.c.h.b16 %v995
    %v1684 = vunpack.c.l.b16 %v996
    %v1685 = vunpack.c.h.b16 %v996
    %v1686 = vunpack.c.l.b16 %v997
    %v1687 = vunpack.c.h.b16 %v997
    %v1688 = vunpack.c.l.b16 %v998
    %v1689 = vunpack.c.h.b16 %v998
    %v1690 = vunpack.c.l.b16 %v999
    %v1691 = vunpack.c.h.b16 %v999
    %v1692 = vunpack.c.l.b16 %v1000
    %v1693 = vunpack.c.h.b16 %v1000
    %v1694 = vunpack.c.l.b16 %v1001
    %v1695 = vunpack.c.h.b16 %v1001
    %v1696 = vunpack.c.l.b16 %v1002
    %v1697 = vunpack.c.h.b16 %v1002
    %v1698 = vunpack.c.l.b16 %v1003
    %v1699 = vunpack.c.h.b16 %v1003
    %v1700 = vunpack.c.l.b16 %v1004
    %v1701 = vunpack.c.h.b16 %v1004
    %v1702 = vunpack.c.l.b16 %v1005
    %v1703 = vunpack.c.h.b16 %v1005
    %v1704 = vunpack.c.l.b16 %v1006
    %v1705 = vunpack.c.h.b16 %v1006
    %v1706 = vunpack.c.l.b16 %v1007
    %v1707 = vunpack.c.h.b16 %v1007
    %v1708 = vunpack.c.l.b16 %v1008
    %v1709 = vunpack.c.h.b16 %v1008
    %v1710 = vunpack.c.l.b16 %v1009
    %v1711 = vunpack.c.h.b16 %v1009
    %v1712 = vunpack.c.l.b16 %v1010
    %v1713 = vunpack.c.h.b16 %v1010
    %v1714 = vunpack.c.l.b16 %v1011
    %v1715 = vunpack.c.h.b16 %v1011
    %v1716 = vunpack.c.l.b16 %v1012
    %v1717 = vunpack.c.h.b16 %v1012
    %v1718 = vunpack.c.l.b16 %v1013
    %v1719 = vunpack.c.h.b16 %v1013
    %v1720 = vunpack.c.l.b16 %v1014
    %v1721 = vunpack.c.h.b16 %v1014
    %v1722 = vunpack.c.l.b16 %v1015
    %v1723 = vunpack.c.h.b16 %v1015
    %v1724 = vunpack.c.l.b16 %v1016
    %v1725 = vunpack.c.h.b16 %v1016
    %v1726 = vunpack.c.l.b16 %v1017
    %v1727 = vunpack.c.h.b16 %v1017
    %v1728 = vunpack.c.l.b16 %v1018
    %v1729 = vunpack.c.h.b16 %v1018
    %v1730 = vunpack.c.l.b16 %v1019
    %v1731 = vunpack.c.h.b16 %v1019
    %v1732 = vunpack.c.l.b16 %v1020
    %v1733 = vunpack.c.h.b16 %v1020
    %v1734 = vunpack.c.l.b16 %v1021
    %v1735 = vunpack.c.h.b16 %v1021
    %v1736 = vunpack.c.l.b16 %v1022
    %v1737 = vunpack.c.h.b16 %v1022
    %v1738 = vunpack.c.l.b16 %v1023
    %v1739 = vunpack.c.h.b16 %v1023
    %v1740 = vunpack.c.l.b16 %v1024
    %v1741 = vunpack.c.h.b16 %v1024
    %v1742 = vunpack.c.l.b16 %v1025
    %v1743 = vunpack.c.h.b16 %v1025
    %v1744 = vunpack.c.l.b16 %v1026
    %v1745 = vunpack.c.h.b16 %v1026
    %v1746 = vunpack.c.l.b16 %v1027
    %v1747 = vunpack.c.h.b16 %v1027
    %v1748 = vunpack.c.l.b16 %v1028
    %v1749 = vunpack.c.h.b16 %v1028
    %v1750 = vunpack.c.l.b16 %v1029
    %v1751 = vunpack.c.h.b16 %v1029
    %v1752 = vunpack.c.l.b16 %v1030
    %v1753 = vunpack.c.h.b16 %v1030
    %v1754 = vunpack.c.l.b16 %v1031
    %v1755 = vunpack.c.h.b16 %v1031
    %v1756 = vunpack.c.l.b16 %v1032
    %v1757 = vunpack.c.h.b16 %v1032
    %v1758 = vunpack.c.l.b16 %v1033
    %v1759 = vunpack.c.h.b16 %v1033
    %v1760 = vunpack.c.l.b16 %v1034
    %v1761 = vunpack.c.h.b16 %v1034
    %v1762 = vunpack.c.l.b16 %v1035
    %v1763 = vunpack.c.h.b16 %v1035
    %v1764 = vunpack.c.l.b16 %v1036
    %v1765 = vunpack.c.h.b16 %v1036
    %v1766 = vunpack.c.l.b16 %v1037
    %v1767 = vunpack.c.h.b16 %v1037
    %v1768 = vunpack.c.l.b16 %v1038
    %v1769 = vunpack.c.h.b16 %v1038
    %v1770 = vunpack.c.l.b16 %v1039
    %v1771 = vunpack.c.h.b16 %v1039
    %v1772 = vunpack.c.l.b16 %v1040
    %v1773 = vunpack.c.h.b16 %v1040
    %v1774 = vunpack.c.l.b16 %v1041
    %v1775 = vunpack.c.h.b16 %v1041
    %v1776 = vunpack.c.l.b16 %v1042
    %v1777 = vunpack.c.h.b16 %v1042
    %v1778 = vunpack.c.l.b16 %v1043
    %v1779 = vunpack.c.h.b16 %v1043
    %v1780 = vunpack.c.l.b16 %v1044
    %v1781 = vunpack.c.h.b16 %v1044
    %v1782 = vunpack.c.l.b16 %v1045
    %v1783 = vunpack.c.h.b16 %v1045
    %v1784 = vunpack.c.l.b16 %v1046
    %v1785 = vunpack.c.h.b16 %v1046
    %v1786 = vunpack.c.l.b16 %v1047
    %v1787 = vunpack.c.h.b16 %v1047
    %v1788 = vunpack.c.l.b16 %v1048
    %v1789 = vunpack.c.h.b16 %v1048
    %v1790 = vunpack.c.l.b16 %v1049
    %v1791 = vunpack.c.h.b16 %v1049
    %v1792 = vunpack.c.l.b16 %v1050
    %v1793 = vunpack.c.h.b16 %v1050
    %v1794 = vunpack.c.l.b16 %v1051
    %v1795 = vunpack.c.h.b16 %v1051
    %v1796 = vunpack.c.l.b16 %v1052
    %v1797 = vunpack.c.h.b16 %v1052
    %v1798 = vunpack.c.l.b16 %v1053
    %v1799 = vunpack.c.h.b16 %v1053
    %v1800 = vunpack.c.l.b16 %v1054
    %v1801 = vunpack.c.h.b16 %v1054
    %v1802 = vunpack.c.l.b16 %v1055
    %v1803 = vunpack.c.h.b16 %v1055
    %v1804 = vunpack.c.l.b16 %v1056
    %v1805 = vunpack.c.h.b16 %v1056
    %v1806 = vunpack.c.l.b16 %v1057
    %v1807 = vunpack.c.h.b16 %v1057
    %v1808 = vunpack.c.l.b16 %v1058
    %v1809 = vunpack.c.h.b16 %v1058
    %v1810 = vunpack.c.l.b16 %v1059
    %v1811 = vunpack.c.h.b16 %v1059
    %v1812 = vunpack.c.l.b16 %v1060
    %v1813 = vunpack.c.h.b16 %v1060
    %v1814 = vunpack.c.l.b16 %v1061
    %v1815 = vunpack.c.h.b16 %v1061
    %v1816 = vunpack.c.l.b16 %v1062
    %v1817 = vunpack.c.h.b16 %v1062
    %v1818 = vunpack.c.l.b16 %v1063
    %v1819 = vunpack.c.h.b16 %v1063
    %v1820 = vunpack.c.l.b16 %v1064
    %v1821 = vunpack.c.h.b16 %v1064
    %v1822 = vunpack.c.l.b16 %v1065
    %v1823 = vunpack.c.h.b16 %v1065
    %v1824 = vunpack.c.l.b16 %v1066
    %v1825 = vunpack.c.h.b16 %v1066
    %v1826 = vunpack.c.l.b16 %v1067
    %v1827 = vunpack.c.h.b16 %v1067
    %v1828 = vunpack.c.l.b16 %v1068
    %v1829 = vunpack.c.h.b16 %v1068
    %v1830 = vunpack.c.l.b16 %v1069
    %v1831 = vunpack.c.h.b16 %v1069
    %v1832 = vunpack.c.l.b16 %v1070
    %v1833 = vunpack.c.h.b16 %v1070
    %v1834 = vunpack.c.l.b16 %v1071
    %v1835 = vunpack.c.h.b16 %v1071
    %v1836 = vunpack.c.l.b16 %v1072
    %v1837 = vunpack.c.h.b16 %v1072
    %v1838 = vunpack.c.l.b16 %v1073
    %v1839 = vunpack.c.h.b16 %v1073
    %v1840 = vunpack.c.l.b16 %v1074
    %v1841 = vunpack.c.h.b16 %v1074
    %v1842 = vunpack.c.l.b16 %v1075
    %v1843 = vunpack.c.h.b16 %v1075
    %v1844 = vunpack.c.l.b16 %v1076
    %v1845 = vunpack.c.h.b16 %v1076
    %v1846 = vunpack.c.l.b16 %v1077
    %v1847 = vunpack.c.h.b16 %v1077
    %v1848 = vunpack.c.l.b16 %v1078
    %v1849 = vunpack.c.h.b16 %v1078
    %v1850 = vunpack.c.l.b16 %v1079
    %v1851 = vunpack.c.h.b16 %v1079
    %v1852 = vunpack.c.l.b16 %v1080
    %v1853 = vunpack.c.h.b16 %v1080
    %v1854 = vunpack.c.l.b16 %v1081
    %v1855 = vunpack.c.h.b16 %v1081
    %v1856 = vunpack.c.l.b16 %v1082
    %v1857 = vunpack.c.h.b16 %v1082
    %v1858 = vunpack.c.l.b16 %v1083
    %v1859 = vunpack.c.h.b16 %v1083
    %v1860 = vunpack.c.l.b16 %v1084
    %v1861 = vunpack.c.h.b16 %v1084
    %v1862 = vunpack.c.l.b16 %v1085
    %v1863 = vunpack.c.h.b16 %v1085
    %v1864 = vunpack.c.l.b16 %v1086
    %v1865 = vunpack.c.h.b16 %v1086
    %v1866 = vunpack.c.l.b16 %v1087
    %v1867 = vunpack.c.h.b16 %v1087
    %v1868 = vunpack.c.l.b16 %v1088
    %v1869 = vunpack.c.h.b16 %v1088
    %v1870 = vunpack.c.l.b16 %v1089
    %v1871 = vunpack.c.h.b16 %v1089
    %v1872 = vunpack.c.l.b16 %v1090
    %v1873 = vunpack.c.h.b16 %v1090
    %v1874 = vunpack.c.l.b16 %v1091
    %v1875 = vunpack.c.h.b16 %v1091
    %v1876 = vunpack.c.l.b16 %v1092
    %v1877 = vunpack.c.h.b16 %v1092
    %v1878 = vunpack.c.l.b16 %v1093
    %v1879 = vunpack.c.h.b16 %v1093
    %v1880 = vpack.c.b16 %v1376, %v1368
    %v1881 = vpack.c.b16 %v1377, %v1369
    %v1882 = vpack.c.b16 %v1378, %v1370
    %v1883 = vpack.c.b16 %v1379, %v1371
    %v1884 = vpack.c.b16 %v1380, %v1372
    %v1885 = vpack.c.b16 %v1381, %v1373
    %v1886 = vpack.c.b16 %v1382, %v1374
    %v1887 = vpack.c.b16 %v1383, %v1375
    %v1888 = vpack.c.b16 %v1392, %v1384
    %v1889 = vpack.c.b16 %v1393, %v1385
    %v1890 = vpack.c.b16 %v1394, %v1386
    %v1891 = vpack.c.b16 %v1395, %v1387
    %v1892 = vpack.c.b16 %v1396, %v1388
    %v1893 = vpack.c.b16 %v1397, %v1389
    %v1894 = vpack.c.b16 %v1398, %v1390
    %v1895 = vpack.c.b16 %v1399, %v1391
    %v1896 = vpack.c.b16 %v1408, %v1400
    %v1897 = vpack.c.b16 %v1409, %v1401
    %v1898 = vpack.c.b16 %v1410, %v1402
    %v1899 = vpack.c.b16 %v1411, %v1403
    %v1900 = vpack.c.b16 %v1412, %v1404
    %v1901 = vpack.c.b16 %v1413, %v1405
    %v1902 = vpack.c.b16 %v1414, %v1406
    %v1903 = vpack.c.b16 %v1415, %v1407
    %v1904 = vpack.c.b16 %v1424, %v1416
    %v1905 = vpack.c.b16 %v1425, %v1417
    %v1906 = vpack.c.b16 %v1426, %v1418
    %v1907 = vpack.c.b16 %v1427, %v1419
    %v1908 = vpack.c.b16 %v1428, %v1420
    %v1909 = vpack.c.b16 %v1429, %v1421
    %v1910 = vpack.c.b16 %v1430, %v1422
    %v1911 = vpack.c.b16 %v1431, %v1423
    %v1912 = vpack.c.b16 %v1440, %v1432
    %v1913 = vpack.c.b16 %v1441, %v1433
    %v1914 = vpack.c.b16 %v1442, %v1434
    %v1915 = vpack.c.b16 %v1443, %v1435
    %v1916 = vpack.c.b16 %v1444, %v1436
    %v1917 = vpack.c.b16 %v1445, %v1437
    %v1918 = vpack.c.b16 %v1446, %v1438
    %v1919 = vpack.c.b16 %v1447, %v1439
    %v1920 = vpack.c.b16 %v1456, %v1448
    %v1921 = vpack.c.b16 %v1457, %v1449
    %v1922 = vpack.c.b16 %v1458, %v1450
    %v1923 = vpack.c.b16 %v1459, %v1451
    %v1924 = vpack.c.b16 %v1460, %v1452
    %v1925 = vpack.c.b16 %v1461, %v1453
    %v1926 = vpack.c.b16 %v1462, %v1454
    %v1927 = vpack.c.b16 %v1463, %v1455
    %v1928 = vpack.c.b16 %v1472, %v1464
    %v1929 = vpack.c.b16 %v1473, %v1465
    %v1930 = vpack.c.b16 %v1474, %v1466
    %v1931 = vpack.c.b16 %v1475, %v1467
    %v1932 = vpack.c.b16 %v1476, %v1468
    %v1933 = vpack.c.b16 %v1477, %v1469
    %v1934 = vpack.c.b16 %v1478, %v1470
    %v1935 = vpack.c.b16 %v1479, %v1471
    %v1936 = vpack.c.b16 %v1488, %v1480
    %v1937 = vpack.c.b16 %v1489, %v1481
    %v1938 = vpack.c.b16 %v1490, %v1482
    %v1939 = vpack.c.b16 %v1491, %v1483
    %v1940 = vpack.c.b16 %v1492, %v1484
    %v1941 = vpack.c.b16 %v1493, %v1485
    %v1942 = vpack.c.b16 %v1494, %v1486
    %v1943 = vpack.c.b16 %v1495, %v1487
    %v1944 = vpack.c.b16 %v1504, %v1496
    %v1945 = vpack.c.b16 %v1505, %v1497
    %v1946 = vpack.c.b16 %v1506, %v1498
    %v1947 = vpack.c.b16 %v1507, %v1499
    %v1948 = vpack.c.b16 %v1508, %v1500
    %v1949 = vpack.c.b16 %v1509, %v1501
    %v1950 = vpack.c.b16 %v1510, %v1502
    %v1951 = vpack.c.b16 %v1511, %v1503
    %v1952 = vpack.c.b16 %v1520, %v1512
    %v1953 = vpack.c.b16 %v1521, %v1513
    %v1954 = vpack.c.b16 %v1522, %v1514
    %v1955 = vpack.c.b16 %v1523, %v1515
    %v1956 = vpack.c.b16 %v1524, %v1516
    %v1957 = vpack.c.b16 %v1525, %v1517
    %v1958 = vpack.c.b16 %v1526, %v1518
    %v1959 = vpack.c.b16 %v1527, %v1519
    %v1960 = vpack.c.b16 %v1536, %v1528
    %v1961 = vpack.c.b16 %v1537, %v1529
    %v1962 = vpack.c.b16 %v1538, %v1530
    %v1963 = vpack.c.b16 %v1539, %v1531
    %v1964 = vpack.c.b16 %v1540, %v1532
    %v1965 = vpack.c.b16 %v1541, %v1533
    %v1966 = vpack.c.b16 %v1542, %v1534
    %v1967 = vpack.c.b16 %v1543, %v1535
    %v1968 = vpack.c.b16 %v1552, %v1544
    %v1969 = vpack.c.b16 %v1553, %v1545
    %v1970 = vpack.c.b16 %v1554, %v1546
    %v1971 = vpack.c.b16 %v1555, %v1547
    %v1972 = vpack.c.b16 %v1556, %v1548
    %v1973 = vpack.c.b16 %v1557, %v1549
    %v1974 = vpack.c.b16 %v1558, %v1550
    %v1975 = vpack.c.b16 %v1559, %v1551
    %v1976 = vpack.c.b16 %v1568, %v1560
    %v1977 = vpack.c.b16 %v1569, %v1561
    %v1978 = vpack.c.b16 %v1570, %v1562
    %v1979 = vpack.c.b16 %v1571, %v1563
    %v1980 = vpack.c.b16 %v1572, %v1564
    %v1981 = vpack.c.b16 %v1573, %v1565
    %v1982 = vpack.c.b16 %v1574, %v1566
    %v1983 = vpack.c.b16 %v1575, %v1567
    %v1984 = vpack.c.b16 %v1584, %v1576
    %v1985 = vpack.c.b16 %v1585, %v1577
    %v1986 = vpack.c.b16 %v1586, %v1578
    %v1987 = vpack.c.b16 %v1587, %v1579
    %v1988 = vpack.c.b16 %v1588, %v1580
    %v1989 = vpack.c.b16 %v1589, %v1581
    %v1990 = vpack.c.b16 %v1590, %v1582
    %v1991 = vpack.c.b16 %v1591, %v1583
    %v1992 = vpack.c.b16 %v1600, %v1592
    %v1993 = vpack.c.b16 %v1601, %v1593
    %v1994 = vpack.c.b16 %v1602, %v1594
    %v1995 = vpack.c.b16 %v1603, %v1595
    %v1996 = vpack.c.b16 %v1604, %v1596
    %v1997 = vpack.c.b16 %v1605, %v1597
    %v1998 = vpack.c.b16 %v1606, %v1598
    %v1999 = vpack.c.b16 %v1607, %v1599
    %v2000 = vpack.c.b16 %v1616, %v1608
    %v2001 = vpack.c.b16 %v1617, %v1609
    %v2002 = vpack.c.b16 %v1618, %v1610
    %v2003 = vpack.c.b16 %v1619, %v1611
    %v2004 = vpack.c.b16 %v1620, %v1612
    %v2005 = vpack.c.b16 %v1621, %v1613
    %v2006 = vpack.c.b16 %v1622, %v1614
    %v2007 = vpack.c.b16 %v1623, %v1615
    %v2008 = vpack.c.b16 %v1632, %v1624
    %v2009 = vpack.c.b16 %v1633, %v1625
    %v2010 = vpack.c.b16 %v1634, %v1626
    %v2011 = vpack.c.b16 %v1635, %v1627
    %v2012 = vpack.c.b16 %v1636, %v1628
    %v2013 = vpack.c.b16 %v1637, %v1629
    %v2014 = vpack.c.b16 %v1638, %v1630
    %v2015 = vpack.c.b16 %v1639, %v1631
    %v2016 = vpack.c.b16 %v1648, %v1640
    %v2017 = vpack.c.b16 %v1649, %v1641
    %v2018 = vpack.c.b16 %v1650, %v1642
    %v2019 = vpack.c.b16 %v1651, %v1643
    %v2020 = vpack.c.b16 %v1652, %v1644
    %v2021 = vpack.c.b16 %v1653, %v1645
    %v2022 = vpack.c.b16 %v1654, %v1646
    %v2023 = vpack.c.b16 %v1655, %v1647
    %v2024 = vpack.c.b16 %v1664, %v1656
    %v2025 = vpack.c.b16 %v1665, %v1657
    %v2026 = vpack.c.b16 %v1666, %v1658
    %v2027 = vpack.c.b16 %v1667, %v1659
    %v2028 = vpack.c.b16 %v1668, %v1660
    %v2029 = vpack.c.b16 %v1669, %v1661
    %v2030 = vpack.c.b16 %v1670, %v1662
    %v2031 = vpack.c.b16 %v1671, %v1663
    %v2032 = vpack.c.b16 %v1680, %v1672
    %v2033 = vpack.c.b16 %v1681, %v1673
    %v2034 = vpack.c.b16 %v1682, %v1674
    %v2035 = vpack.c.b16 %v1683, %v1675
    %v2036 = vpack.c.b16 %v1684, %v1676
    %v2037 = vpack.c.b16 %v1685, %v1677
    %v2038 = vpack.c.b16 %v1686, %v1678
    %v2039 = vpack.c.b16 %v1687, %v1679
    %v2040 = vpack.c.b16 %v1696, %v1688
    %v2041 = vpack.c.b16 %v1697, %v1689
    %v2042 = vpack.c.b16 %v1698, %v1690
    %v2043 = vpack.c.b16 %v1699, %v1691
    %v2044 = vpack.c.b16 %v1700, %v1692
    %v2045 = vpack.c.b16 %v1701, %v1693
    %v2046 = vpack.c.b16 %v1702, %v1694
    %v2047 = vpack.c.b16 %v1703, %v1695
    %v2048 = vpack.c.b16 %v1712, %v1704
    %v2049 = vpack.c.b16 %v1713, %v1705
    %v2050 = vpack.c.b16 %v1714, %v1706
    %v2051 = vpack.c.b16 %v1715, %v1707
    %v2052 = vpack.c.b16 %v1716, %v1708
    %v2053 = vpack.c.b16 %v1717, %v1709
    %v2054 = vpack.c.b16 %v1718, %v1710
    %v2055 = vpack.c.b16 %v1719, %v1711
    %v2056 = vpack.c.b16 %v1728, %v1720
    %v2057 = vpack.c.b16 %v1729, %v1721
    %v2058 = vpack.c.b16 %v1730, %v1722
    %v2059 = vpack.c.b16 %v1731, %v1723
    %v2060 = vpack.c.b16 %v1732, %v1724
    %v2061 = vpack.c.b16 %v1733, %v1725
    %v2062 = vpack.c.b16 %v1734, %v1726
    %v2063 = vpack.c.b16 %v1735, %v1727
    %v2064 = vpack.c.b16 %v1744, %v1736
    %v2065 = vpack.c.b16 %v1745, %v1737
    %v2066 = vpack.c.b16 %v1746, %v1738
    %v2067 = vpack.c.b16 %v1747, %v1739
    %v2068 = vpack.c.b16 %v1748, %v1740
    %v2069 = vpack.c.b16 %v1749, %v1741
    %v2070 = vpack.c.b16 %v1750, %v1742
    %v2071 = vpack.c.b16 %v1751, %v1743
    %v2072 = vpack.c.b16 %v1760, %v1752
    %v2073 = vpack.c.b16 %v1761, %v1753
    %v2074 = vpack.c.b16 %v1762, %v1754
    %v2075 = vpack.c.b16 %v1763, %v1755
    %v2076 = vpack.c.b16 %v1764, %v1756
    %v2077 = vpack.c.b16 %v1765, %v1757
    %v2078 = vpack.c.b16 %v1766, %v1758
    %v2079 = vpack.c.b16 %v1767, %v1759
    %v2080 = vpack.c.b16 %v1776, %v1768
    %v2081 = vpack.c.b16 %v1777, %v1769
    %v2082 = vpack.c.b16 %v1778, %v1770
    %v2083 = vpack.c.b16 %v1779, %v1771
    %v2084 = vpack.c.b16 %v1780, %v1772
    %v2085 = vpack.c.b16 %v1781, %v1773
    %v2086 = vpack.c.b16 %v1782, %v1774
    %v2087 = vpack.c.b16 %v1783, %v1775
    %v2088 = vpack.c.b16 %v1792, %v1784
    %v2089 = vpack.c.b16 %v1793, %v1785
    %v2090 = vpack.c.b16 %v1794, %v1786
    %v2091 = vpack.c.b16 %v1795, %v1787
    %v2092 = vpack.c.b16 %v1796, %v1788
    %v2093 = vpack.c.b16 %v1797, %v1789
    %v2094 = vpack.c.b16 %v1798, %v1790
    %v2095 = vpack.c.b16 %v1799, %v1791
    %v2096 = vpack.c.b16 %v1808, %v1800
    %v2097 = vpack.c.b16 %v1809, %v1801
    %v2098 = vpack.c.b16 %v1810, %v1802
    %v2099 = vpack.c.b16 %v1811, %v1803
    %v2100 = vpack.c.b16 %v1812, %v1804
    %v2101 = vpack.c.b16 %v1813, %v1805
    %v2102 = vpack.c.b16 %v1814, %v1806
    %v2103 = vpack.c.b16 %v1815, %v1807
    %v2104 = vpack.c.b16 %v1824, %v1816
    %v2105 = vpack.c.b16 %v1825, %v1817
    %v2106 = vpack.c.b16 %v1826, %v1818
    %v2107 = vpack.c.b16 %v1827, %v1819
    %v2108 = vpack.c.b16 %v1828, %v1820
    %v2109 = vpack.c.b16 %v1829, %v1821
    %v2110 = vpack.c.b16 %v1830, %v1822
    %v2111 = vpack.c.b16 %v1831, %v1823
    %v2112 = vpack.c.b16 %v1840, %v1832
    %v2113 = vpack.c.b16 %v1841, %v1833
    %v2114 = vpack.c.b16 %v1842, %v1834
    %v2115 = vpack.c.b16 %v1843, %v1835
    %v2116 = vpack.c.b16 %v1844, %v1836
    %v2117 = vpack.c.b16 %v1845, %v1837
    %v2118 = vpack.c.b16 %v1846, %v1838
    %v2119 = vpack.c.b16 %v1847, %v1839
    %v2120 = vpack.c.b16 %v1856, %v1848
    %v2121 = vpack.c.b16 %v1857, %v1849
    %v2122 = vpack.c.b16 %v1858, %v1850
    %v2123 = vpack.c.b16 %v1859, %v1851
    %v2124 = vpack.c.b16 %v1860, %v1852
    %v2125 = vpack.c.b16 %v1861, %v1853
    %v2126 = vpack.c.b16 %v1862, %v1854
    %v2127 = vpack.c.b16 %v1863, %v1855
    %v2128 = vpack.c.b16 %v1872, %v1864
    %v2129 = vpack.c.b16 %v1873, %v1865
    %v2130 = vpack.c.b16 %v1874, %v1866
    %v2131 = vpack.c.b16 %v1875, %v1867
    %v2132 = vpack.c.b16 %v1876, %v1868
    %v2133 = vpack.c.b16 %v1877, %v1869
    %v2134 = vpack.c.b16 %v1878, %v1870
    %v2135 = vpack.c.b16 %v1879, %v1871
    %2392 = vmatpush.bf16.msra.mxu0 %v1936
    %2393 = vmatpush.bf16.msra.mxu0 %v1928
    %2394 = vmatpush.bf16.msra.mxu0 %v1920
    %2395 = vmatpush.bf16.msra.mxu0 %v1912
    %2396 = vmatpush.bf16.msra.mxu0 %v1904
    %2397 = vmatpush.bf16.msra.mxu0 %v1896
    %2398 = vmatpush.bf16.msra.mxu0 %v1888
    %2399 = vmatpush.bf16.msra.mxu0 %v1880
    %2400 = vmatmul.bf16.gmra.mxu0 %v834
    %v2401 = vpop.f32.mrf.mxu0
    %v2402 = vadd.f32 %v1096, %v2401
    %v2403 = vpop.f32.mrf.mxu0
    %v2404 = vadd.f32 %v1096, %v2403
    %2405 = vdwg.mxu0
    %2406 = vmatpush.bf16.msra.mxu0 %v2000
    %2407 = vmatpush.bf16.msra.mxu0 %v1992
    %2408 = vmatpush.bf16.msra.mxu0 %v1984
    %2409 = vmatpush.bf16.msra.mxu0 %v1976
    %2410 = vmatpush.bf16.msra.mxu0 %v1968
    %2411 = vmatpush.bf16.msra.mxu0 %v1960
    %2412 = vmatpush.bf16.msra.mxu0 %v1952
    %2413 = vmatpush.bf16.msra.mxu0 %v1944
    %2414 = vmatmul.bf16.gmra.mxu0 %v835
    %v2415 = vpop.f32.mrf.mxu0
    %v2416 = vadd.f32 %v2402, %v2415
    %v2417 = vpop.f32.mrf.mxu0
    %v2418 = vadd.f32 %v2404, %v2417
    %2419 = vdwg.mxu0
    %2420 = vmatpush.bf16.msra.mxu0 %v2064
    %2421 = vmatpush.bf16.msra.mxu0 %v2056
    %2422 = vmatpush.bf16.msra.mxu0 %v2048
    %2423 = vmatpush.bf16.msra.mxu0 %v2040
    %2424 = vmatpush.bf16.msra.mxu0 %v2032
    %2425 = vmatpush.bf16.msra.mxu0 %v2024
    %2426 = vmatpush.bf16.msra.mxu0 %v2016
    %2427 = vmatpush.bf16.msra.mxu0 %v2008
    %2428 = vmatmul.bf16.gmra.mxu0 %v836
    %v2429 = vpop.f32.mrf.mxu0
    %v2430 = vadd.f32 %v2416, %v2429
    %v2431 = vpop.f32.mrf.mxu0
    %v2432 = vadd.f32 %v2418, %v2431
    %2433 = vdwg.mxu0
    %2434 = vmatpush.bf16.msra.mxu0 %v2128
    %2435 = vmatpush.bf16.msra.mxu0 %v2120
    %2436 = vmatpush.bf16.msra.mxu0 %v2112
    %2437 = vmatpush.bf16.msra.mxu0 %v2104
    %2438 = vmatpush.bf16.msra.mxu0 %v2096
    %2439 = vmatpush.bf16.msra.mxu0 %v2088
    %2440 = vmatpush.bf16.msra.mxu0 %v2080
    %2441 = vmatpush.bf16.msra.mxu0 %v2072
    %2442 = vmatmul.bf16.gmra.mxu0 %v837
    %v2443 = vpop.f32.mrf.mxu0
    %v2444 = vadd.f32 %v2430, %v2443
    %v2445 = vpop.f32.mrf.mxu0
    %v2446 = vadd.f32 %v2432, %v2445
    %2447 = vdwg.mxu0
    %2448 = vmatpush.bf16.msra.mxu0 %v1937
    %2449 = vmatpush.bf16.msra.mxu0 %v1929
    %2450 = vmatpush.bf16.msra.mxu0 %v1921
    %2451 = vmatpush.bf16.msra.mxu0 %v1913
    %2452 = vmatpush.bf16.msra.mxu0 %v1905
    %2453 = vmatpush.bf16.msra.mxu0 %v1897
    %2454 = vmatpush.bf16.msra.mxu0 %v1889
    %2455 = vmatpush.bf16.msra.mxu0 %v1881
    %2456 = vmatmul.bf16.gmra.mxu0 %v834
    %v2457 = vpop.f32.mrf.mxu0
    %v2458 = vadd.f32 %v1097, %v2457
    %v2459 = vpop.f32.mrf.mxu0
    %v2460 = vadd.f32 %v1097, %v2459
    %2461 = vdwg.mxu0
    %2462 = vmatpush.bf16.msra.mxu0 %v2001
    %2463 = vmatpush.bf16.msra.mxu0 %v1993
    %2464 = vmatpush.bf16.msra.mxu0 %v1985
    %2465 = vmatpush.bf16.msra.mxu0 %v1977
    %2466 = vmatpush.bf16.msra.mxu0 %v1969
    %2467 = vmatpush.bf16.msra.mxu0 %v1961
    %2468 = vmatpush.bf16.msra.mxu0 %v1953
    %2469 = vmatpush.bf16.msra.mxu0 %v1945
    %2470 = vmatmul.bf16.gmra.mxu0 %v835
    %v2471 = vpop.f32.mrf.mxu0
    %v2472 = vadd.f32 %v2458, %v2471
    %v2473 = vpop.f32.mrf.mxu0
    %v2474 = vadd.f32 %v2460, %v2473
    %2475 = vdwg.mxu0
    %2476 = vmatpush.bf16.msra.mxu0 %v2065
    %2477 = vmatpush.bf16.msra.mxu0 %v2057
    %2478 = vmatpush.bf16.msra.mxu0 %v2049
    %2479 = vmatpush.bf16.msra.mxu0 %v2041
    %2480 = vmatpush.bf16.msra.mxu0 %v2033
    %2481 = vmatpush.bf16.msra.mxu0 %v2025
    %2482 = vmatpush.bf16.msra.mxu0 %v2017
    %2483 = vmatpush.bf16.msra.mxu0 %v2009
    %2484 = vmatmul.bf16.gmra.mxu0 %v836
    %v2485 = vpop.f32.mrf.mxu0
    %v2486 = vadd.f32 %v2472, %v2485
    %v2487 = vpop.f32.mrf.mxu0
    %v2488 = vadd.f32 %v2474, %v2487
    %2489 = vdwg.mxu0
    %2490 = vmatpush.bf16.msra.mxu0 %v2129
    %2491 = vmatpush.bf16.msra.mxu0 %v2121
    %2492 = vmatpush.bf16.msra.mxu0 %v2113
    %2493 = vmatpush.bf16.msra.mxu0 %v2105
    %2494 = vmatpush.bf16.msra.mxu0 %v2097
    %2495 = vmatpush.bf16.msra.mxu0 %v2089
    %2496 = vmatpush.bf16.msra.mxu0 %v2081
    %2497 = vmatpush.bf16.msra.mxu0 %v2073
    %2498 = vmatmul.bf16.gmra.mxu0 %v837
    %v2499 = vpop.f32.mrf.mxu0
    %v2500 = vadd.f32 %v2486, %v2499
    %v2501 = vpop.f32.mrf.mxu0
    %v2502 = vadd.f32 %v2488, %v2501
    %2503 = vdwg.mxu0
    %2504 = vmatpush.bf16.msra.mxu0 %v1938
    %2505 = vmatpush.bf16.msra.mxu0 %v1930
    %2506 = vmatpush.bf16.msra.mxu0 %v1922
    %2507 = vmatpush.bf16.msra.mxu0 %v1914
    %2508 = vmatpush.bf16.msra.mxu0 %v1906
    %2509 = vmatpush.bf16.msra.mxu0 %v1898
    %2510 = vmatpush.bf16.msra.mxu0 %v1890
    %2511 = vmatpush.bf16.msra.mxu0 %v1882
    %2512 = vmatmul.bf16.gmra.mxu0 %v834
    %v2513 = vpop.f32.mrf.mxu0
    %v2514 = vadd.f32 %v1098, %v2513
    %v2515 = vpop.f32.mrf.mxu0
    %v2516 = vadd.f32 %v1098, %v2515
    %2517 = vdwg.mxu0
    %2518 = vmatpush.bf16.msra.mxu0 %v2002
    %2519 = vmatpush.bf16.msra.mxu0 %v1994
    %2520 = vmatpush.bf16.msra.mxu0 %v1986
    %2521 = vmatpush.bf16.msra.mxu0 %v1978
    %2522 = vmatpush.bf16.msra.mxu0 %v1970
    %2523 = vmatpush.bf16.msra.mxu0 %v1962
    %2524 = vmatpush.bf16.msra.mxu0 %v1954
    %2525 = vmatpush.bf16.msra.mxu0 %v1946
    %2526 = vmatmul.bf16.gmra.mxu0 %v835
    %v2527 = vpop.f32.mrf.mxu0
    %v2528 = vadd.f32 %v2514, %v2527
    %v2529 = vpop.f32.mrf.mxu0
    %v2530 = vadd.f32 %v2516, %v2529
    %2531 = vdwg.mxu0
    %2532 = vmatpush.bf16.msra.mxu0 %v2066
    %2533 = vmatpush.bf16.msra.mxu0 %v2058
    %2534 = vmatpush.bf16.msra.mxu0 %v2050
    %2535 = vmatpush.bf16.msra.mxu0 %v2042
    %2536 = vmatpush.bf16.msra.mxu0 %v2034
    %2537 = vmatpush.bf16.msra.mxu0 %v2026
    %2538 = vmatpush.bf16.msra.mxu0 %v2018
    %2539 = vmatpush.bf16.msra.mxu0 %v2010
    %2540 = vmatmul.bf16.gmra.mxu0 %v836
    %v2541 = vpop.f32.mrf.mxu0
    %v2542 = vadd.f32 %v2528, %v2541
    %v2543 = vpop.f32.mrf.mxu0
    %v2544 = vadd.f32 %v2530, %v2543
    %2545 = vdwg.mxu0
    %2546 = vmatpush.bf16.msra.mxu0 %v2130
    %2547 = vmatpush.bf16.msra.mxu0 %v2122
    %2548 = vmatpush.bf16.msra.mxu0 %v2114
    %2549 = vmatpush.bf16.msra.mxu0 %v2106
    %2550 = vmatpush.bf16.msra.mxu0 %v2098
    %2551 = vmatpush.bf16.msra.mxu0 %v2090
    %2552 = vmatpush.bf16.msra.mxu0 %v2082
    %2553 = vmatpush.bf16.msra.mxu0 %v2074
    %2554 = vmatmul.bf16.gmra.mxu0 %v837
    %v2555 = vpop.f32.mrf.mxu0
    %v2556 = vadd.f32 %v2542, %v2555
    %v2557 = vpop.f32.mrf.mxu0
    %v2558 = vadd.f32 %v2544, %v2557
    %2559 = vdwg.mxu0
    %2560 = vmatpush.bf16.msra.mxu0 %v1939
    %2561 = vmatpush.bf16.msra.mxu0 %v1931
    %2562 = vmatpush.bf16.msra.mxu0 %v1923
    %2563 = vmatpush.bf16.msra.mxu0 %v1915
    %2564 = vmatpush.bf16.msra.mxu0 %v1907
    %2565 = vmatpush.bf16.msra.mxu0 %v1899
    %2566 = vmatpush.bf16.msra.mxu0 %v1891
    %2567 = vmatpush.bf16.msra.mxu0 %v1883
    %2568 = vmatmul.bf16.gmra.mxu0 %v834
    %v2569 = vpop.f32.mrf.mxu0
    %v2570 = vadd.f32 %v1099, %v2569
    %v2571 = vpop.f32.mrf.mxu0
    %v2572 = vadd.f32 %v1099, %v2571
    %2573 = vdwg.mxu0
    %2574 = vmatpush.bf16.msra.mxu0 %v2003
    %2575 = vmatpush.bf16.msra.mxu0 %v1995
    %2576 = vmatpush.bf16.msra.mxu0 %v1987
    %2577 = vmatpush.bf16.msra.mxu0 %v1979
    %2578 = vmatpush.bf16.msra.mxu0 %v1971
    %2579 = vmatpush.bf16.msra.mxu0 %v1963
    %2580 = vmatpush.bf16.msra.mxu0 %v1955
    %2581 = vmatpush.bf16.msra.mxu0 %v1947
    %2582 = vmatmul.bf16.gmra.mxu0 %v835
    %v2583 = vpop.f32.mrf.mxu0
    %v2584 = vadd.f32 %v2570, %v2583
    %v2585 = vpop.f32.mrf.mxu0
    %v2586 = vadd.f32 %v2572, %v2585
    %2587 = vdwg.mxu0
    %2588 = vmatpush.bf16.msra.mxu0 %v2067
    %2589 = vmatpush.bf16.msra.mxu0 %v2059
    %2590 = vmatpush.bf16.msra.mxu0 %v2051
    %2591 = vmatpush.bf16.msra.mxu0 %v2043
    %2592 = vmatpush.bf16.msra.mxu0 %v2035
    %2593 = vmatpush.bf16.msra.mxu0 %v2027
    %2594 = vmatpush.bf16.msra.mxu0 %v2019
    %2595 = vmatpush.bf16.msra.mxu0 %v2011
    %2596 = vmatmul.bf16.gmra.mxu0 %v836
    %v2597 = vpop.f32.mrf.mxu0
    %v2598 = vadd.f32 %v2584, %v2597
    %v2599 = vpop.f32.mrf.mxu0
    %v2600 = vadd.f32 %v2586, %v2599
    %2601 = vdwg.mxu0
    %2602 = vmatpush.bf16.msra.mxu0 %v2131
    %2603 = vmatpush.bf16.msra.mxu0 %v2123
    %2604 = vmatpush.bf16.msra.mxu0 %v2115
    %2605 = vmatpush.bf16.msra.mxu0 %v2107
    %2606 = vmatpush.bf16.msra.mxu0 %v2099
    %2607 = vmatpush.bf16.msra.mxu0 %v2091
    %2608 = vmatpush.bf16.msra.mxu0 %v2083
    %2609 = vmatpush.bf16.msra.mxu0 %v2075
    %2610 = vmatmul.bf16.gmra.mxu0 %v837
    %v2611 = vpop.f32.mrf.mxu0
    %v2612 = vadd.f32 %v2598, %v2611
    %v2613 = vpop.f32.mrf.mxu0
    %v2614 = vadd.f32 %v2600, %v2613
    %2615 = vdwg.mxu0
    %2616 = vmatpush.bf16.msra.mxu0 %v1940
    %2617 = vmatpush.bf16.msra.mxu0 %v1932
    %2618 = vmatpush.bf16.msra.mxu0 %v1924
    %2619 = vmatpush.bf16.msra.mxu0 %v1916
    %2620 = vmatpush.bf16.msra.mxu0 %v1908
    %2621 = vmatpush.bf16.msra.mxu0 %v1900
    %2622 = vmatpush.bf16.msra.mxu0 %v1892
    %2623 = vmatpush.bf16.msra.mxu0 %v1884
    %2624 = vmatmul.bf16.gmra.mxu0 %v834
    %v2625 = vpop.f32.mrf.mxu0
    %v2626 = vadd.f32 %v1100, %v2625
    %v2627 = vpop.f32.mrf.mxu0
    %v2628 = vadd.f32 %v1100, %v2627
    %2629 = vdwg.mxu0
    %2630 = vmatpush.bf16.msra.mxu0 %v2004
    %2631 = vmatpush.bf16.msra.mxu0 %v1996
    %2632 = vmatpush.bf16.msra.mxu0 %v1988
    %2633 = vmatpush.bf16.msra.mxu0 %v1980
    %2634 = vmatpush.bf16.msra.mxu0 %v1972
    %2635 = vmatpush.bf16.msra.mxu0 %v1964
    %2636 = vmatpush.bf16.msra.mxu0 %v1956
    %2637 = vmatpush.bf16.msra.mxu0 %v1948
    %2638 = vmatmul.bf16.gmra.mxu0 %v835
    %v2639 = vpop.f32.mrf.mxu0
    %v2640 = vadd.f32 %v2626, %v2639
    %v2641 = vpop.f32.mrf.mxu0
    %v2642 = vadd.f32 %v2628, %v2641
    %2643 = vdwg.mxu0
    %2644 = vmatpush.bf16.msra.mxu0 %v2068
    %2645 = vmatpush.bf16.msra.mxu0 %v2060
    %2646 = vmatpush.bf16.msra.mxu0 %v2052
    %2647 = vmatpush.bf16.msra.mxu0 %v2044
    %2648 = vmatpush.bf16.msra.mxu0 %v2036
    %2649 = vmatpush.bf16.msra.mxu0 %v2028
    %2650 = vmatpush.bf16.msra.mxu0 %v2020
    %2651 = vmatpush.bf16.msra.mxu0 %v2012
    %2652 = vmatmul.bf16.gmra.mxu0 %v836
    %v2653 = vpop.f32.mrf.mxu0
    %v2654 = vadd.f32 %v2640, %v2653
    %v2655 = vpop.f32.mrf.mxu0
    %v2656 = vadd.f32 %v2642, %v2655
    %2657 = vdwg.mxu0
    %2658 = vmatpush.bf16.msra.mxu0 %v2132
    %2659 = vmatpush.bf16.msra.mxu0 %v2124
    %2660 = vmatpush.bf16.msra.mxu0 %v2116
    %2661 = vmatpush.bf16.msra.mxu0 %v2108
    %2662 = vmatpush.bf16.msra.mxu0 %v2100
    %2663 = vmatpush.bf16.msra.mxu0 %v2092
    %2664 = vmatpush.bf16.msra.mxu0 %v2084
    %2665 = vmatpush.bf16.msra.mxu0 %v2076
    %2666 = vmatmul.bf16.gmra.mxu0 %v837
    %v2667 = vpop.f32.mrf.mxu0
    %v2668 = vadd.f32 %v2654, %v2667
    %v2669 = vpop.f32.mrf.mxu0
    %v2670 = vadd.f32 %v2656, %v2669
    %2671 = vdwg.mxu0
    %2672 = vmatpush.bf16.msra.mxu0 %v1941
    %2673 = vmatpush.bf16.msra.mxu0 %v1933
    %2674 = vmatpush.bf16.msra.mxu0 %v1925
    %2675 = vmatpush.bf16.msra.mxu0 %v1917
    %2676 = vmatpush.bf16.msra.mxu0 %v1909
    %2677 = vmatpush.bf16.msra.mxu0 %v1901
    %2678 = vmatpush.bf16.msra.mxu0 %v1893
    %2679 = vmatpush.bf16.msra.mxu0 %v1885
    %2680 = vmatmul.bf16.gmra.mxu0 %v834
    %v2681 = vpop.f32.mrf.mxu0
    %v2682 = vadd.f32 %v1101, %v2681
    %v2683 = vpop.f32.mrf.mxu0
    %v2684 = vadd.f32 %v1101, %v2683
    %2685 = vdwg.mxu0
    %2686 = vmatpush.bf16.msra.mxu0 %v2005
    %2687 = vmatpush.bf16.msra.mxu0 %v1997
    %2688 = vmatpush.bf16.msra.mxu0 %v1989
    %2689 = vmatpush.bf16.msra.mxu0 %v1981
    %2690 = vmatpush.bf16.msra.mxu0 %v1973
    %2691 = vmatpush.bf16.msra.mxu0 %v1965
    %2692 = vmatpush.bf16.msra.mxu0 %v1957
    %2693 = vmatpush.bf16.msra.mxu0 %v1949
    %2694 = vmatmul.bf16.gmra.mxu0 %v835
    %v2695 = vpop.f32.mrf.mxu0
    %v2696 = vadd.f32 %v2682, %v2695
    %v2697 = vpop.f32.mrf.mxu0
    %v2698 = vadd.f32 %v2684, %v2697
    %2699 = vdwg.mxu0
    %2700 = vmatpush.bf16.msra.mxu0 %v2069
    %2701 = vmatpush.bf16.msra.mxu0 %v2061
    %2702 = vmatpush.bf16.msra.mxu0 %v2053
    %2703 = vmatpush.bf16.msra.mxu0 %v2045
    %2704 = vmatpush.bf16.msra.mxu0 %v2037
    %2705 = vmatpush.bf16.msra.mxu0 %v2029
    %2706 = vmatpush.bf16.msra.mxu0 %v2021
    %2707 = vmatpush.bf16.msra.mxu0 %v2013
    %2708 = vmatmul.bf16.gmra.mxu0 %v836
    %v2709 = vpop.f32.mrf.mxu0
    %v2710 = vadd.f32 %v2696, %v2709
    %v2711 = vpop.f32.mrf.mxu0
    %v2712 = vadd.f32 %v2698, %v2711
    %2713 = vdwg.mxu0
    %2714 = vmatpush.bf16.msra.mxu0 %v2133
    %2715 = vmatpush.bf16.msra.mxu0 %v2125
    %2716 = vmatpush.bf16.msra.mxu0 %v2117
    %2717 = vmatpush.bf16.msra.mxu0 %v2109
    %2718 = vmatpush.bf16.msra.mxu0 %v2101
    %2719 = vmatpush.bf16.msra.mxu0 %v2093
    %2720 = vmatpush.bf16.msra.mxu0 %v2085
    %2721 = vmatpush.bf16.msra.mxu0 %v2077
    %2722 = vmatmul.bf16.gmra.mxu0 %v837
    %v2723 = vpop.f32.mrf.mxu0
    %v2724 = vadd.f32 %v2710, %v2723
    %v2725 = vpop.f32.mrf.mxu0
    %v2726 = vadd.f32 %v2712, %v2725
    %2727 = vdwg.mxu0
    %2728 = vmatpush.bf16.msra.mxu0 %v1942
    %2729 = vmatpush.bf16.msra.mxu0 %v1934
    %2730 = vmatpush.bf16.msra.mxu0 %v1926
    %2731 = vmatpush.bf16.msra.mxu0 %v1918
    %2732 = vmatpush.bf16.msra.mxu0 %v1910
    %2733 = vmatpush.bf16.msra.mxu0 %v1902
    %2734 = vmatpush.bf16.msra.mxu0 %v1894
    %2735 = vmatpush.bf16.msra.mxu0 %v1886
    %2736 = vmatmul.bf16.gmra.mxu0 %v834
    %v2737 = vpop.f32.mrf.mxu0
    %v2738 = vadd.f32 %v1102, %v2737
    %v2739 = vpop.f32.mrf.mxu0
    %v2740 = vadd.f32 %v1102, %v2739
    %2741 = vdwg.mxu0
    %2742 = vmatpush.bf16.msra.mxu0 %v2006
    %2743 = vmatpush.bf16.msra.mxu0 %v1998
    %2744 = vmatpush.bf16.msra.mxu0 %v1990
    %2745 = vmatpush.bf16.msra.mxu0 %v1982
    %2746 = vmatpush.bf16.msra.mxu0 %v1974
    %2747 = vmatpush.bf16.msra.mxu0 %v1966
    %2748 = vmatpush.bf16.msra.mxu0 %v1958
    %2749 = vmatpush.bf16.msra.mxu0 %v1950
    %2750 = vmatmul.bf16.gmra.mxu0 %v835
    %v2751 = vpop.f32.mrf.mxu0
    %v2752 = vadd.f32 %v2738, %v2751
    %v2753 = vpop.f32.mrf.mxu0
    %v2754 = vadd.f32 %v2740, %v2753
    %2755 = vdwg.mxu0
    %2756 = vmatpush.bf16.msra.mxu0 %v2070
    %2757 = vmatpush.bf16.msra.mxu0 %v2062
    %2758 = vmatpush.bf16.msra.mxu0 %v2054
    %2759 = vmatpush.bf16.msra.mxu0 %v2046
    %2760 = vmatpush.bf16.msra.mxu0 %v2038
    %2761 = vmatpush.bf16.msra.mxu0 %v2030
    %2762 = vmatpush.bf16.msra.mxu0 %v2022
    %2763 = vmatpush.bf16.msra.mxu0 %v2014
    %2764 = vmatmul.bf16.gmra.mxu0 %v836
    %v2765 = vpop.f32.mrf.mxu0
    %v2766 = vadd.f32 %v2752, %v2765
    %v2767 = vpop.f32.mrf.mxu0
    %v2768 = vadd.f32 %v2754, %v2767
    %2769 = vdwg.mxu0
    %2770 = vmatpush.bf16.msra.mxu0 %v2134
    %2771 = vmatpush.bf16.msra.mxu0 %v2126
    %2772 = vmatpush.bf16.msra.mxu0 %v2118
    %2773 = vmatpush.bf16.msra.mxu0 %v2110
    %2774 = vmatpush.bf16.msra.mxu0 %v2102
    %2775 = vmatpush.bf16.msra.mxu0 %v2094
    %2776 = vmatpush.bf16.msra.mxu0 %v2086
    %2777 = vmatpush.bf16.msra.mxu0 %v2078
    %2778 = vmatmul.bf16.gmra.mxu0 %v837
    %v2779 = vpop.f32.mrf.mxu0
    %v2780 = vadd.f32 %v2766, %v2779
    %v2781 = vpop.f32.mrf.mxu0
    %v2782 = vadd.f32 %v2768, %v2781
    %2783 = vdwg.mxu0
    %2784 = vmatpush.bf16.msra.mxu0 %v1943
    %2785 = vmatpush.bf16.msra.mxu0 %v1935
    %2786 = vmatpush.bf16.msra.mxu0 %v1927
    %2787 = vmatpush.bf16.msra.mxu0 %v1919
    %2788 = vmatpush.bf16.msra.mxu0 %v1911
    %2789 = vmatpush.bf16.msra.mxu0 %v1903
    %2790 = vmatpush.bf16.msra.mxu0 %v1895
    %2791 = vmatpush.bf16.msra.mxu0 %v1887
    %2792 = vmatmul.bf16.gmra.mxu0 %v834
    %v2793 = vpop.f32.mrf.mxu0
    %v2794 = vadd.f32 %v1103, %v2793
    %v2795 = vpop.f32.mrf.mxu0
    %v2796 = vadd.f32 %v1103, %v2795
    %2797 = vdwg.mxu0
    %2798 = vmatpush.bf16.msra.mxu0 %v2007
    %2799 = vmatpush.bf16.msra.mxu0 %v1999
    %2800 = vmatpush.bf16.msra.mxu0 %v1991
    %2801 = vmatpush.bf16.msra.mxu0 %v1983
    %2802 = vmatpush.bf16.msra.mxu0 %v1975
    %2803 = vmatpush.bf16.msra.mxu0 %v1967
    %2804 = vmatpush.bf16.msra.mxu0 %v1959
    %2805 = vmatpush.bf16.msra.mxu0 %v1951
    %2806 = vmatmul.bf16.gmra.mxu0 %v835
    %v2807 = vpop.f32.mrf.mxu0
    %v2808 = vadd.f32 %v2794, %v2807
    %v2809 = vpop.f32.mrf.mxu0
    %v2810 = vadd.f32 %v2796, %v2809
    %2811 = vdwg.mxu0
    %2812 = vmatpush.bf16.msra.mxu0 %v2071
    %2813 = vmatpush.bf16.msra.mxu0 %v2063
    %2814 = vmatpush.bf16.msra.mxu0 %v2055
    %2815 = vmatpush.bf16.msra.mxu0 %v2047
    %2816 = vmatpush.bf16.msra.mxu0 %v2039
    %2817 = vmatpush.bf16.msra.mxu0 %v2031
    %2818 = vmatpush.bf16.msra.mxu0 %v2023
    %2819 = vmatpush.bf16.msra.mxu0 %v2015
    %2820 = vmatmul.bf16.gmra.mxu0 %v836
    %v2821 = vpop.f32.mrf.mxu0
    %v2822 = vadd.f32 %v2808, %v2821
    %v2823 = vpop.f32.mrf.mxu0
    %v2824 = vadd.f32 %v2810, %v2823
    %2825 = vdwg.mxu0
    %2826 = vmatpush.bf16.msra.mxu0 %v2135
    %2827 = vmatpush.bf16.msra.mxu0 %v2127
    %2828 = vmatpush.bf16.msra.mxu0 %v2119
    %2829 = vmatpush.bf16.msra.mxu0 %v2111
    %2830 = vmatpush.bf16.msra.mxu0 %v2103
    %2831 = vmatpush.bf16.msra.mxu0 %v2095
    %2832 = vmatpush.bf16.msra.mxu0 %v2087
    %2833 = vmatpush.bf16.msra.mxu0 %v2079
    %2834 = vmatmul.bf16.gmra.mxu0 %v837
    %v2835 = vpop.f32.mrf.mxu0
    %v2836 = vadd.f32 %v2822, %v2835
    %v2837 = vpop.f32.mrf.mxu0
    %v2838 = vadd.f32 %v2824, %v2837
    %2839 = vdwg.mxu0
    %vm2840 = vcmp.gt.f32.partialorder %v2444, 0.0
    %vm2841 = vcmp.gt.f32.partialorder %v2500, 0.0
    %vm2842 = vcmp.gt.f32.partialorder %v2556, 0.0
    %vm2843 = vcmp.gt.f32.partialorder %v2612, 0.0
    %vm2844 = vcmp.gt.f32.partialorder %v2668, 0.0
    %vm2845 = vcmp.gt.f32.partialorder %v2724, 0.0
    %vm2846 = vcmp.gt.f32.partialorder %v2780, 0.0
    %vm2847 = vcmp.gt.f32.partialorder %v2836, 0.0
    %vm2848 = vcmp.gt.f32.partialorder %v2446, 0.0
    %vm2849 = vcmp.gt.f32.partialorder %v2502, 0.0
    %vm2850 = vcmp.gt.f32.partialorder %v2558, 0.0
    %vm2851 = vcmp.gt.f32.partialorder %v2614, 0.0
    %vm2852 = vcmp.gt.f32.partialorder %v2670, 0.0
    %vm2853 = vcmp.gt.f32.partialorder %v2726, 0.0
    %vm2854 = vcmp.gt.f32.partialorder %v2782, 0.0
    %vm2855 = vcmp.gt.f32.partialorder %v2838, 0.0
    %v2856 = vmul.f32 %v2444, 0.2
    %v2857 = vmul.f32 %v2500, 0.2
    %v2858 = vmul.f32 %v2556, 0.2
    %v2859 = vmul.f32 %v2612, 0.2
    %v2860 = vmul.f32 %v2668, 0.2
    %v2861 = vmul.f32 %v2724, 0.2
    %v2862 = vmul.f32 %v2780, 0.2
    %v2863 = vmul.f32 %v2836, 0.2
    %v2864 = vmul.f32 %v2446, 0.2
    %v2865 = vmul.f32 %v2502, 0.2
    %v2866 = vmul.f32 %v2558, 0.2
    %v2867 = vmul.f32 %v2614, 0.2
    %v2868 = vmul.f32 %v2670, 0.2
    %v2869 = vmul.f32 %v2726, 0.2
    %v2870 = vmul.f32 %v2782, 0.2
    %v2871 = vmul.f32 %v2838, 0.2
    %v2872 = vsel %vm2840, %v2444, %v2856
    %v2873 = vsel %vm2841, %v2500, %v2857
    %v2874 = vsel %vm2842, %v2556, %v2858
    %v2875 = vsel %vm2843, %v2612, %v2859
    %v2876 = vsel %vm2844, %v2668, %v2860
    %v2877 = vsel %vm2845, %v2724, %v2861
    %v2878 = vsel %vm2846, %v2780, %v2862
    %v2879 = vsel %vm2847, %v2836, %v2863
    %v2880 = vsel %vm2848, %v2446, %v2864
    %v2881 = vsel %vm2849, %v2502, %v2865
    %v2882 = vsel %vm2850, %v2558, %v2866
    %v2883 = vsel %vm2851, %v2614, %v2867
    %v2884 = vsel %vm2852, %v2670, %v2868
    %v2885 = vsel %vm2853, %v2726, %v2869
    %v2886 = vsel %vm2854, %v2782, %v2870
    %v2887 = vsel %vm2855, %v2838, %v2871
    %v2888 = vpack.c.bf16 %v2880, %v2872
    %v2889 = vpack.c.bf16 %v2881, %v2873
    %v2890 = vpack.c.bf16 %v2882, %v2874
    %v2891 = vpack.c.bf16 %v2883, %v2875
    %v2892 = vpack.c.bf16 %v2884, %v2876
    %v2893 = vpack.c.bf16 %v2885, %v2877
    %v2894 = vpack.c.bf16 %v2886, %v2878
    %v2895 = vpack.c.bf16 %v2887, %v2879
    %v2896 = vld [vmem:[#allocation14] sm:$0xf]
    %v2897 = vld [vmem:[#allocation14 + $0x4] sm:$0xf]
    %v2898 = vld [vmem:[#allocation14 + $0x8] sm:$0xf]
    %v2899 = vld [vmem:[#allocation14 + $0xc] sm:$0xf]
    %v2900 = vld [vmem:[#allocation14 + $0x10] sm:$0xf]
    %v2901 = vld [vmem:[#allocation14 + $0x14] sm:$0xf]
    %v2902 = vld [vmem:[#allocation14 + $0x18] sm:$0xf]
    %v2903 = vld [vmem:[#allocation14 + $0x1c] sm:$0xf]
    %v2904 = vld [vmem:[#allocation14 + $0x20] sm:$0xf]
    %v2905 = vld [vmem:[#allocation14 + $0x24] sm:$0xf]
    %v2906 = vld [vmem:[#allocation14 + $0x28] sm:$0xf]
    %v2907 = vld [vmem:[#allocation14 + $0x2c] sm:$0xf]
    %v2908 = vld [vmem:[#allocation14 + $0x30] sm:$0xf]
    %v2909 = vld [vmem:[#allocation14 + $0x34] sm:$0xf]
    %v2910 = vld [vmem:[#allocation14 + $0x38] sm:$0xf]
    %v2911 = vld [vmem:[#allocation14 + $0x3c] sm:$0xf]
    %v2912 = vld [vmem:[#allocation14 + $0x40] sm:$0xf]
    %v2913 = vld [vmem:[#allocation14 + $0x44] sm:$0xf]
    %v2914 = vld [vmem:[#allocation14 + $0x48] sm:$0xf]
    %v2915 = vld [vmem:[#allocation14 + $0x4c] sm:$0xf]
    %v2916 = vld [vmem:[#allocation14 + $0x50] sm:$0xf]
    %v2917 = vld [vmem:[#allocation14 + $0x54] sm:$0xf]
    %v2918 = vld [vmem:[#allocation14 + $0x58] sm:$0xf]
    %v2919 = vld [vmem:[#allocation14 + $0x5c] sm:$0xf]
    %v2920 = vld [vmem:[#allocation14 + $0x60] sm:$0xf]
    %v2921 = vld [vmem:[#allocation14 + $0x64] sm:$0xf]
    %v2922 = vld [vmem:[#allocation14 + $0x68] sm:$0xf]
    %v2923 = vld [vmem:[#allocation14 + $0x6c] sm:$0xf]
    %v2924 = vld [vmem:[#allocation14 + $0x70] sm:$0xf]
    %v2925 = vld [vmem:[#allocation14 + $0x74] sm:$0xf]
    %v2926 = vld [vmem:[#allocation14 + $0x78] sm:$0xf]
    %v2927 = vld [vmem:[#allocation14 + $0x7c] sm:$0xf]
    %v2928 = vld [vmem:[#allocation14 + $0x80] sm:$0xf]
    %v2929 = vld [vmem:[#allocation14 + $0x84] sm:$0xf]
    %v2930 = vld [vmem:[#allocation14 + $0x88] sm:$0xf]
    %v2931 = vld [vmem:[#allocation14 + $0x8c] sm:$0xf]
    %v2932 = vld [vmem:[#allocation14 + $0x90] sm:$0xf]
    %v2933 = vld [vmem:[#allocation14 + $0x94] sm:$0xf]
    %v2934 = vld [vmem:[#allocation14 + $0x98] sm:$0xf]
    %v2935 = vld [vmem:[#allocation14 + $0x9c] sm:$0xf]
    %v2936 = vld [vmem:[#allocation14 + $0xa0] sm:$0xf]
    %v2937 = vld [vmem:[#allocation14 + $0xa4] sm:$0xf]
    %v2938 = vld [vmem:[#allocation14 + $0xa8] sm:$0xf]
    %v2939 = vld [vmem:[#allocation14 + $0xac] sm:$0xf]
    %v2940 = vld [vmem:[#allocation14 + $0xb0] sm:$0xf]
    %v2941 = vld [vmem:[#allocation14 + $0xb4] sm:$0xf]
    %v2942 = vld [vmem:[#allocation14 + $0xb8] sm:$0xf]
    %v2943 = vld [vmem:[#allocation14 + $0xbc] sm:$0xf]
    %v2944 = vld [vmem:[#allocation14 + $0xc0] sm:$0xf]
    %v2945 = vld [vmem:[#allocation14 + $0xc4] sm:$0xf]
    %v2946 = vld [vmem:[#allocation14 + $0xc8] sm:$0xf]
    %v2947 = vld [vmem:[#allocation14 + $0xcc] sm:$0xf]
    %v2948 = vld [vmem:[#allocation14 + $0xd0] sm:$0xf]
    %v2949 = vld [vmem:[#allocation14 + $0xd4] sm:$0xf]
    %v2950 = vld [vmem:[#allocation14 + $0xd8] sm:$0xf]
    %v2951 = vld [vmem:[#allocation14 + $0xdc] sm:$0xf]
    %v2952 = vld [vmem:[#allocation14 + $0xe0] sm:$0xf]
    %v2953 = vld [vmem:[#allocation14 + $0xe4] sm:$0xf]
    %v2954 = vld [vmem:[#allocation14 + $0xe8] sm:$0xf]
    %v2955 = vld [vmem:[#allocation14 + $0xec] sm:$0xf]
    %v2956 = vld [vmem:[#allocation14 + $0xf0] sm:$0xf]
    %v2957 = vld [vmem:[#allocation14 + $0xf4] sm:$0xf]
    %v2958 = vld [vmem:[#allocation14 + $0xf8] sm:$0xf]
    %v2959 = vld [vmem:[#allocation14 + $0xfc] sm:$0xf]
    %v2960 = vld [vmem:[#allocation14 + $0x100] sm:$0xf]
    %v2961 = vld [vmem:[#allocation14 + $0x104] sm:$0xf]
    %v2962 = vld [vmem:[#allocation14 + $0x108] sm:$0xf]
    %v2963 = vld [vmem:[#allocation14 + $0x10c] sm:$0xf]
    %v2964 = vld [vmem:[#allocation14 + $0x110] sm:$0xf]
    %v2965 = vld [vmem:[#allocation14 + $0x114] sm:$0xf]
    %v2966 = vld [vmem:[#allocation14 + $0x118] sm:$0xf]
    %v2967 = vld [vmem:[#allocation14 + $0x11c] sm:$0xf]
    %v2968 = vld [vmem:[#allocation14 + $0x120] sm:$0xf]
    %v2969 = vld [vmem:[#allocation14 + $0x124] sm:$0xf]
    %v2970 = vld [vmem:[#allocation14 + $0x128] sm:$0xf]
    %v2971 = vld [vmem:[#allocation14 + $0x12c] sm:$0xf]
    %v2972 = vld [vmem:[#allocation14 + $0x130] sm:$0xf]
    %v2973 = vld [vmem:[#allocation14 + $0x134] sm:$0xf]
    %v2974 = vld [vmem:[#allocation14 + $0x138] sm:$0xf]
    %v2975 = vld [vmem:[#allocation14 + $0x13c] sm:$0xf]
    %v2976 = vld [vmem:[#allocation14 + $0x140] sm:$0xf]
    %v2977 = vld [vmem:[#allocation14 + $0x144] sm:$0xf]
    %v2978 = vld [vmem:[#allocation14 + $0x148] sm:$0xf]
    %v2979 = vld [vmem:[#allocation14 + $0x14c] sm:$0xf]
    %v2980 = vld [vmem:[#allocation14 + $0x150] sm:$0xf]
    %v2981 = vld [vmem:[#allocation14 + $0x154] sm:$0xf]
    %v2982 = vld [vmem:[#allocation14 + $0x158] sm:$0xf]
    %v2983 = vld [vmem:[#allocation14 + $0x15c] sm:$0xf]
    %v2984 = vld [vmem:[#allocation14 + $0x160] sm:$0xf]
    %v2985 = vld [vmem:[#allocation14 + $0x164] sm:$0xf]
    %v2986 = vld [vmem:[#allocation14 + $0x168] sm:$0xf]
    %v2987 = vld [vmem:[#allocation14 + $0x16c] sm:$0xf]
    %v2988 = vld [vmem:[#allocation14 + $0x170] sm:$0xf]
    %v2989 = vld [vmem:[#allocation14 + $0x174] sm:$0xf]
    %v2990 = vld [vmem:[#allocation14 + $0x178] sm:$0xf]
    %v2991 = vld [vmem:[#allocation14 + $0x17c] sm:$0xf]
    %v2992 = vld [vmem:[#allocation14 + $0x180] sm:$0xf]
    %v2993 = vld [vmem:[#allocation14 + $0x184] sm:$0xf]
    %v2994 = vld [vmem:[#allocation14 + $0x188] sm:$0xf]
    %v2995 = vld [vmem:[#allocation14 + $0x18c] sm:$0xf]
    %v2996 = vld [vmem:[#allocation14 + $0x190] sm:$0xf]
    %v2997 = vld [vmem:[#allocation14 + $0x194] sm:$0xf]
    %v2998 = vld [vmem:[#allocation14 + $0x198] sm:$0xf]
    %v2999 = vld [vmem:[#allocation14 + $0x19c] sm:$0xf]
    %v3000 = vld [vmem:[#allocation14 + $0x1a0] sm:$0xf]
    %v3001 = vld [vmem:[#allocation14 + $0x1a4] sm:$0xf]
    %v3002 = vld [vmem:[#allocation14 + $0x1a8] sm:$0xf]
    %v3003 = vld [vmem:[#allocation14 + $0x1ac] sm:$0xf]
    %v3004 = vld [vmem:[#allocation14 + $0x1b0] sm:$0xf]
    %v3005 = vld [vmem:[#allocation14 + $0x1b4] sm:$0xf]
    %v3006 = vld [vmem:[#allocation14 + $0x1b8] sm:$0xf]
    %v3007 = vld [vmem:[#allocation14 + $0x1bc] sm:$0xf]
    %v3008 = vld [vmem:[#allocation14 + $0x1c0] sm:$0xf]
    %v3009 = vld [vmem:[#allocation14 + $0x1c4] sm:$0xf]
    %v3010 = vld [vmem:[#allocation14 + $0x1c8] sm:$0xf]
    %v3011 = vld [vmem:[#allocation14 + $0x1cc] sm:$0xf]
    %v3012 = vld [vmem:[#allocation14 + $0x1d0] sm:$0xf]
    %v3013 = vld [vmem:[#allocation14 + $0x1d4] sm:$0xf]
    %v3014 = vld [vmem:[#allocation14 + $0x1d8] sm:$0xf]
    %v3015 = vld [vmem:[#allocation14 + $0x1dc] sm:$0xf]
    %v3016 = vld [vmem:[#allocation14 + $0x1e0] sm:$0xf]
    %v3017 = vld [vmem:[#allocation14 + $0x1e4] sm:$0xf]
    %v3018 = vld [vmem:[#allocation14 + $0x1e8] sm:$0xf]
    %v3019 = vld [vmem:[#allocation14 + $0x1ec] sm:$0xf]
    %v3020 = vld [vmem:[#allocation14 + $0x1f0] sm:$0xf]
    %v3021 = vld [vmem:[#allocation14 + $0x1f4] sm:$0xf]
    %v3022 = vld [vmem:[#allocation14 + $0x1f8] sm:$0xf]
    %v3023 = vld [vmem:[#allocation14 + $0x1fc] sm:$0xf]
    %v3024 = vld [vmem:[%s8] sm:$0x1]
    %v3026 = vperm.slane %v3024, 0
    %v3156 = vunpack.c.l.b16 %v2896
    %v3157 = vunpack.c.l.b16 %v2897
    %v3158 = vunpack.c.l.b16 %v2898
    %v3159 = vunpack.c.l.b16 %v2899
    %v3160 = vunpack.c.l.b16 %v2900
    %v3161 = vunpack.c.l.b16 %v2901
    %v3162 = vunpack.c.l.b16 %v2902
    %v3163 = vunpack.c.l.b16 %v2903
    %v3164 = vunpack.c.l.b16 %v2904
    %v3165 = vunpack.c.l.b16 %v2905
    %v3166 = vunpack.c.l.b16 %v2906
    %v3167 = vunpack.c.l.b16 %v2907
    %v3168 = vunpack.c.l.b16 %v2908
    %v3169 = vunpack.c.l.b16 %v2909
    %v3170 = vunpack.c.l.b16 %v2910
    %v3171 = vunpack.c.l.b16 %v2911
    %v3172 = vunpack.c.l.b16 %v2912
    %v3173 = vunpack.c.l.b16 %v2913
    %v3174 = vunpack.c.l.b16 %v2914
    %v3175 = vunpack.c.l.b16 %v2915
    %v3176 = vunpack.c.l.b16 %v2916
    %v3177 = vunpack.c.l.b16 %v2917
    %v3178 = vunpack.c.l.b16 %v2918
    %v3179 = vunpack.c.l.b16 %v2919
    %v3180 = vunpack.c.l.b16 %v2920
    %v3181 = vunpack.c.l.b16 %v2921
    %v3182 = vunpack.c.l.b16 %v2922
    %v3183 = vunpack.c.l.b16 %v2923
    %v3184 = vunpack.c.l.b16 %v2924
    %v3185 = vunpack.c.l.b16 %v2925
    %v3186 = vunpack.c.l.b16 %v2926
    %v3187 = vunpack.c.l.b16 %v2927
    %v3188 = vunpack.c.l.b16 %v2928
    %v3189 = vunpack.c.l.b16 %v2929
    %v3190 = vunpack.c.l.b16 %v2930
    %v3191 = vunpack.c.l.b16 %v2931
    %v3192 = vunpack.c.l.b16 %v2932
    %v3193 = vunpack.c.l.b16 %v2933
    %v3194 = vunpack.c.l.b16 %v2934
    %v3195 = vunpack.c.l.b16 %v2935
    %v3196 = vunpack.c.l.b16 %v2936
    %v3197 = vunpack.c.l.b16 %v2937
    %v3198 = vunpack.c.l.b16 %v2938
    %v3199 = vunpack.c.l.b16 %v2939
    %v3200 = vunpack.c.l.b16 %v2940
    %v3201 = vunpack.c.l.b16 %v2941
    %v3202 = vunpack.c.l.b16 %v2942
    %v3203 = vunpack.c.l.b16 %v2943
    %v3204 = vunpack.c.l.b16 %v2944
    %v3205 = vunpack.c.l.b16 %v2945
    %v3206 = vunpack.c.l.b16 %v2946
    %v3207 = vunpack.c.l.b16 %v2947
    %v3208 = vunpack.c.l.b16 %v2948
    %v3209 = vunpack.c.l.b16 %v2949
    %v3210 = vunpack.c.l.b16 %v2950
    %v3211 = vunpack.c.l.b16 %v2951
    %v3212 = vunpack.c.l.b16 %v2952
    %v3213 = vunpack.c.l.b16 %v2953
    %v3214 = vunpack.c.l.b16 %v2954
    %v3215 = vunpack.c.l.b16 %v2955
    %v3216 = vunpack.c.l.b16 %v2956
    %v3217 = vunpack.c.l.b16 %v2957
    %v3218 = vunpack.c.l.b16 %v2958
    %v3219 = vunpack.c.l.b16 %v2959
    %v3220 = vunpack.c.l.b16 %v2960
    %v3221 = vunpack.c.l.b16 %v2961
    %v3222 = vunpack.c.l.b16 %v2962
    %v3223 = vunpack.c.l.b16 %v2963
    %v3224 = vunpack.c.l.b16 %v2964
    %v3225 = vunpack.c.l.b16 %v2965
    %v3226 = vunpack.c.l.b16 %v2966
    %v3227 = vunpack.c.l.b16 %v2967
    %v3228 = vunpack.c.l.b16 %v2968
    %v3229 = vunpack.c.l.b16 %v2969
    %v3230 = vunpack.c.l.b16 %v2970
    %v3231 = vunpack.c.l.b16 %v2971
    %v3232 = vunpack.c.l.b16 %v2972
    %v3233 = vunpack.c.l.b16 %v2973
    %v3234 = vunpack.c.l.b16 %v2974
    %v3235 = vunpack.c.l.b16 %v2975
    %v3236 = vunpack.c.l.b16 %v2976
    %v3237 = vunpack.c.l.b16 %v2977
    %v3238 = vunpack.c.l.b16 %v2978
    %v3239 = vunpack.c.l.b16 %v2979
    %v3240 = vunpack.c.l.b16 %v2980
    %v3241 = vunpack.c.l.b16 %v2981
    %v3242 = vunpack.c.l.b16 %v2982
    %v3243 = vunpack.c.l.b16 %v2983
    %v3244 = vunpack.c.l.b16 %v2984
    %v3245 = vunpack.c.l.b16 %v2985
    %v3246 = vunpack.c.l.b16 %v2986
    %v3247 = vunpack.c.l.b16 %v2987
    %v3248 = vunpack.c.l.b16 %v2988
    %v3249 = vunpack.c.l.b16 %v2989
    %v3250 = vunpack.c.l.b16 %v2990
    %v3251 = vunpack.c.l.b16 %v2991
    %v3252 = vunpack.c.l.b16 %v2992
    %v3253 = vunpack.c.l.b16 %v2993
    %v3254 = vunpack.c.l.b16 %v2994
    %v3255 = vunpack.c.l.b16 %v2995
    %v3256 = vunpack.c.l.b16 %v2996
    %v3257 = vunpack.c.l.b16 %v2997
    %v3258 = vunpack.c.l.b16 %v2998
    %v3259 = vunpack.c.l.b16 %v2999
    %v3260 = vunpack.c.l.b16 %v3000
    %v3261 = vunpack.c.l.b16 %v3001
    %v3262 = vunpack.c.l.b16 %v3002
    %v3263 = vunpack.c.l.b16 %v3003
    %v3264 = vunpack.c.l.b16 %v3004
    %v3265 = vunpack.c.l.b16 %v3005
    %v3266 = vunpack.c.l.b16 %v3006
    %v3267 = vunpack.c.l.b16 %v3007
    %v3268 = vunpack.c.l.b16 %v3008
    %v3269 = vunpack.c.l.b16 %v3009
    %v3270 = vunpack.c.l.b16 %v3010
    %v3271 = vunpack.c.l.b16 %v3011
    %v3272 = vunpack.c.l.b16 %v3012
    %v3273 = vunpack.c.l.b16 %v3013
    %v3274 = vunpack.c.l.b16 %v3014
    %v3275 = vunpack.c.l.b16 %v3015
    %v3276 = vunpack.c.l.b16 %v3016
    %v3277 = vunpack.c.l.b16 %v3017
    %v3278 = vunpack.c.l.b16 %v3018
    %v3279 = vunpack.c.l.b16 %v3019
    %v3280 = vunpack.c.l.b16 %v3020
    %v3281 = vunpack.c.l.b16 %v3021
    %v3282 = vunpack.c.l.b16 %v3022
    %v3283 = vunpack.c.l.b16 %v3023
    %v3284 = vpack.c.b16 %v3157, %v3156
    %v3285 = vpack.c.b16 %v3159, %v3158
    %v3286 = vpack.c.b16 %v3161, %v3160
    %v3287 = vpack.c.b16 %v3163, %v3162
    %v3288 = vpack.c.b16 %v3165, %v3164
    %v3289 = vpack.c.b16 %v3167, %v3166
    %v3290 = vpack.c.b16 %v3169, %v3168
    %v3291 = vpack.c.b16 %v3171, %v3170
    %v3292 = vpack.c.b16 %v3173, %v3172
    %v3293 = vpack.c.b16 %v3175, %v3174
    %v3294 = vpack.c.b16 %v3177, %v3176
    %v3295 = vpack.c.b16 %v3179, %v3178
    %v3296 = vpack.c.b16 %v3181, %v3180
    %v3297 = vpack.c.b16 %v3183, %v3182
    %v3298 = vpack.c.b16 %v3185, %v3184
    %v3299 = vpack.c.b16 %v3187, %v3186
    %v3300 = vpack.c.b16 %v3189, %v3188
    %v3301 = vpack.c.b16 %v3191, %v3190
    %v3302 = vpack.c.b16 %v3193, %v3192
    %v3303 = vpack.c.b16 %v3195, %v3194
    %v3304 = vpack.c.b16 %v3197, %v3196
    %v3305 = vpack.c.b16 %v3199, %v3198
    %v3306 = vpack.c.b16 %v3201, %v3200
    %v3307 = vpack.c.b16 %v3203, %v3202
    %v3308 = vpack.c.b16 %v3205, %v3204
    %v3309 = vpack.c.b16 %v3207, %v3206
    %v3310 = vpack.c.b16 %v3209, %v3208
    %v3311 = vpack.c.b16 %v3211, %v3210
    %v3312 = vpack.c.b16 %v3213, %v3212
    %v3313 = vpack.c.b16 %v3215, %v3214
    %v3314 = vpack.c.b16 %v3217, %v3216
    %v3315 = vpack.c.b16 %v3219, %v3218
    %v3316 = vpack.c.b16 %v3221, %v3220
    %v3317 = vpack.c.b16 %v3223, %v3222
    %v3318 = vpack.c.b16 %v3225, %v3224
    %v3319 = vpack.c.b16 %v3227, %v3226
    %v3320 = vpack.c.b16 %v3229, %v3228
    %v3321 = vpack.c.b16 %v3231, %v3230
    %v3322 = vpack.c.b16 %v3233, %v3232
    %v3323 = vpack.c.b16 %v3235, %v3234
    %v3324 = vpack.c.b16 %v3237, %v3236
    %v3325 = vpack.c.b16 %v3239, %v3238
    %v3326 = vpack.c.b16 %v3241, %v3240
    %v3327 = vpack.c.b16 %v3243, %v3242
    %v3328 = vpack.c.b16 %v3245, %v3244
    %v3329 = vpack.c.b16 %v3247, %v3246
    %v3330 = vpack.c.b16 %v3249, %v3248
    %v3331 = vpack.c.b16 %v3251, %v3250
    %v3332 = vpack.c.b16 %v3253, %v3252
    %v3333 = vpack.c.b16 %v3255, %v3254
    %v3334 = vpack.c.b16 %v3257, %v3256
    %v3335 = vpack.c.b16 %v3259, %v3258
    %v3336 = vpack.c.b16 %v3261, %v3260
    %v3337 = vpack.c.b16 %v3263, %v3262
    %v3338 = vpack.c.b16 %v3265, %v3264
    %v3339 = vpack.c.b16 %v3267, %v3266
    %v3340 = vpack.c.b16 %v3269, %v3268
    %v3341 = vpack.c.b16 %v3271, %v3270
    %v3342 = vpack.c.b16 %v3273, %v3272
    %v3343 = vpack.c.b16 %v3275, %v3274
    %v3344 = vpack.c.b16 %v3277, %v3276
    %v3345 = vpack.c.b16 %v3279, %v3278
    %v3346 = vpack.c.b16 %v3281, %v3280
    %v3347 = vpack.c.b16 %v3283, %v3282
    %3412 = vmatpush.bf16.msra.mxu0 %v3291
    %3413 = vmatpush.bf16.msra.mxu0 %v3290
    %3414 = vmatpush.bf16.msra.mxu0 %v3289
    %3415 = vmatpush.bf16.msra.mxu0 %v3288
    %3416 = vmatpush.bf16.msra.mxu0 %v3287
    %3417 = vmatpush.bf16.msra.mxu0 %v3286
    %3418 = vmatpush.bf16.msra.mxu0 %v3285
    %3419 = vmatpush.bf16.msra.mxu0 %v3284
    %3420 = vmatmul.bf16.gmra.mxu0 %v2888
    %v3421 = vpop.f32.mrf.mxu0
    %v3422 = vadd.f32 %v3026, %v3421
    %v3423 = vpop.f32.mrf.mxu0
    %v3424 = vadd.f32 %v3026, %v3423
    %3425 = vdwg.mxu0
    %3426 = vmatpush.bf16.msra.mxu0 %v3299
    %3427 = vmatpush.bf16.msra.mxu0 %v3298
    %3428 = vmatpush.bf16.msra.mxu0 %v3297
    %3429 = vmatpush.bf16.msra.mxu0 %v3296
    %3430 = vmatpush.bf16.msra.mxu0 %v3295
    %3431 = vmatpush.bf16.msra.mxu0 %v3294
    %3432 = vmatpush.bf16.msra.mxu0 %v3293
    %3433 = vmatpush.bf16.msra.mxu0 %v3292
    %3434 = vmatmul.bf16.gmra.mxu0 %v2889
    %v3435 = vpop.f32.mrf.mxu0
    %v3436 = vadd.f32 %v3422, %v3435
    %v3437 = vpop.f32.mrf.mxu0
    %v3438 = vadd.f32 %v3424, %v3437
    %3439 = vdwg.mxu0
    %3440 = vmatpush.bf16.msra.mxu0 %v3307
    %3441 = vmatpush.bf16.msra.mxu0 %v3306
    %3442 = vmatpush.bf16.msra.mxu0 %v3305
    %3443 = vmatpush.bf16.msra.mxu0 %v3304
    %3444 = vmatpush.bf16.msra.mxu0 %v3303
    %3445 = vmatpush.bf16.msra.mxu0 %v3302
    %3446 = vmatpush.bf16.msra.mxu0 %v3301
    %3447 = vmatpush.bf16.msra.mxu0 %v3300
    %3448 = vmatmul.bf16.gmra.mxu0 %v2890
    %v3449 = vpop.f32.mrf.mxu0
    %v3450 = vadd.f32 %v3436, %v3449
    %v3451 = vpop.f32.mrf.mxu0
    %v3452 = vadd.f32 %v3438, %v3451
    %3453 = vdwg.mxu0
    %3454 = vmatpush.bf16.msra.mxu0 %v3315
    %3455 = vmatpush.bf16.msra.mxu0 %v3314
    %3456 = vmatpush.bf16.msra.mxu0 %v3313
    %3457 = vmatpush.bf16.msra.mxu0 %v3312
    %3458 = vmatpush.bf16.msra.mxu0 %v3311
    %3459 = vmatpush.bf16.msra.mxu0 %v3310
    %3460 = vmatpush.bf16.msra.mxu0 %v3309
    %3461 = vmatpush.bf16.msra.mxu0 %v3308
    %3462 = vmatmul.bf16.gmra.mxu0 %v2891
    %v3463 = vpop.f32.mrf.mxu0
    %v3464 = vadd.f32 %v3450, %v3463
    %v3465 = vpop.f32.mrf.mxu0
    %v3466 = vadd.f32 %v3452, %v3465
    %3467 = vdwg.mxu0
    %3468 = vmatpush.bf16.msra.mxu0 %v3323
    %3469 = vmatpush.bf16.msra.mxu0 %v3322
    %3470 = vmatpush.bf16.msra.mxu0 %v3321
    %3471 = vmatpush.bf16.msra.mxu0 %v3320
    %3472 = vmatpush.bf16.msra.mxu0 %v3319
    %3473 = vmatpush.bf16.msra.mxu0 %v3318
    %3474 = vmatpush.bf16.msra.mxu0 %v3317
    %3475 = vmatpush.bf16.msra.mxu0 %v3316
    %3476 = vmatmul.bf16.gmra.mxu0 %v2892
    %v3477 = vpop.f32.mrf.mxu0
    %v3478 = vadd.f32 %v3464, %v3477
    %v3479 = vpop.f32.mrf.mxu0
    %v3480 = vadd.f32 %v3466, %v3479
    %3481 = vdwg.mxu0
    %3482 = vmatpush.bf16.msra.mxu0 %v3331
    %3483 = vmatpush.bf16.msra.mxu0 %v3330
    %3484 = vmatpush.bf16.msra.mxu0 %v3329
    %3485 = vmatpush.bf16.msra.mxu0 %v3328
    %3486 = vmatpush.bf16.msra.mxu0 %v3327
    %3487 = vmatpush.bf16.msra.mxu0 %v3326
    %3488 = vmatpush.bf16.msra.mxu0 %v3325
    %3489 = vmatpush.bf16.msra.mxu0 %v3324
    %3490 = vmatmul.bf16.gmra.mxu0 %v2893
    %v3491 = vpop.f32.mrf.mxu0
    %v3492 = vadd.f32 %v3478, %v3491
    %v3493 = vpop.f32.mrf.mxu0
    %v3494 = vadd.f32 %v3480, %v3493
    %3495 = vdwg.mxu0
    %3496 = vmatpush.bf16.msra.mxu0 %v3339
    %3497 = vmatpush.bf16.msra.mxu0 %v3338
    %3498 = vmatpush.bf16.msra.mxu0 %v3337
    %3499 = vmatpush.bf16.msra.mxu0 %v3336
    %3500 = vmatpush.bf16.msra.mxu0 %v3335
    %3501 = vmatpush.bf16.msra.mxu0 %v3334
    %3502 = vmatpush.bf16.msra.mxu0 %v3333
    %3503 = vmatpush.bf16.msra.mxu0 %v3332
    %3504 = vmatmul.bf16.gmra.mxu0 %v2894
    %v3505 = vpop.f32.mrf.mxu0
    %v3506 = vadd.f32 %v3492, %v3505
    %v3507 = vpop.f32.mrf.mxu0
    %v3508 = vadd.f32 %v3494, %v3507
    %3509 = vdwg.mxu0
    %3510 = vmatpush.bf16.msra.mxu0 %v3347
    %3511 = vmatpush.bf16.msra.mxu0 %v3346
    %3512 = vmatpush.bf16.msra.mxu0 %v3345
    %3513 = vmatpush.bf16.msra.mxu0 %v3344
    %3514 = vmatpush.bf16.msra.mxu0 %v3343
    %3515 = vmatpush.bf16.msra.mxu0 %v3342
    %3516 = vmatpush.bf16.msra.mxu0 %v3341
    %3517 = vmatpush.bf16.msra.mxu0 %v3340
    %3518 = vmatmul.bf16.gmra.mxu0 %v2895
    %v3519 = vpop.f32.mrf.mxu0
    %v3520 = vadd.f32 %v3506, %v3519
    %v3521 = vpop.f32.mrf.mxu0
    %v3522 = vadd.f32 %v3508, %v3521
    %3523 = vdwg.mxu0
    %v3524 = vtanh.pop %v3520
    %v3525 = vtanh.pop %v3522
    %v3526 = vpack.c.bf16 %v3524, %v3524
    %v3527 = vpack.c.bf16 %v3525, %v3525
    %3528 = vst [vmem:[#allocation16] sm:$0xf] %v3526
    %3529 = vst [vmem:[#allocation16 + $0x4] sm:$0xf] %v3527
    // Predicated region
    $region70: #{tpu_custom_call.1} parent=1 // pred_check
      _
    $region71: #{tpu_custom_call.1} parent=1 // pred_check_branch
      %3531 = sbr.rel (0) target = $region73
    $region72: #{tpu_custom_call.1} parent=1 // pred_region
      %3533 = vsyncadd [#allocation4], 0
      %s3534 = sshll.u32 [#allocation16], 4
      %s3535 = int_to_ptr.vmem [resolvable:$true] %s3534
      %s3536 = sshll.u32 %s9, 4
      %s3537 = int_to_ptr.hbm [resolvable:$true] %s3536
      %3542 = dma.vmem_to_hbm [thread:$0]  %s3535, 128, %s3537, [#allocation4], 64, 64, 4
    $region73: #{tpu_custom_call.1} parent=1 // pred_fallthru
      _
    // Predicated region
    $region74: #{tpu_custom_call.1} parent=1 // pred_check
      _
    $region75: #{tpu_custom_call.1} parent=1 // pred_check_branch
      %3544 = sbr.rel (0) target = $region77
    $region76: #{tpu_custom_call.1} parent=1 // pred_region
      %3546 = dma.done [#allocation4], 128
    $region77: #{tpu_custom_call.1} parent=1 // pred_fallthru
      _
    %3547 = vsyncpa [#allocation3], 1
    %3548 = vsyncpa [#allocation6], 1
    %3549 = vsyncpa [#allocation9], 1
    %3550 = vsyncpa [#allocation12], 1
    %3551 = vsyncpa [#allocation15], 1
    %3552 = vsyncpa [#allocation4], 1

// kernel: tpu_custom_call.1
$region0: #{tpu_custom_call.1}
  #allocation0 [shape = 'u32[]', space=smem, size = 0x4, offset = 0x4, fixed_abs, tag = 'smem constant byte address 0x4 - core index']
  #allocation1 [shape = 'u32[72,128]{1,0:T(1,128)}', space=vmem, size = 0x9000, scoped, tag = 'internal scratch']
  %s0 = inlined_call_operand.hbm [shape: bf16[16,128], index: 0, kind: input, shape index: {}]
  %s1 = inlined_call_operand.hbm [shape: bf16[128,256], index: 1, kind: input, shape index: {}]
  %s2 = inlined_call_operand.hbm [shape: f32[1,256], index: 2, kind: input, shape index: {}]
  %s3 = inlined_call_operand.hbm [shape: bf16[256,512], index: 3, kind: input, shape index: {}]
  %s4 = inlined_call_operand.hbm [shape: f32[1,512], index: 4, kind: input, shape index: {}]
  %s5 = inlined_call_operand.hbm [shape: bf16[512,1024], index: 5, kind: input, shape index: {}]
  %s6 = inlined_call_operand.hbm [shape: f32[1,1024], index: 6, kind: input, shape index: {}]
  %s7 = inlined_call_operand.hbm [shape: bf16[1024,128], index: 7, kind: input, shape index: {}]
  %s8 = inlined_call_operand.vmem [shape: f32[1,128], index: 8, kind: input, shape index: {}]
  %s9 = inlined_call_operand.hbm [shape: bf16[16,128], index: 9, kind: output, shape index: {}]
  %s10 = sld [smem:[#allocation0]]
  $region78: #{tpu_custom_call.1} parent=0
    _
  %s12 = ssub.s32 1, %s10
  %s13 = scalar_select 0, %s12, %s10
  $region1: #{tpu_custom_call.1} parent=0
    #allocation2 [shape = 'u8[4096]{0}', space=vmem, size = 0x1000, scoped, tag = 'input window, operand 0, single buffered']
    #allocation3 [shape = 's32[1]{0}', space=sflag, size = 0x4, scoped, tag = 'scoped memory for tpu_custom_call.1']
    #allocation4 [shape = 's32[1]{0}', space=sflag, size = 0x4, scoped, tag = 'scoped memory for tpu_custom_call.1']
    #allocation5 [shape = 'u8[65536]{0}', space=vmem, size = 0x10000, scoped, tag = 'input window, operand 1, single buffered']
    #allocation6 [shape = 's32[1]{0}', space=sflag, size = 0x4, scoped, tag = 'scoped memory for tpu_custom_call.1']
    #allocation7 [shape = 'u8[1024]{0}', space=vmem, size = 0x400, scoped, tag = 'input window, operand 2, single buffered']
    #allocation8 [shape = 'u8[262144]{0}', space=vmem, size = 0x40000, scoped, tag = 'input window, operand 3, single buffered']
    #allocation9 [shape = 's32[1]{0}', space=sflag, size = 0x4, scoped, tag = 'scoped memory for tpu_custom_call.1']
    #allocation10 [shape = 'u8[2048]{0}', space=vmem, size = 0x800, scoped, tag = 'input window, operand 4, single buffered']
    #allocation11 [shape = 'u8[1048576]{0}', space=vmem, size = 0x100000, scoped, tag = 'input window, operand 5, single buffered']
    #allocation12 [shape = 's32[1]{0}', space=sflag, size = 0x4, scoped, tag = 'scoped memory for tpu_custom_call.1']
    #allocation13 [shape = 'u8[4096]{0}', space=vmem, size = 0x1000, scoped, tag = 'input window, operand 6, single buffered']
    #allocation14 [shape = 'u8[262144]{0}', space=vmem, size = 0x40000, scoped, tag = 'input window, operand 7, single buffered']
    #allocation15 [shape = 's32[1]{0}', space=sflag, size = 0x4, scoped, tag = 'scoped memory for tpu_custom_call.1']
    #allocation16 [shape = 'u8[4096]{0}', space=vmem, size = 0x1000, scoped, tag = 'output window, operand 0, single buffered']
    %14 = vsyncpa [#allocation3], 0
    %15 = vsyncpa [#allocation6], 0
    %16 = vsyncpa [#allocation9], 0
    %17 = vsyncpa [#allocation12], 0
    %18 = vsyncpa [#allocation15], 0
    %19 = vsyncpa [#allocation4], 0
    // Predicated region
    $region2: #{tpu_custom_call.1} parent=1 // pred_check
      _
    $region3: #{tpu_custom_call.1} parent=1 // pred_check_branch
      %21 = sbr.rel (0) target = $region5
    $region4: #{tpu_custom_call.1} parent=1 // pred_region
      %23 = vsyncadd [#allocation3], 0
      %s24 = sshll.u32 %s0, 4
      %s25 = int_to_ptr.hbm [resolvable:$true] %s24
      %s26 = sshll.u32 [#allocation2], 4
      %s27 = int_to_ptr.vmem [resolvable:$true] %s26
      %32 = dma.hbm_to_vmem [thread:$0]  %s25, 128, %s27, [#allocation3], 64, 64, 4
    $region5: #{tpu_custom_call.1} parent=1 // pred_fallthru
      _
    // Predicated region
    $region6: #{tpu_custom_call.1} parent=1 // pred_check
      _
    $region7: #{tpu_custom_call.1} parent=1 // pred_check_branch
      %34 = sbr.rel (0) target = $region9
    $region8: #{tpu_custom_call.1} parent=1 // pred_region
      %36 = vsyncadd [#allocation6], 0
      %s37 = sshll.u32 %s1, 4
      %s38 = int_to_ptr.hbm [resolvable:$true] %s37
      %s39 = sshll.u32 [#allocation5], 4
      %s40 = int_to_ptr.vmem [resolvable:$true] %s39
      %45 = dma.hbm_to_vmem [thread:$0]  %s38, 2048, %s40, [#allocation6], 128, 128, 8
    $region9: #{tpu_custom_call.1} parent=1 // pred_fallthru
      _
    // Predicated region
    $region10: #{tpu_custom_call.1} parent=1 // pred_check
      _
    $region11: #{tpu_custom_call.1} parent=1 // pred_check_branch
      %47 = sbr.rel (0) target = $region13
    $region12: #{tpu_custom_call.1} parent=1 // pred_region
      %49 = vsyncadd [#allocation6], 0
      %s51 = sshll.u32 %s2, 4
      %s52 = int_to_ptr.hbm [resolvable:$true] %s51
      %s53 = sshll.u32 [#allocation7], 4
      %s54 = int_to_ptr.vmem [resolvable:$true] %s53
      %56 = dma.hbm_to_vmem [thread:$0]  %s52, 32, %s54, [#allocation6]
    $region13: #{tpu_custom_call.1} parent=1 // pred_fallthru
      _
    // Predicated region
    $region14: #{tpu_custom_call.1} parent=1 // pred_check
      _
    $region15: #{tpu_custom_call.1} parent=1 // pred_check_branch
      %58 = sbr.rel (0) target = $region17
    $region16: #{tpu_custom_call.1} parent=1 // pred_region
      %60 = vsyncadd [#allocation9], 0
      %s61 = sshll.u32 %s3, 4
      %s62 = int_to_ptr.hbm [resolvable:$true] %s61
      %s63 = sshll.u32 [#allocation8], 4
      %s64 = int_to_ptr.vmem [resolvable:$true] %s63
      %69 = dma.hbm_to_vmem [thread:$0]  %s62, 8192, %s64, [#allocation9], 256, 256, 16
    $region17: #{tpu_custom_call.1} parent=1 // pred_fallthru
      _
    // Predicated region
    $region18: #{tpu_custom_call.1} parent=1 // pred_check
      _
    $region19: #{tpu_custom_call.1} parent=1 // pred_check_branch
      %71 = sbr.rel (0) target = $region21
    $region20: #{tpu_custom_call.1} parent=1 // pred_region
      %73 = vsyncadd [#allocation9], 0
      %s75 = sshll.u32 %s4, 4
      %s76 = int_to_ptr.hbm [resolvable:$true] %s75
      %s77 = sshll.u32 [#allocation10], 4
      %s78 = int_to_ptr.vmem [resolvable:$true] %s77
      %80 = dma.hbm_to_vmem [thread:$0]  %s76, 64, %s78, [#allocation9]
    $region21: #{tpu_custom_call.1} parent=1 // pred_fallthru
      _
    // Predicated region
    $region22: #{tpu_custom_call.1} parent=1 // pred_check
      _
    $region23: #{tpu_custom_call.1} parent=1 // pred_check_branch
      %82 = sbr.rel (0) target = $region25
    $region24: #{tpu_custom_call.1} parent=1 // pred_region
      %84 = vsyncadd [#allocation12], 0
      %s85 = sshll.u32 %s5, 4
      %s86 = int_to_ptr.hbm [resolvable:$true] %s85
      %s87 = sshll.u32 [#allocation11], 4
      %s88 = int_to_ptr.vmem [resolvable:$true] %s87
      %93 = dma.hbm_to_vmem [thread:$0]  %s86, 32768, %s88, [#allocation12], 512, 512, 32
    $region25: #{tpu_custom_call.1} parent=1 // pred_fallthru
      _
    // Predicated region
    $region26: #{tpu_custom_call.1} parent=1 // pred_check
      _
    $region27: #{tpu_custom_call.1} parent=1 // pred_check_branch
      %95 = sbr.rel (0) target = $region29
    $region28: #{tpu_custom_call.1} parent=1 // pred_region
      %97 = vsyncadd [#allocation12], 0
      %s99 = sshll.u32 %s6, 4
      %s100 = int_to_ptr.hbm [resolvable:$true] %s99
      %s101 = sshll.u32 [#allocation13], 4
      %s102 = int_to_ptr.vmem [resolvable:$true] %s101
      %104 = dma.hbm_to_vmem [thread:$0]  %s100, 128, %s102, [#allocation12]
    $region29: #{tpu_custom_call.1} parent=1 // pred_fallthru
      _
    // Predicated region
    $region30: #{tpu_custom_call.1} parent=1 // pred_check
      _
    $region31: #{tpu_custom_call.1} parent=1 // pred_check_branch
      %106 = sbr.rel (0) target = $region33
    $region32: #{tpu_custom_call.1} parent=1 // pred_region
      %108 = vsyncadd [#allocation15], 0
      %s109 = sshll.u32 %s7, 4
      %s110 = int_to_ptr.hbm [resolvable:$true] %s109
      %s111 = sshll.u32 [#allocation14], 4
      %s112 = int_to_ptr.vmem [resolvable:$true] %s111
      %117 = dma.hbm_to_vmem [thread:$0]  %s110, 8192, %s112, [#allocation15], 64, 64, 4
    $region33: #{tpu_custom_call.1} parent=1 // pred_fallthru
      _
    // Predicated region
    $region34: #{tpu_custom_call.1} parent=1 // pred_check
      _
    $region35: #{tpu_custom_call.1} parent=1 // pred_check_branch
      %119 = sbr.rel (0) target = $region37
    $region36: #{tpu_custom_call.1} parent=1 // pred_region
      _
    $region37: #{tpu_custom_call.1} parent=1 // pred_fallthru
      _
    // Predicated region
    $region38: #{tpu_custom_call.1} parent=1 // pred_check
      _
    $region39: #{tpu_custom_call.1} parent=1 // pred_check_branch
      %121 = sbr.rel (0) target = $region41
    $region40: #{tpu_custom_call.1} parent=1 // pred_region
      %123 = dma.done [#allocation3], 128
    $region41: #{tpu_custom_call.1} parent=1 // pred_fallthru
      _
    // Predicated region
    $region42: #{tpu_custom_call.1} parent=1 // pred_check
      _
    $region43: #{tpu_custom_call.1} parent=1 // pred_check_branch
      %125 = sbr.rel (0) target = $region45
    $region44: #{tpu_custom_call.1} parent=1 // pred_region
      %127 = dma.done [#allocation6], 2048
    $region45: #{tpu_custom_call.1} parent=1 // pred_fallthru
      _
    // Predicated region
    $region46: #{tpu_custom_call.1} parent=1 // pred_check
      _
    $region47: #{tpu_custom_call.1} parent=1 // pred_check_branch
      %129 = sbr.rel (0) target = $region49
    $region48: #{tpu_custom_call.1} parent=1 // pred_region
      %131 = dma.done [#allocation6], 32
    $region49: #{tpu_custom_call.1} parent=1 // pred_fallthru
      _
    // Predicated region
    $region50: #{tpu_custom_call.1} parent=1 // pred_check
      _
    $region51: #{tpu_custom_call.1} parent=1 // pred_check_branch
      %133 = sbr.rel (0) target = $region53
    $region52: #{tpu_custom_call.1} parent=1 // pred_region
      %135 = dma.done [#allocation9], 8192
    $region53: #{tpu_custom_call.1} parent=1 // pred_fallthru
      _
    // Predicated region
    $region54: #{tpu_custom_call.1} parent=1 // pred_check
      _
    $region55: #{tpu_custom_call.1} parent=1 // pred_check_branch
      %137 = sbr.rel (0) target = $region57
    $region56: #{tpu_custom_call.1} parent=1 // pred_region
      %139 = dma.done [#allocation9], 64
    $region57: #{tpu_custom_call.1} parent=1 // pred_fallthru
      _
    // Predicated region
    $region58: #{tpu_custom_call.1} parent=1 // pred_check
      _
    $region59: #{tpu_custom_call.1} parent=1 // pred_check_branch
      %141 = sbr.rel (0) target = $region61
    $region60: #{tpu_custom_call.1} parent=1 // pred_region
      %143 = dma.done [#allocation12], 32768
    $region61: #{tpu_custom_call.1} parent=1 // pred_fallthru
      _
    // Predicated region
    $region62: #{tpu_custom_call.1} parent=1 // pred_check
      _
    $region63: #{tpu_custom_call.1} parent=1 // pred_check_branch
      %145 = sbr.rel (0) target = $region65
    $region64: #{tpu_custom_call.1} parent=1 // pred_region
      %147 = dma.done [#allocation12], 128
    $region65: #{tpu_custom_call.1} parent=1 // pred_fallthru
      _
    // Predicated region
    $region66: #{tpu_custom_call.1} parent=1 // pred_check
      _
    $region67: #{tpu_custom_call.1} parent=1 // pred_check_branch
      %149 = sbr.rel (0) target = $region69
    $region68: #{tpu_custom_call.1} parent=1 // pred_region
      %151 = dma.done [#allocation15], 8192
    $region69: #{tpu_custom_call.1} parent=1 // pred_fallthru
      _
    %v152 = vld [vmem:[#allocation2] sm:$0xf]
    %v153 = vld [vmem:[#allocation2 + $0x4] sm:$0xf]
    %v154 = vld [vmem:[#allocation5] sm:$0xff]
    %v155 = vld [vmem:[#allocation5 + $0x8] sm:$0xff]
    %v156 = vld [vmem:[#allocation5 + $0x10] sm:$0xff]
    %v157 = vld [vmem:[#allocation5 + $0x18] sm:$0xff]
    %v158 = vld [vmem:[#allocation5 + $0x20] sm:$0xff]
    %v159 = vld [vmem:[#allocation5 + $0x28] sm:$0xff]
    %v160 = vld [vmem:[#allocation5 + $0x30] sm:$0xff]
    %v161 = vld [vmem:[#allocation5 + $0x38] sm:$0xff]
    %v162 = vld [vmem:[#allocation5 + $0x40] sm:$0xff]
    %v163 = vld [vmem:[#allocation5 + $0x48] sm:$0xff]
    %v164 = vld [vmem:[#allocation5 + $0x50] sm:$0xff]
    %v165 = vld [vmem:[#allocation5 + $0x58] sm:$0xff]
    %v166 = vld [vmem:[#allocation5 + $0x60] sm:$0xff]
    %v167 = vld [vmem:[#allocation5 + $0x68] sm:$0xff]
    %v168 = vld [vmem:[#allocation5 + $0x70] sm:$0xff]
    %v169 = vld [vmem:[#allocation5 + $0x78] sm:$0xff]
    %v170 = vld [vmem:[#allocation7] sm:$0x3]
    %v172 = vperm.slane %v170, 0
    %v173 = vperm.slane %v170, 1
    %v178 = vunpack.c.l.b16 %v152
    %v179 = vunpack.c.l.b16 %v153
    %v180 = vpack.c.b16 %v179, %v178
    %v198 = vunpack.c.l.b16 %v154
    %v199 = vunpack.c.h.b16 %v154
    %v200 = vunpack.c.l.b16 %v155
    %v201 = vunpack.c.h.b16 %v155
    %v202 = vunpack.c.l.b16 %v156
    %v203 = vunpack.c.h.b16 %v156
    %v204 = vunpack.c.l.b16 %v157
    %v205 = vunpack.c.h.b16 %v157
    %v206 = vunpack.c.l.b16 %v158
    %v207 = vunpack.c.h.b16 %v158
    %v208 = vunpack.c.l.b16 %v159
    %v209 = vunpack.c.h.b16 %v159
    %v210 = vunpack.c.l.b16 %v160
    %v211 = vunpack.c.h.b16 %v160
    %v212 = vunpack.c.l.b16 %v161
    %v213 = vunpack.c.h.b16 %v161
    %v214 = vunpack.c.l.b16 %v162
    %v215 = vunpack.c.h.b16 %v162
    %v216 = vunpack.c.l.b16 %v163
    %v217 = vunpack.c.h.b16 %v163
    %v218 = vunpack.c.l.b16 %v164
    %v219 = vunpack.c.h.b16 %v164
    %v220 = vunpack.c.l.b16 %v165
    %v221 = vunpack.c.h.b16 %v165
    %v222 = vunpack.c.l.b16 %v166
    %v223 = vunpack.c.h.b16 %v166
    %v224 = vunpack.c.l.b16 %v167
    %v225 = vunpack.c.h.b16 %v167
    %v226 = vunpack.c.l.b16 %v168
    %v227 = vunpack.c.h.b16 %v168
    %v228 = vunpack.c.l.b16 %v169
    %v229 = vunpack.c.h.b16 %v169
    %v230 = vpack.c.b16 %v200, %v198
    %v231 = vpack.c.b16 %v201, %v199
    %v232 = vpack.c.b16 %v204, %v202
    %v233 = vpack.c.b16 %v205, %v203
    %v234 = vpack.c.b16 %v208, %v206
    %v235 = vpack.c.b16 %v209, %v207
    %v236 = vpack.c.b16 %v212, %v210
    %v237 = vpack.c.b16 %v213, %v211
    %v238 = vpack.c.b16 %v216, %v214
    %v239 = vpack.c.b16 %v217, %v215
    %v240 = vpack.c.b16 %v220, %v218
    %v241 = vpack.c.b16 %v221, %v219
    %v242 = vpack.c.b16 %v224, %v222
    %v243 = vpack.c.b16 %v225, %v223
    %v244 = vpack.c.b16 %v228, %v226
    %v245 = vpack.c.b16 %v229, %v227
    %262 = vmatpush.bf16.msra.mxu0 %v244
    %263 = vmatpush.bf16.msra.mxu0 %v242
    %264 = vmatpush.bf16.msra.mxu0 %v240
    %265 = vmatpush.bf16.msra.mxu0 %v238
    %266 = vmatpush.bf16.msra.mxu0 %v236
    %267 = vmatpush.bf16.msra.mxu0 %v234
    %268 = vmatpush.bf16.msra.mxu0 %v232
    %269 = vmatpush.bf16.msra.mxu0 %v230
    %270 = vmatmul.bf16.gmra.mxu0 %v180
    %v271 = vpop.f32.mrf.mxu0
    %v272 = vadd.f32 %v172, %v271
    %v273 = vpop.f32.mrf.mxu0
    %v274 = vadd.f32 %v172, %v273
    %275 = vdwg.mxu0
    %276 = vmatpush.bf16.msra.mxu0 %v245
    %277 = vmatpush.bf16.msra.mxu0 %v243
    %278 = vmatpush.bf16.msra.mxu0 %v241
    %279 = vmatpush.bf16.msra.mxu0 %v239
    %280 = vmatpush.bf16.msra.mxu0 %v237
    %281 = vmatpush.bf16.msra.mxu0 %v235
    %282 = vmatpush.bf16.msra.mxu0 %v233
    %283 = vmatpush.bf16.msra.mxu0 %v231
    %284 = vmatmul.bf16.gmra.mxu0 %v180
    %v285 = vpop.f32.mrf.mxu0
    %v286 = vadd.f32 %v173, %v285
    %v287 = vpop.f32.mrf.mxu0
    %v288 = vadd.f32 %v173, %v287
    %289 = vdwg.mxu0
    %vm290 = vcmp.gt.f32.partialorder %v272, 0.0
    %vm291 = vcmp.gt.f32.partialorder %v286, 0.0
    %vm292 = vcmp.gt.f32.partialorder %v274, 0.0
    %vm293 = vcmp.gt.f32.partialorder %v288, 0.0
    %v294 = vmul.f32 %v272, 0.2
    %v295 = vmul.f32 %v286, 0.2
    %v296 = vmul.f32 %v274, 0.2
    %v297 = vmul.f32 %v288, 0.2
    %v298 = vsel %vm290, %v272, %v294
    %v299 = vsel %vm291, %v286, %v295
    %v300 = vsel %vm292, %v274, %v296
    %v301 = vsel %vm293, %v288, %v297
    %v302 = vpack.c.bf16 %v300, %v298
    %v303 = vpack.c.bf16 %v301, %v299
    %v304 = vld [vmem:[#allocation8] sm:$0xff]
    %v305 = vld [vmem:[#allocation8 + $0x8] sm:$0xff]
    %v306 = vld [vmem:[#allocation8 + $0x10] sm:$0xff]
    %v307 = vld [vmem:[#allocation8 + $0x18] sm:$0xff]
    %v308 = vld [vmem:[#allocation8 + $0x20] sm:$0xff]
    %v309 = vld [vmem:[#allocation8 + $0x28] sm:$0xff]
    %v310 = vld [vmem:[#allocation8 + $0x30] sm:$0xff]
    %v311 = vld [vmem:[#allocation8 + $0x38] sm:$0xff]
    %v312 = vld [vmem:[#allocation8 + $0x40] sm:$0xff]
    %v313 = vld [vmem:[#allocation8 + $0x48] sm:$0xff]
    %v314 = vld [vmem:[#allocation8 + $0x50] sm:$0xff]
    %v315 = vld [vmem:[#allocation8 + $0x58] sm:$0xff]
    %v316 = vld [vmem:[#allocation8 + $0x60] sm:$0xff]
    %v317 = vld [vmem:[#allocation8 + $0x68] sm:$0xff]
    %v318 = vld [vmem:[#allocation8 + $0x70] sm:$0xff]
    %v319 = vld [vmem:[#allocation8 + $0x78] sm:$0xff]
    %v320 = vld [vmem:[#allocation8 + $0x80] sm:$0xff]
    %v321 = vld [vmem:[#allocation8 + $0x88] sm:$0xff]
    %v322 = vld [vmem:[#allocation8 + $0x90] sm:$0xff]
    %v323 = vld [vmem:[#allocation8 + $0x98] sm:$0xff]
    %v324 = vld [vmem:[#allocation8 + $0xa0] sm:$0xff]
    %v325 = vld [vmem:[#allocation8 + $0xa8] sm:$0xff]
    %v326 = vld [vmem:[#allocation8 + $0xb0] sm:$0xff]
    %v327 = vld [vmem:[#allocation8 + $0xb8] sm:$0xff]
    %v328 = vld [vmem:[#allocation8 + $0xc0] sm:$0xff]
    %v329 = vld [vmem:[#allocation8 + $0xc8] sm:$0xff]
    %v330 = vld [vmem:[#allocation8 + $0xd0] sm:$0xff]
    %v331 = vld [vmem:[#allocation8 + $0xd8] sm:$0xff]
    %v332 = vld [vmem:[#allocation8 + $0xe0] sm:$0xff]
    %v333 = vld [vmem:[#allocation8 + $0xe8] sm:$0xff]
    %v334 = vld [vmem:[#allocation8 + $0xf0] sm:$0xff]
    %v335 = vld [vmem:[#allocation8 + $0xf8] sm:$0xff]
    %v336 = vld [vmem:[#allocation8 + $0x100] sm:$0xff]
    %v337 = vld [vmem:[#allocation8 + $0x108] sm:$0xff]
    %v338 = vld [vmem:[#allocation8 + $0x110] sm:$0xff]
    %v339 = vld [vmem:[#allocation8 + $0x118] sm:$0xff]
    %v340 = vld [vmem:[#allocation8 + $0x120] sm:$0xff]
    %v341 = vld [vmem:[#allocation8 + $0x128] sm:$0xff]
    %v342 = vld [vmem:[#allocation8 + $0x130] sm:$0xff]
    %v343 = vld [vmem:[#allocation8 + $0x138] sm:$0xff]
    %v344 = vld [vmem:[#allocation8 + $0x140] sm:$0xff]
    %v345 = vld [vmem:[#allocation8 + $0x148] sm:$0xff]
    %v346 = vld [vmem:[#allocation8 + $0x150] sm:$0xff]
    %v347 = vld [vmem:[#allocation8 + $0x158] sm:$0xff]
    %v348 = vld [vmem:[#allocation8 + $0x160] sm:$0xff]
    %v349 = vld [vmem:[#allocation8 + $0x168] sm:$0xff]
    %v350 = vld [vmem:[#allocation8 + $0x170] sm:$0xff]
    %v351 = vld [vmem:[#allocation8 + $0x178] sm:$0xff]
    %v352 = vld [vmem:[#allocation8 + $0x180] sm:$0xff]
    %v353 = vld [vmem:[#allocation8 + $0x188] sm:$0xff]
    %v354 = vld [vmem:[#allocation8 + $0x190] sm:$0xff]
    %v355 = vld [vmem:[#allocation8 + $0x198] sm:$0xff]
    %v356 = vld [vmem:[#allocation8 + $0x1a0] sm:$0xff]
    %v357 = vld [vmem:[#allocation8 + $0x1a8] sm:$0xff]
    %v358 = vld [vmem:[#allocation8 + $0x1b0] sm:$0xff]
    %v359 = vld [vmem:[#allocation8 + $0x1b8] sm:$0xff]
    %v360 = vld [vmem:[#allocation8 + $0x1c0] sm:$0xff]
    %v361 = vld [vmem:[#allocation8 + $0x1c8] sm:$0xff]
    %v362 = vld [vmem:[#allocation8 + $0x1d0] sm:$0xff]
    %v363 = vld [vmem:[#allocation8 + $0x1d8] sm:$0xff]
    %v364 = vld [vmem:[#allocation8 + $0x1e0] sm:$0xff]
    %v365 = vld [vmem:[#allocation8 + $0x1e8] sm:$0xff]
    %v366 = vld [vmem:[#allocation8 + $0x1f0] sm:$0xff]
    %v367 = vld [vmem:[#allocation8 + $0x1f8] sm:$0xff]
    %v368 = vld [vmem:[#allocation10] sm:$0xf]
    %v370 = vperm.slane %v368, 0
    %v371 = vperm.slane %v368, 1
    %v372 = vperm.slane %v368, 2
    %v373 = vperm.slane %v368, 3
    %v442 = vunpack.c.l.b16 %v304
    %v443 = vunpack.c.h.b16 %v304
    %v444 = vunpack.c.l.b16 %v305
    %v445 = vunpack.c.h.b16 %v305
    %v446 = vunpack.c.l.b16 %v306
    %v447 = vunpack.c.h.b16 %v306
    %v448 = vunpack.c.l.b16 %v307
    %v449 = vunpack.c.h.b16 %v307
    %v450 = vunpack.c.l.b16 %v308
    %v451 = vunpack.c.h.b16 %v308
    %v452 = vunpack.c.l.b16 %v309
    %v453 = vunpack.c.h.b16 %v309
    %v454 = vunpack.c.l.b16 %v310
    %v455 = vunpack.c.h.b16 %v310
    %v456 = vunpack.c.l.b16 %v311
    %v457 = vunpack.c.h.b16 %v311
    %v458 = vunpack.c.l.b16 %v312
    %v459 = vunpack.c.h.b16 %v312
    %v460 = vunpack.c.l.b16 %v313
    %v461 = vunpack.c.h.b16 %v313
    %v462 = vunpack.c.l.b16 %v314
    %v463 = vunpack.c.h.b16 %v314
    %v464 = vunpack.c.l.b16 %v315
    %v465 = vunpack.c.h.b16 %v315
    %v466 = vunpack.c.l.b16 %v316
    %v467 = vunpack.c.h.b16 %v316
    %v468 = vunpack.c.l.b16 %v317
    %v469 = vunpack.c.h.b16 %v317
    %v470 = vunpack.c.l.b16 %v318
    %v471 = vunpack.c.h.b16 %v318
    %v472 = vunpack.c.l.b16 %v319
    %v473 = vunpack.c.h.b16 %v319
    %v474 = vunpack.c.l.b16 %v320
    %v475 = vunpack.c.h.b16 %v320
    %v476 = vunpack.c.l.b16 %v321
    %v477 = vunpack.c.h.b16 %v321
    %v478 = vunpack.c.l.b16 %v322
    %v479 = vunpack.c.h.b16 %v322
    %v480 = vunpack.c.l.b16 %v323
    %v481 = vunpack.c.h.b16 %v323
    %v482 = vunpack.c.l.b16 %v324
    %v483 = vunpack.c.h.b16 %v324
    %v484 = vunpack.c.l.b16 %v325
    %v485 = vunpack.c.h.b16 %v325
    %v486 = vunpack.c.l.b16 %v326
    %v487 = vunpack.c.h.b16 %v326
    %v488 = vunpack.c.l.b16 %v327
    %v489 = vunpack.c.h.b16 %v327
    %v490 = vunpack.c.l.b16 %v328
    %v491 = vunpack.c.h.b16 %v328
    %v492 = vunpack.c.l.b16 %v329
    %v493 = vunpack.c.h.b16 %v329
    %v494 = vunpack.c.l.b16 %v330
    %v495 = vunpack.c.h.b16 %v330
    %v496 = vunpack.c.l.b16 %v331
    %v497 = vunpack.c.h.b16 %v331
    %v498 = vunpack.c.l.b16 %v332
    %v499 = vunpack.c.h.b16 %v332
    %v500 = vunpack.c.l.b16 %v333
    %v501 = vunpack.c.h.b16 %v333
    %v502 = vunpack.c.l.b16 %v334
    %v503 = vunpack.c.h.b16 %v334
    %v504 = vunpack.c.l.b16 %v335
    %v505 = vunpack.c.h.b16 %v335
    %v506 = vunpack.c.l.b16 %v336
    %v507 = vunpack.c.h.b16 %v336
    %v508 = vunpack.c.l.b16 %v337
    %v509 = vunpack.c.h.b16 %v337
    %v510 = vunpack.c.l.b16 %v338
    %v511 = vunpack.c.h.b16 %v338
    %v512 = vunpack.c.l.b16 %v339
    %v513 = vunpack.c.h.b16 %v339
    %v514 = vunpack.c.l.b16 %v340
    %v515 = vunpack.c.h.b16 %v340
    %v516 = vunpack.c.l.b16 %v341
    %v517 = vunpack.c.h.b16 %v341
    %v518 = vunpack.c.l.b16 %v342
    %v519 = vunpack.c.h.b16 %v342
    %v520 = vunpack.c.l.b16 %v343
    %v521 = vunpack.c.h.b16 %v343
    %v522 = vunpack.c.l.b16 %v344
    %v523 = vunpack.c.h.b16 %v344
    %v524 = vunpack.c.l.b16 %v345
    %v525 = vunpack.c.h.b16 %v345
    %v526 = vunpack.c.l.b16 %v346
    %v527 = vunpack.c.h.b16 %v346
    %v528 = vunpack.c.l.b16 %v347
    %v529 = vunpack.c.h.b16 %v347
    %v530 = vunpack.c.l.b16 %v348
    %v531 = vunpack.c.h.b16 %v348
    %v532 = vunpack.c.l.b16 %v349
    %v533 = vunpack.c.h.b16 %v349
    %v534 = vunpack.c.l.b16 %v350
    %v535 = vunpack.c.h.b16 %v350
    %v536 = vunpack.c.l.b16 %v351
    %v537 = vunpack.c.h.b16 %v351
    %v538 = vunpack.c.l.b16 %v352
    %v539 = vunpack.c.h.b16 %v352
    %v540 = vunpack.c.l.b16 %v353
    %v541 = vunpack.c.h.b16 %v353
    %v542 = vunpack.c.l.b16 %v354
    %v543 = vunpack.c.h.b16 %v354
    %v544 = vunpack.c.l.b16 %v355
    %v545 = vunpack.c.h.b16 %v355
    %v546 = vunpack.c.l.b16 %v356
    %v547 = vunpack.c.h.b16 %v356
    %v548 = vunpack.c.l.b16 %v357
    %v549 = vunpack.c.h.b16 %v357
    %v550 = vunpack.c.l.b16 %v358
    %v551 = vunpack.c.h.b16 %v358
    %v552 = vunpack.c.l.b16 %v359
    %v553 = vunpack.c.h.b16 %v359
    %v554 = vunpack.c.l.b16 %v360
    %v555 = vunpack.c.h.b16 %v360
    %v556 = vunpack.c.l.b16 %v361
    %v557 = vunpack.c.h.b16 %v361
    %v558 = vunpack.c.l.b16 %v362
    %v559 = vunpack.c.h.b16 %v362
    %v560 = vunpack.c.l.b16 %v363
    %v561 = vunpack.c.h.b16 %v363
    %v562 = vunpack.c.l.b16 %v364
    %v563 = vunpack.c.h.b16 %v364
    %v564 = vunpack.c.l.b16 %v365
    %v565 = vunpack.c.h.b16 %v365
    %v566 = vunpack.c.l.b16 %v366
    %v567 = vunpack.c.h.b16 %v366
    %v568 = vunpack.c.l.b16 %v367
    %v569 = vunpack.c.h.b16 %v367
    %v570 = vpack.c.b16 %v446, %v442
    %v571 = vpack.c.b16 %v447, %v443
    %v572 = vpack.c.b16 %v448, %v444
    %v573 = vpack.c.b16 %v449, %v445
    %v574 = vpack.c.b16 %v454, %v450
    %v575 = vpack.c.b16 %v455, %v451
    %v576 = vpack.c.b16 %v456, %v452
    %v577 = vpack.c.b16 %v457, %v453
    %v578 = vpack.c.b16 %v462, %v458
    %v579 = vpack.c.b16 %v463, %v459
    %v580 = vpack.c.b16 %v464, %v460
    %v581 = vpack.c.b16 %v465, %v461
    %v582 = vpack.c.b16 %v470, %v466
    %v583 = vpack.c.b16 %v471, %v467
    %v584 = vpack.c.b16 %v472, %v468
    %v585 = vpack.c.b16 %v473, %v469
    %v586 = vpack.c.b16 %v478, %v474
    %v587 = vpack.c.b16 %v479, %v475
    %v588 = vpack.c.b16 %v480, %v476
    %v589 = vpack.c.b16 %v481, %v477
    %v590 = vpack.c.b16 %v486, %v482
    %v591 = vpack.c.b16 %v487, %v483
    %v592 = vpack.c.b16 %v488, %v484
    %v593 = vpack.c.b16 %v489, %v485
    %v594 = vpack.c.b16 %v494, %v490
    %v595 = vpack.c.b16 %v495, %v491
    %v596 = vpack.c.b16 %v496, %v492
    %v597 = vpack.c.b16 %v497, %v493
    %v598 = vpack.c.b16 %v502, %v498
    %v599 = vpack.c.b16 %v503, %v499
    %v600 = vpack.c.b16 %v504, %v500
    %v601 = vpack.c.b16 %v505, %v501
    %v602 = vpack.c.b16 %v510, %v506
    %v603 = vpack.c.b16 %v511, %v507
    %v604 = vpack.c.b16 %v512, %v508
    %v605 = vpack.c.b16 %v513, %v509
    %v606 = vpack.c.b16 %v518, %v514
    %v607 = vpack.c.b16 %v519, %v515
    %v608 = vpack.c.b16 %v520, %v516
    %v609 = vpack.c.b16 %v521, %v517
    %v610 = vpack.c.b16 %v526, %v522
    %v611 = vpack.c.b16 %v527, %v523
    %v612 = vpack.c.b16 %v528, %v524
    %v613 = vpack.c.b16 %v529, %v525
    %v614 = vpack.c.b16 %v534, %v530
    %v615 = vpack.c.b16 %v535, %v531
    %v616 = vpack.c.b16 %v536, %v532
    %v617 = vpack.c.b16 %v537, %v533
    %v618 = vpack.c.b16 %v542, %v538
    %v619 = vpack.c.b16 %v543, %v539
    %v620 = vpack.c.b16 %v544, %v540
    %v621 = vpack.c.b16 %v545, %v541
    %v622 = vpack.c.b16 %v550, %v546
    %v623 = vpack.c.b16 %v551, %v547
    %v624 = vpack.c.b16 %v552, %v548
    %v625 = vpack.c.b16 %v553, %v549
    %v626 = vpack.c.b16 %v558, %v554
    %v627 = vpack.c.b16 %v559, %v555
    %v628 = vpack.c.b16 %v560, %v556
    %v629 = vpack.c.b16 %v561, %v557
    %v630 = vpack.c.b16 %v566, %v562
    %v631 = vpack.c.b16 %v567, %v563
    %v632 = vpack.c.b16 %v568, %v564
    %v633 = vpack.c.b16 %v569, %v565
    %698 = vmatpush.bf16.msra.mxu0 %v598
    %699 = vmatpush.bf16.msra.mxu0 %v594
    %700 = vmatpush.bf16.msra.mxu0 %v590
    %701 = vmatpush.bf16.msra.mxu0 %v586
    %702 = vmatpush.bf16.msra.mxu0 %v582
    %703 = vmatpush.bf16.msra.mxu0 %v578
    %704 = vmatpush.bf16.msra.mxu0 %v574
    %705 = vmatpush.bf16.msra.mxu0 %v570
    %706 = vmatmul.bf16.gmra.mxu0 %v302
    %v707 = vpop.f32.mrf.mxu0
    %v708 = vadd.f32 %v370, %v707
    %v709 = vpop.f32.mrf.mxu0
    %v710 = vadd.f32 %v370, %v709
    %711 = vdwg.mxu0
    %712 = vmatpush.bf16.msra.mxu0 %v630
    %713 = vmatpush.bf16.msra.mxu0 %v626
    %714 = vmatpush.bf16.msra.mxu0 %v622
    %715 = vmatpush.bf16.msra.mxu0 %v618
    %716 = vmatpush.bf16.msra.mxu0 %v614
    %717 = vmatpush.bf16.msra.mxu0 %v610
    %718 = vmatpush.bf16.msra.mxu0 %v606
    %719 = vmatpush.bf16.msra.mxu0 %v602
    %720 = vmatmul.bf16.gmra.mxu0 %v303
    %v721 = vpop.f32.mrf.mxu0
    %v722 = vadd.f32 %v708, %v721
    %v723 = vpop.f32.mrf.mxu0
    %v724 = vadd.f32 %v710, %v723
    %725 = vdwg.mxu0
    %726 = vmatpush.bf16.msra.mxu0 %v599
    %727 = vmatpush.bf16.msra.mxu0 %v595
    %728 = vmatpush.bf16.msra.mxu0 %v591
    %729 = vmatpush.bf16.msra.mxu0 %v587
    %730 = vmatpush.bf16.msra.mxu0 %v583
    %731 = vmatpush.bf16.msra.mxu0 %v579
    %732 = vmatpush.bf16.msra.mxu0 %v575
    %733 = vmatpush.bf16.msra.mxu0 %v571
    %734 = vmatmul.bf16.gmra.mxu0 %v302
    %v735 = vpop.f32.mrf.mxu0
    %v736 = vadd.f32 %v371, %v735
    %v737 = vpop.f32.mrf.mxu0
    %v738 = vadd.f32 %v371, %v737
    %739 = vdwg.mxu0
    %740 = vmatpush.bf16.msra.mxu0 %v631
    %741 = vmatpush.bf16.msra.mxu0 %v627
    %742 = vmatpush.bf16.msra.mxu0 %v623
    %743 = vmatpush.bf16.msra.mxu0 %v619
    %744 = vmatpush.bf16.msra.mxu0 %v615
    %745 = vmatpush.bf16.msra.mxu0 %v611
    %746 = vmatpush.bf16.msra.mxu0 %v607
    %747 = vmatpush.bf16.msra.mxu0 %v603
    %748 = vmatmul.bf16.gmra.mxu0 %v303
    %v749 = vpop.f32.mrf.mxu0
    %v750 = vadd.f32 %v736, %v749
    %v751 = vpop.f32.mrf.mxu0
    %v752 = vadd.f32 %v738, %v751
    %753 = vdwg.mxu0
    %754 = vmatpush.bf16.msra.mxu0 %v600
    %755 = vmatpush.bf16.msra.mxu0 %v596
    %756 = vmatpush.bf16.msra.mxu0 %v592
    %757 = vmatpush.bf16.msra.mxu0 %v588
    %758 = vmatpush.bf16.msra.mxu0 %v584
    %759 = vmatpush.bf16.msra.mxu0 %v580
    %760 = vmatpush.bf16.msra.mxu0 %v576
    %761 = vmatpush.bf16.msra.mxu0 %v572
    %762 = vmatmul.bf16.gmra.mxu0 %v302
    %v763 = vpop.f32.mrf.mxu0
    %v764 = vadd.f32 %v372, %v763
    %v765 = vpop.f32.mrf.mxu0
    %v766 = vadd.f32 %v372, %v765
    %767 = vdwg.mxu0
    %768 = vmatpush.bf16.msra.mxu0 %v632
    %769 = vmatpush.bf16.msra.mxu0 %v628
    %770 = vmatpush.bf16.msra.mxu0 %v624
    %771 = vmatpush.bf16.msra.mxu0 %v620
    %772 = vmatpush.bf16.msra.mxu0 %v616
    %773 = vmatpush.bf16.msra.mxu0 %v612
    %774 = vmatpush.bf16.msra.mxu0 %v608
    %775 = vmatpush.bf16.msra.mxu0 %v604
    %776 = vmatmul.bf16.gmra.mxu0 %v303
    %v777 = vpop.f32.mrf.mxu0
    %v778 = vadd.f32 %v764, %v777
    %v779 = vpop.f32.mrf.mxu0
    %v780 = vadd.f32 %v766, %v779
    %781 = vdwg.mxu0
    %782 = vmatpush.bf16.msra.mxu0 %v601
    %783 = vmatpush.bf16.msra.mxu0 %v597
    %784 = vmatpush.bf16.msra.mxu0 %v593
    %785 = vmatpush.bf16.msra.mxu0 %v589
    %786 = vmatpush.bf16.msra.mxu0 %v585
    %787 = vmatpush.bf16.msra.mxu0 %v581
    %788 = vmatpush.bf16.msra.mxu0 %v577
    %789 = vmatpush.bf16.msra.mxu0 %v573
    %790 = vmatmul.bf16.gmra.mxu0 %v302
    %v791 = vpop.f32.mrf.mxu0
    %v792 = vadd.f32 %v373, %v791
    %v793 = vpop.f32.mrf.mxu0
    %v794 = vadd.f32 %v373, %v793
    %795 = vdwg.mxu0
    %796 = vmatpush.bf16.msra.mxu0 %v633
    %797 = vmatpush.bf16.msra.mxu0 %v629
    %798 = vmatpush.bf16.msra.mxu0 %v625
    %799 = vmatpush.bf16.msra.mxu0 %v621
    %800 = vmatpush.bf16.msra.mxu0 %v617
    %801 = vmatpush.bf16.msra.mxu0 %v613
    %802 = vmatpush.bf16.msra.mxu0 %v609
    %803 = vmatpush.bf16.msra.mxu0 %v605
    %804 = vmatmul.bf16.gmra.mxu0 %v303
    %v805 = vpop.f32.mrf.mxu0
    %v806 = vadd.f32 %v792, %v805
    %v807 = vpop.f32.mrf.mxu0
    %v808 = vadd.f32 %v794, %v807
    %809 = vdwg.mxu0
    %vm810 = vcmp.gt.f32.partialorder %v722, 0.0
    %vm811 = vcmp.gt.f32.partialorder %v750, 0.0
    %vm812 = vcmp.gt.f32.partialorder %v778, 0.0
    %vm813 = vcmp.gt.f32.partialorder %v806, 0.0
    %vm814 = vcmp.gt.f32.partialorder %v724, 0.0
    %vm815 = vcmp.gt.f32.partialorder %v752, 0.0
    %vm816 = vcmp.gt.f32.partialorder %v780, 0.0
    %vm817 = vcmp.gt.f32.partialorder %v808, 0.0
    %v818 = vmul.f32 %v722, 0.2
    %v819 = vmul.f32 %v750, 0.2
    %v820 = vmul.f32 %v778, 0.2
    %v821 = vmul.f32 %v806, 0.2
    %v822 = vmul.f32 %v724, 0.2
    %v823 = vmul.f32 %v752, 0.2
    %v824 = vmul.f32 %v780, 0.2
    %v825 = vmul.f32 %v808, 0.2
    %v826 = vsel %vm810, %v722, %v818
    %v827 = vsel %vm811, %v750, %v819
    %v828 = vsel %vm812, %v778, %v820
    %v829 = vsel %vm813, %v806, %v821
    %v830 = vsel %vm814, %v724, %v822
    %v831 = vsel %vm815, %v752, %v823
    %v832 = vsel %vm816, %v780, %v824
    %v833 = vsel %vm817, %v808, %v825
    %v834 = vpack.c.bf16 %v830, %v826
    %v835 = vpack.c.bf16 %v831, %v827
    %v836 = vpack.c.bf16 %v832, %v828
    %v837 = vpack.c.bf16 %v833, %v829
    %v838 = vld [vmem:[#allocation11] sm:$0xff]
    %v839 = vld [vmem:[#allocation11 + $0x8] sm:$0xff]
    %v840 = vld [vmem:[#allocation11 + $0x10] sm:$0xff]
    %v841 = vld [vmem:[#allocation11 + $0x18] sm:$0xff]
    %v842 = vld [vmem:[#allocation11 + $0x20] sm:$0xff]
    %v843 = vld [vmem:[#allocation11 + $0x28] sm:$0xff]
    %v844 = vld [vmem:[#allocation11 + $0x30] sm:$0xff]
    %v845 = vld [vmem:[#allocation11 + $0x38] sm:$0xff]
    %v846 = vld [vmem:[#allocation11 + $0x40] sm:$0xff]
    %v847 = vld [vmem:[#allocation11 + $0x48] sm:$0xff]
    %v848 = vld [vmem:[#allocation11 + $0x50] sm:$0xff]
    %v849 = vld [vmem:[#allocation11 + $0x58] sm:$0xff]
    %v850 = vld [vmem:[#allocation11 + $0x60] sm:$0xff]
    %v851 = vld [vmem:[#allocation11 + $0x68] sm:$0xff]
    %v852 = vld [vmem:[#allocation11 + $0x70] sm:$0xff]
    %v853 = vld [vmem:[#allocation11 + $0x78] sm:$0xff]
    %v854 = vld [vmem:[#allocation11 + $0x80] sm:$0xff]
    %v855 = vld [vmem:[#allocation11 + $0x88] sm:$0xff]
    %v856 = vld [vmem:[#allocation11 + $0x90] sm:$0xff]
    %v857 = vld [vmem:[#allocation11 + $0x98] sm:$0xff]
    %v858 = vld [vmem:[#allocation11 + $0xa0] sm:$0xff]
    %v859 = vld [vmem:[#allocation11 + $0xa8] sm:$0xff]
    %v860 = vld [vmem:[#allocation11 + $0xb0] sm:$0xff]
    %v861 = vld [vmem:[#allocation11 + $0xb8] sm:$0xff]
    %v862 = vld [vmem:[#allocation11 + $0xc0] sm:$0xff]
    %v863 = vld [vmem:[#allocation11 + $0xc8] sm:$0xff]
    %v864 = vld [vmem:[#allocation11 + $0xd0] sm:$0xff]
    %v865 = vld [vmem:[#allocation11 + $0xd8] sm:$0xff]
    %v866 = vld [vmem:[#allocation11 + $0xe0] sm:$0xff]
    %v867 = vld [vmem:[#allocation11 + $0xe8] sm:$0xff]
    %v868 = vld [vmem:[#allocation11 + $0xf0] sm:$0xff]
    %v869 = vld [vmem:[#allocation11 + $0xf8] sm:$0xff]
    %v870 = vld [vmem:[#allocation11 + $0x100] sm:$0xff]
    %v871 = vld [vmem:[#allocation11 + $0x108] sm:$0xff]
    %v872 = vld [vmem:[#allocation11 + $0x110] sm:$0xff]
    %v873 = vld [vmem:[#allocation11 + $0x118] sm:$0xff]
    %v874 = vld [vmem:[#allocation11 + $0x120] sm:$0xff]
    %v875 = vld [vmem:[#allocation11 + $0x128] sm:$0xff]
    %v876 = vld [vmem:[#allocation11 + $0x130] sm:$0xff]
    %v877 = vld [vmem:[#allocation11 + $0x138] sm:$0xff]
    %v878 = vld [vmem:[#allocation11 + $0x140] sm:$0xff]
    %v879 = vld [vmem:[#allocation11 + $0x148] sm:$0xff]
    %v880 = vld [vmem:[#allocation11 + $0x150] sm:$0xff]
    %v881 = vld [vmem:[#allocation11 + $0x158] sm:$0xff]
    %v882 = vld [vmem:[#allocation11 + $0x160] sm:$0xff]
    %v883 = vld [vmem:[#allocation11 + $0x168] sm:$0xff]
    %v884 = vld [vmem:[#allocation11 + $0x170] sm:$0xff]
    %v885 = vld [vmem:[#allocation11 + $0x178] sm:$0xff]
    %v886 = vld [vmem:[#allocation11 + $0x180] sm:$0xff]
    %v887 = vld [vmem:[#allocation11 + $0x188] sm:$0xff]
    %v888 = vld [vmem:[#allocation11 + $0x190] sm:$0xff]
    %v889 = vld [vmem:[#allocation11 + $0x198] sm:$0xff]
    %v890 = vld [vmem:[#allocation11 + $0x1a0] sm:$0xff]
    %v891 = vld [vmem:[#allocation11 + $0x1a8] sm:$0xff]
    %v892 = vld [vmem:[#allocation11 + $0x1b0] sm:$0xff]
    %v893 = vld [vmem:[#allocation11 + $0x1b8] sm:$0xff]
    %v894 = vld [vmem:[#allocation11 + $0x1c0] sm:$0xff]
    %v895 = vld [vmem:[#allocation11 + $0x1c8] sm:$0xff]
    %v896 = vld [vmem:[#allocation11 + $0x1d0] sm:$0xff]
    %v897 = vld [vmem:[#allocation11 + $0x1d8] sm:$0xff]
    %v898 = vld [vmem:[#allocation11 + $0x1e0] sm:$0xff]
    %v899 = vld [vmem:[#allocation11 + $0x1e8] sm:$0xff]
    %v900 = vld [vmem:[#allocation11 + $0x1f0] sm:$0xff]
    %v901 = vld [vmem:[#allocation11 + $0x1f8] sm:$0xff]
    %v902 = vld [vmem:[#allocation11 + $0x200] sm:$0xff]
    %v903 = vld [vmem:[#allocation11 + $0x208] sm:$0xff]
    %v904 = vld [vmem:[#allocation11 + $0x210] sm:$0xff]
    %v905 = vld [vmem:[#allocation11 + $0x218] sm:$0xff]
    %v906 = vld [vmem:[#allocation11 + $0x220] sm:$0xff]
    %v907 = vld [vmem:[#allocation11 + $0x228] sm:$0xff]
    %v908 = vld [vmem:[#allocation11 + $0x230] sm:$0xff]
    %v909 = vld [vmem:[#allocation11 + $0x238] sm:$0xff]
    %v910 = vld [vmem:[#allocation11 + $0x240] sm:$0xff]
    %v911 = vld [vmem:[#allocation11 + $0x248] sm:$0xff]
    %v912 = vld [vmem:[#allocation11 + $0x250] sm:$0xff]
    %v913 = vld [vmem:[#allocation11 + $0x258] sm:$0xff]
    %v914 = vld [vmem:[#allocation11 + $0x260] sm:$0xff]
    %v915 = vld [vmem:[#allocation11 + $0x268] sm:$0xff]
    %v916 = vld [vmem:[#allocation11 + $0x270] sm:$0xff]
    %v917 = vld [vmem:[#allocation11 + $0x278] sm:$0xff]
    %v918 = vld [vmem:[#allocation11 + $0x280] sm:$0xff]
    %v919 = vld [vmem:[#allocation11 + $0x288] sm:$0xff]
    %v920 = vld [vmem:[#allocation11 + $0x290] sm:$0xff]
    %v921 = vld [vmem:[#allocation11 + $0x298] sm:$0xff]
    %v922 = vld [vmem:[#allocation11 + $0x2a0] sm:$0xff]
    %v923 = vld [vmem:[#allocation11 + $0x2a8] sm:$0xff]
    %v924 = vld [vmem:[#allocation11 + $0x2b0] sm:$0xff]
    %v925 = vld [vmem:[#allocation11 + $0x2b8] sm:$0xff]
    %v926 = vld [vmem:[#allocation11 + $0x2c0] sm:$0xff]
    %v927 = vld [vmem:[#allocation11 + $0x2c8] sm:$0xff]
    %v928 = vld [vmem:[#allocation11 + $0x2d0] sm:$0xff]
    %v929 = vld [vmem:[#allocation11 + $0x2d8] sm:$0xff]
    %v930 = vld [vmem:[#allocation11 + $0x2e0] sm:$0xff]
    %v931 = vld [vmem:[#allocation11 + $0x2e8] sm:$0xff]
    %v932 = vld [vmem:[#allocation11 + $0x2f0] sm:$0xff]
    %v933 = vld [vmem:[#allocation11 + $0x2f8] sm:$0xff]
    %v934 = vld [vmem:[#allocation11 + $0x300] sm:$0xff]
    %v935 = vld [vmem:[#allocation11 + $0x308] sm:$0xff]
    %v936 = vld [vmem:[#allocation11 + $0x310] sm:$0xff]
    %v937 = vld [vmem:[#allocation11 + $0x318] sm:$0xff]
    %v938 = vld [vmem:[#allocation11 + $0x320] sm:$0xff]
    %v939 = vld [vmem:[#allocation11 + $0x328] sm:$0xff]
    %v940 = vld [vmem:[#allocation11 + $0x330] sm:$0xff]
    %v941 = vld [vmem:[#allocation11 + $0x338] sm:$0xff]
    %v942 = vld [vmem:[#allocation11 + $0x340] sm:$0xff]
    %v943 = vld [vmem:[#allocation11 + $0x348] sm:$0xff]
    %v944 = vld [vmem:[#allocation11 + $0x350] sm:$0xff]
    %v945 = vld [vmem:[#allocation11 + $0x358] sm:$0xff]
    %v946 = vld [vmem:[#allocation11 + $0x360] sm:$0xff]
    %v947 = vld [vmem:[#allocation11 + $0x368] sm:$0xff]
    %v948 = vld [vmem:[#allocation11 + $0x370] sm:$0xff]
    %v949 = vld [vmem:[#allocation11 + $0x378] sm:$0xff]
    %v950 = vld [vmem:[#allocation11 + $0x380] sm:$0xff]
    %v951 = vld [vmem:[#allocation11 + $0x388] sm:$0xff]
    %v952 = vld [vmem:[#allocation11 + $0x390] sm:$0xff]
    %v953 = vld [vmem:[#allocation11 + $0x398] sm:$0xff]
    %v954 = vld [vmem:[#allocation11 + $0x3a0] sm:$0xff]
    %v955 = vld [vmem:[#allocation11 + $0x3a8] sm:$0xff]
    %v956 = vld [vmem:[#allocation11 + $0x3b0] sm:$0xff]
    %v957 = vld [vmem:[#allocation11 + $0x3b8] sm:$0xff]
    %v958 = vld [vmem:[#allocation11 + $0x3c0] sm:$0xff]
    %v959 = vld [vmem:[#allocation11 + $0x3c8] sm:$0xff]
    %v960 = vld [vmem:[#allocation11 + $0x3d0] sm:$0xff]
    %v961 = vld [vmem:[#allocation11 + $0x3d8] sm:$0xff]
    %v962 = vld [vmem:[#allocation11 + $0x3e0] sm:$0xff]
    %v963 = vld [vmem:[#allocation11 + $0x3e8] sm:$0xff]
    %v964 = vld [vmem:[#allocation11 + $0x3f0] sm:$0xff]
    %v965 = vld [vmem:[#allocation11 + $0x3f8] sm:$0xff]
    %v966 = vld [vmem:[#allocation11 + $0x400] sm:$0xff]
    %v967 = vld [vmem:[#allocation11 + $0x408] sm:$0xff]
    %v968 = vld [vmem:[#allocation11 + $0x410] sm:$0xff]
    %v969 = vld [vmem:[#allocation11 + $0x418] sm:$0xff]
    %v970 = vld [vmem:[#allocation11 + $0x420] sm:$0xff]
    %v971 = vld [vmem:[#allocation11 + $0x428] sm:$0xff]
    %v972 = vld [vmem:[#allocation11 + $0x430] sm:$0xff]
    %v973 = vld [vmem:[#allocation11 + $0x438] sm:$0xff]
    %v974 = vld [vmem:[#allocation11 + $0x440] sm:$0xff]
    %v975 = vld [vmem:[#allocation11 + $0x448] sm:$0xff]
    %v976 = vld [vmem:[#allocation11 + $0x450] sm:$0xff]
    %v977 = vld [vmem:[#allocation11 + $0x458] sm:$0xff]
    %v978 = vld [vmem:[#allocation11 + $0x460] sm:$0xff]
    %v979 = vld [vmem:[#allocation11 + $0x468] sm:$0xff]
    %v980 = vld [vmem:[#allocation11 + $0x470] sm:$0xff]
    %v981 = vld [vmem:[#allocation11 + $0x478] sm:$0xff]
    %v982 = vld [vmem:[#allocation11 + $0x480] sm:$0xff]
    %v983 = vld [vmem:[#allocation11 + $0x488] sm:$0xff]
    %v984 = vld [vmem:[#allocation11 + $0x490] sm:$0xff]
    %v985 = vld [vmem:[#allocation11 + $0x498] sm:$0xff]
    %v986 = vld [vmem:[#allocation11 + $0x4a0] sm:$0xff]
    %v987 = vld [vmem:[#allocation11 + $0x4a8] sm:$0xff]
    %v988 = vld [vmem:[#allocation11 + $0x4b0] sm:$0xff]
    %v989 = vld [vmem:[#allocation11 + $0x4b8] sm:$0xff]
    %v990 = vld [vmem:[#allocation11 + $0x4c0] sm:$0xff]
    %v991 = vld [vmem:[#allocation11 + $0x4c8] sm:$0xff]
    %v992 = vld [vmem:[#allocation11 + $0x4d0] sm:$0xff]
    %v993 = vld [vmem:[#allocation11 + $0x4d8] sm:$0xff]
    %v994 = vld [vmem:[#allocation11 + $0x4e0] sm:$0xff]
    %v995 = vld [vmem:[#allocation11 + $0x4e8] sm:$0xff]
    %v996 = vld [vmem:[#allocation11 + $0x4f0] sm:$0xff]
    %v997 = vld [vmem:[#allocation11 + $0x4f8] sm:$0xff]
    %v998 = vld [vmem:[#allocation11 + $0x500] sm:$0xff]
    %v999 = vld [vmem:[#allocation11 + $0x508] sm:$0xff]
    %v1000 = vld [vmem:[#allocation11 + $0x510] sm:$0xff]
    %v1001 = vld [vmem:[#allocation11 + $0x518] sm:$0xff]
    %v1002 = vld [vmem:[#allocation11 + $0x520] sm:$0xff]
    %v1003 = vld [vmem:[#allocation11 + $0x528] sm:$0xff]
    %v1004 = vld [vmem:[#allocation11 + $0x530] sm:$0xff]
    %v1005 = vld [vmem:[#allocation11 + $0x538] sm:$0xff]
    %v1006 = vld [vmem:[#allocation11 + $0x540] sm:$0xff]
    %v1007 = vld [vmem:[#allocation11 + $0x548] sm:$0xff]
    %v1008 = vld [vmem:[#allocation11 + $0x550] sm:$0xff]
    %v1009 = vld [vmem:[#allocation11 + $0x558] sm:$0xff]
    %v1010 = vld [vmem:[#allocation11 + $0x560] sm:$0xff]
    %v1011 = vld [vmem:[#allocation11 + $0x568] sm:$0xff]
    %v1012 = vld [vmem:[#allocation11 + $0x570] sm:$0xff]
    %v1013 = vld [vmem:[#allocation11 + $0x578] sm:$0xff]
    %v1014 = vld [vmem:[#allocation11 + $0x580] sm:$0xff]
    %v1015 = vld [vmem:[#allocation11 + $0x588] sm:$0xff]
    %v1016 = vld [vmem:[#allocation11 + $0x590] sm:$0xff]
    %v1017 = vld [vmem:[#allocation11 + $0x598] sm:$0xff]
    %v1018 = vld [vmem:[#allocation11 + $0x5a0] sm:$0xff]
    %v1019 = vld [vmem:[#allocation11 + $0x5a8] sm:$0xff]
    %v1020 = vld [vmem:[#allocation11 + $0x5b0] sm:$0xff]
    %v1021 = vld [vmem:[#allocation11 + $0x5b8] sm:$0xff]
    %v1022 = vld [vmem:[#allocation11 + $0x5c0] sm:$0xff]
    %v1023 = vld [vmem:[#allocation11 + $0x5c8] sm:$0xff]
    %v1024 = vld [vmem:[#allocation11 + $0x5d0] sm:$0xff]
    %v1025 = vld [vmem:[#allocation11 + $0x5d8] sm:$0xff]
    %v1026 = vld [vmem:[#allocation11 + $0x5e0] sm:$0xff]
    %v1027 = vld [vmem:[#allocation11 + $0x5e8] sm:$0xff]
    %v1028 = vld [vmem:[#allocation11 + $0x5f0] sm:$0xff]
    %v1029 = vld [vmem:[#allocation11 + $0x5f8] sm:$0xff]
    %v1030 = vld [vmem:[#allocation11 + $0x600] sm:$0xff]
    %v1031 = vld [vmem:[#allocation11 + $0x608] sm:$0xff]
    %v1032 = vld [vmem:[#allocation11 + $0x610] sm:$0xff]
    %v1033 = vld [vmem:[#allocation11 + $0x618] sm:$0xff]
    %v1034 = vld [vmem:[#allocation11 + $0x620] sm:$0xff]
    %v1035 = vld [vmem:[#allocation11 + $0x628] sm:$0xff]
    %v1036 = vld [vmem:[#allocation11 + $0x630] sm:$0xff]
    %v1037 = vld [vmem:[#allocation11 + $0x638] sm:$0xff]
    %v1038 = vld [vmem:[#allocation11 + $0x640] sm:$0xff]
    %v1039 = vld [vmem:[#allocation11 + $0x648] sm:$0xff]
    %v1040 = vld [vmem:[#allocation11 + $0x650] sm:$0xff]
    %v1041 = vld [vmem:[#allocation11 + $0x658] sm:$0xff]
    %v1042 = vld [vmem:[#allocation11 + $0x660] sm:$0xff]
    %v1043 = vld [vmem:[#allocation11 + $0x668] sm:$0xff]
    %v1044 = vld [vmem:[#allocation11 + $0x670] sm:$0xff]
    %v1045 = vld [vmem:[#allocation11 + $0x678] sm:$0xff]
    %v1046 = vld [vmem:[#allocation11 + $0x680] sm:$0xff]
    %v1047 = vld [vmem:[#allocation11 + $0x688] sm:$0xff]
    %v1048 = vld [vmem:[#allocation11 + $0x690] sm:$0xff]
    %v1049 = vld [vmem:[#allocation11 + $0x698] sm:$0xff]
    %v1050 = vld [vmem:[#allocation11 + $0x6a0] sm:$0xff]
    %v1051 = vld [vmem:[#allocation11 + $0x6a8] sm:$0xff]
    %v1052 = vld [vmem:[#allocation11 + $0x6b0] sm:$0xff]
    %v1053 = vld [vmem:[#allocation11 + $0x6b8] sm:$0xff]
    %v1054 = vld [vmem:[#allocation11 + $0x6c0] sm:$0xff]
    %v1055 = vld [vmem:[#allocation11 + $0x6c8] sm:$0xff]
    %v1056 = vld [vmem:[#allocation11 + $0x6d0] sm:$0xff]
    %v1057 = vld [vmem:[#allocation11 + $0x6d8] sm:$0xff]
    %v1058 = vld [vmem:[#allocation11 + $0x6e0] sm:$0xff]
    %v1059 = vld [vmem:[#allocation11 + $0x6e8] sm:$0xff]
    %v1060 = vld [vmem:[#allocation11 + $0x6f0] sm:$0xff]
    %v1061 = vld [vmem:[#allocation11 + $0x6f8] sm:$0xff]
    %v1062 = vld [vmem:[#allocation11 + $0x700] sm:$0xff]
    %v1063 = vld [vmem:[#allocation11 + $0x708] sm:$0xff]
    %v1064 = vld [vmem:[#allocation11 + $0x710] sm:$0xff]
    %v1065 = vld [vmem:[#allocation11 + $0x718] sm:$0xff]
    %v1066 = vld [vmem:[#allocation11 + $0x720] sm:$0xff]
    %v1067 = vld [vmem:[#allocation11 + $0x728] sm:$0xff]
    %v1068 = vld [vmem:[#allocation11 + $0x730] sm:$0xff]
    %v1069 = vld [vmem:[#allocation11 + $0x738] sm:$0xff]
    %v1070 = vld [vmem:[#allocation11 + $0x740] sm:$0xff]
    %v1071 = vld [vmem:[#allocation11 + $0x748] sm:$0xff]
    %v1072 = vld [vmem:[#allocation11 + $0x750] sm:$0xff]
    %v1073 = vld [vmem:[#allocation11 + $0x758] sm:$0xff]
    %v1074 = vld [vmem:[#allocation11 + $0x760] sm:$0xff]
    %v1075 = vld [vmem:[#allocation11 + $0x768] sm:$0xff]
    %v1076 = vld [vmem:[#allocation11 + $0x770] sm:$0xff]
    %v1077 = vld [vmem:[#allocation11 + $0x778] sm:$0xff]
    %v1078 = vld [vmem:[#allocation11 + $0x780] sm:$0xff]
    %v1079 = vld [vmem:[#allocation11 + $0x788] sm:$0xff]
    %v1080 = vld [vmem:[#allocation11 + $0x790] sm:$0xff]
    %v1081 = vld [vmem:[#allocation11 + $0x798] sm:$0xff]
    %v1082 = vld [vmem:[#allocation11 + $0x7a0] sm:$0xff]
    %v1083 = vld [vmem:[#allocation11 + $0x7a8] sm:$0xff]
    %v1084 = vld [vmem:[#allocation11 + $0x7b0] sm:$0xff]
    %v1085 = vld [vmem:[#allocation11 + $0x7b8] sm:$0xff]
    %v1086 = vld [vmem:[#allocation11 + $0x7c0] sm:$0xff]
    %v1087 = vld [vmem:[#allocation11 + $0x7c8] sm:$0xff]
    %v1088 = vld [vmem:[#allocation11 + $0x7d0] sm:$0xff]
    %v1089 = vld [vmem:[#allocation11 + $0x7d8] sm:$0xff]
    %v1090 = vld [vmem:[#allocation11 + $0x7e0] sm:$0xff]
    %v1091 = vld [vmem:[#allocation11 + $0x7e8] sm:$0xff]
    %v1092 = vld [vmem:[#allocation11 + $0x7f0] sm:$0xff]
    %v1093 = vld [vmem:[#allocation11 + $0x7f8] sm:$0xff]
    %v1094 = vld [vmem:[#allocation13] sm:$0xff]
    %v1096 = vperm.slane %v1094, 0
    %v1097 = vperm.slane %v1094, 1
    %v1098 = vperm.slane %v1094, 2
    %v1099 = vperm.slane %v1094, 3
    %v1100 = vperm.slane %v1094, 4
    %v1101 = vperm.slane %v1094, 5
    %v1102 = vperm.slane %v1094, 6
    %v1103 = vperm.slane %v1094, 7
    %v1368 = vunpack.c.l.b16 %v838
    %v1369 = vunpack.c.h.b16 %v838
    %v1370 = vunpack.c.l.b16 %v839
    %v1371 = vunpack.c.h.b16 %v839
    %v1372 = vunpack.c.l.b16 %v840
    %v1373 = vunpack.c.h.b16 %v840
    %v1374 = vunpack.c.l.b16 %v841
    %v1375 = vunpack.c.h.b16 %v841
    %v1376 = vunpack.c.l.b16 %v842
    %v1377 = vunpack.c.h.b16 %v842
    %v1378 = vunpack.c.l.b16 %v843
    %v1379 = vunpack.c.h.b16 %v843
    %v1380 = vunpack.c.l.b16 %v844
    %v1381 = vunpack.c.h.b16 %v844
    %v1382 = vunpack.c.l.b16 %v845
    %v1383 = vunpack.c.h.b16 %v845
    %v1384 = vunpack.c.l.b16 %v846
    %v1385 = vunpack.c.h.b16 %v846
    %v1386 = vunpack.c.l.b16 %v847
    %v1387 = vunpack.c.h.b16 %v847
    %v1388 = vunpack.c.l.b16 %v848
    %v1389 = vunpack.c.h.b16 %v848
    %v1390 = vunpack.c.l.b16 %v849
    %v1391 = vunpack.c.h.b16 %v849
    %v1392 = vunpack.c.l.b16 %v850
    %v1393 = vunpack.c.h.b16 %v850
    %v1394 = vunpack.c.l.b16 %v851
    %v1395 = vunpack.c.h.b16 %v851
    %v1396 = vunpack.c.l.b16 %v852
    %v1397 = vunpack.c.h.b16 %v852
    %v1398 = vunpack.c.l.b16 %v853
    %v1399 = vunpack.c.h.b16 %v853
    %v1400 = vunpack.c.l.b16 %v854
    %v1401 = vunpack.c.h.b16 %v854
    %v1402 = vunpack.c.l.b16 %v855
    %v1403 = vunpack.c.h.b16 %v855
    %v1404 = vunpack.c.l.b16 %v856
    %v1405 = vunpack.c.h.b16 %v856
    %v1406 = vunpack.c.l.b16 %v857
    %v1407 = vunpack.c.h.b16 %v857
    %v1408 = vunpack.c.l.b16 %v858
    %v1409 = vunpack.c.h.b16 %v858
    %v1410 = vunpack.c.l.b16 %v859
    %v1411 = vunpack.c.h.b16 %v859
    %v1412 = vunpack.c.l.b16 %v860
    %v1413 = vunpack.c.h.b16 %v860
    %v1414 = vunpack.c.l.b16 %v861
    %v1415 = vunpack.c.h.b16 %v861
    %v1416 = vunpack.c.l.b16 %v862
    %v1417 = vunpack.c.h.b16 %v862
    %v1418 = vunpack.c.l.b16 %v863
    %v1419 = vunpack.c.h.b16 %v863
    %v1420 = vunpack.c.l.b16 %v864
    %v1421 = vunpack.c.h.b16 %v864
    %v1422 = vunpack.c.l.b16 %v865
    %v1423 = vunpack.c.h.b16 %v865
    %v1424 = vunpack.c.l.b16 %v866
    %v1425 = vunpack.c.h.b16 %v866
    %v1426 = vunpack.c.l.b16 %v867
    %v1427 = vunpack.c.h.b16 %v867
    %v1428 = vunpack.c.l.b16 %v868
    %v1429 = vunpack.c.h.b16 %v868
    %v1430 = vunpack.c.l.b16 %v869
    %v1431 = vunpack.c.h.b16 %v869
    %v1432 = vunpack.c.l.b16 %v870
    %v1433 = vunpack.c.h.b16 %v870
    %v1434 = vunpack.c.l.b16 %v871
    %v1435 = vunpack.c.h.b16 %v871
    %v1436 = vunpack.c.l.b16 %v872
    %v1437 = vunpack.c.h.b16 %v872
    %v1438 = vunpack.c.l.b16 %v873
    %v1439 = vunpack.c.h.b16 %v873
    %v1440 = vunpack.c.l.b16 %v874
    %v1441 = vunpack.c.h.b16 %v874
    %v1442 = vunpack.c.l.b16 %v875
    %v1443 = vunpack.c.h.b16 %v875
    %v1444 = vunpack.c.l.b16 %v876
    %v1445 = vunpack.c.h.b16 %v876
    %v1446 = vunpack.c.l.b16 %v877
    %v1447 = vunpack.c.h.b16 %v877
    %v1448 = vunpack.c.l.b16 %v878
    %v1449 = vunpack.c.h.b16 %v878
    %v1450 = vunpack.c.l.b16 %v879
    %v1451 = vunpack.c.h.b16 %v879
    %v1452 = vunpack.c.l.b16 %v880
    %v1453 = vunpack.c.h.b16 %v880
    %v1454 = vunpack.c.l.b16 %v881
    %v1455 = vunpack.c.h.b16 %v881
    %v1456 = vunpack.c.l.b16 %v882
    %v1457 = vunpack.c.h.b16 %v882
    %v1458 = vunpack.c.l.b16 %v883
    %v1459 = vunpack.c.h.b16 %v883
    %v1460 = vunpack.c.l.b16 %v884
    %v1461 = vunpack.c.h.b16 %v884
    %v1462 = vunpack.c.l.b16 %v885
    %v1463 = vunpack.c.h.b16 %v885
    %v1464 = vunpack.c.l.b16 %v886
    %v1465 = vunpack.c.h.b16 %v886
    %v1466 = vunpack.c.l.b16 %v887
    %v1467 = vunpack.c.h.b16 %v887
    %v1468 = vunpack.c.l.b16 %v888
    %v1469 = vunpack.c.h.b16 %v888
    %v1470 = vunpack.c.l.b16 %v889
    %v1471 = vunpack.c.h.b16 %v889
    %v1472 = vunpack.c.l.b16 %v890
    %v1473 = vunpack.c.h.b16 %v890
    %v1474 = vunpack.c.l.b16 %v891
    %v1475 = vunpack.c.h.b16 %v891
    %v1476 = vunpack.c.l.b16 %v892
    %v1477 = vunpack.c.h.b16 %v892
    %v1478 = vunpack.c.l.b16 %v893
    %v1479 = vunpack.c.h.b16 %v893
    %v1480 = vunpack.c.l.b16 %v894
    %v1481 = vunpack.c.h.b16 %v894
    %v1482 = vunpack.c.l.b16 %v895
    %v1483 = vunpack.c.h.b16 %v895
    %v1484 = vunpack.c.l.b16 %v896
    %v1485 = vunpack.c.h.b16 %v896
    %v1486 = vunpack.c.l.b16 %v897
    %v1487 = vunpack.c.h.b16 %v897
    %v1488 = vunpack.c.l.b16 %v898
    %v1489 = vunpack.c.h.b16 %v898
    %v1490 = vunpack.c.l.b16 %v899
    %v1491 = vunpack.c.h.b16 %v899
    %v1492 = vunpack.c.l.b16 %v900
    %v1493 = vunpack.c.h.b16 %v900
    %v1494 = vunpack.c.l.b16 %v901
    %v1495 = vunpack.c.h.b16 %v901
    %v1496 = vunpack.c.l.b16 %v902
    %v1497 = vunpack.c.h.b16 %v902
    %v1498 = vunpack.c.l.b16 %v903
    %v1499 = vunpack.c.h.b16 %v903
    %v1500 = vunpack.c.l.b16 %v904
    %v1501 = vunpack.c.h.b16 %v904
    %v1502 = vunpack.c.l.b16 %v905
    %v1503 = vunpack.c.h.b16 %v905
    %v1504 = vunpack.c.l.b16 %v906
    %v1505 = vunpack.c.h.b16 %v906
    %v1506 = vunpack.c.l.b16 %v907
    %v1507 = vunpack.c.h.b16 %v907
    %v1508 = vunpack.c.l.b16 %v908
    %v1509 = vunpack.c.h.b16 %v908
    %v1510 = vunpack.c.l.b16 %v909
    %v1511 = vunpack.c.h.b16 %v909
    %v1512 = vunpack.c.l.b16 %v910
    %v1513 = vunpack.c.h.b16 %v910
    %v1514 = vunpack.c.l.b16 %v911
    %v1515 = vunpack.c.h.b16 %v911
    %v1516 = vunpack.c.l.b16 %v912
    %v1517 = vunpack.c.h.b16 %v912
    %v1518 = vunpack.c.l.b16 %v913
    %v1519 = vunpack.c.h.b16 %v913
    %v1520 = vunpack.c.l.b16 %v914
    %v1521 = vunpack.c.h.b16 %v914
    %v1522 = vunpack.c.l.b16 %v915
    %v1523 = vunpack.c.h.b16 %v915
    %v1524 = vunpack.c.l.b16 %v916
    %v1525 = vunpack.c.h.b16 %v916
    %v1526 = vunpack.c.l.b16 %v917
    %v1527 = vunpack.c.h.b16 %v917
    %v1528 = vunpack.c.l.b16 %v918
    %v1529 = vunpack.c.h.b16 %v918
    %v1530 = vunpack.c.l.b16 %v919
    %v1531 = vunpack.c.h.b16 %v919
    %v1532 = vunpack.c.l.b16 %v920
    %v1533 = vunpack.c.h.b16 %v920
    %v1534 = vunpack.c.l.b16 %v921
    %v1535 = vunpack.c.h.b16 %v921
    %v1536 = vunpack.c.l.b16 %v922
    %v1537 = vunpack.c.h.b16 %v922
    %v1538 = vunpack.c.l.b16 %v923
    %v1539 = vunpack.c.h.b16 %v923
    %v1540 = vunpack.c.l.b16 %v924
    %v1541 = vunpack.c.h.b16 %v924
    %v1542 = vunpack.c.l.b16 %v925
    %v1543 = vunpack.c.h.b16 %v925
    %v1544 = vunpack.c.l.b16 %v926
    %v1545 = vunpack.c.h.b16 %v926
    %v1546 = vunpack.c.l.b16 %v927
    %v1547 = vunpack.c.h.b16 %v927
    %v1548 = vunpack.c.l.b16 %v928
    %v1549 = vunpack.c.h.b16 %v928
    %v1550 = vunpack.c.l.b16 %v929
    %v1551 = vunpack.c.h.b16 %v929
    %v1552 = vunpack.c.l.b16 %v930
    %v1553 = vunpack.c.h.b16 %v930
    %v1554 = vunpack.c.l.b16 %v931
    %v1555 = vunpack.c.h.b16 %v931
    %v1556 = vunpack.c.l.b16 %v932
    %v1557 = vunpack.c.h.b16 %v932
    %v1558 = vunpack.c.l.b16 %v933
    %v1559 = vunpack.c.h.b16 %v933
    %v1560 = vunpack.c.l.b16 %v934
    %v1561 = vunpack.c.h.b16 %v934
    %v1562 = vunpack.c.l.b16 %v935
    %v1563 = vunpack.c.h.b16 %v935
    %v1564 = vunpack.c.l.b16 %v936
    %v1565 = vunpack.c.h.b16 %v936
    %v1566 = vunpack.c.l.b16 %v937
    %v1567 = vunpack.c.h.b16 %v937
    %v1568 = vunpack.c.l.b16 %v938
    %v1569 = vunpack.c.h.b16 %v938
    %v1570 = vunpack.c.l.b16 %v939
    %v1571 = vunpack.c.h.b16 %v939
    %v1572 = vunpack.c.l.b16 %v940
    %v1573 = vunpack.c.h.b16 %v940
    %v1574 = vunpack.c.l.b16 %v941
    %v1575 = vunpack.c.h.b16 %v941
    %v1576 = vunpack.c.l.b16 %v942
    %v1577 = vunpack.c.h.b16 %v942
    %v1578 = vunpack.c.l.b16 %v943
    %v1579 = vunpack.c.h.b16 %v943
    %v1580 = vunpack.c.l.b16 %v944
    %v1581 = vunpack.c.h.b16 %v944
    %v1582 = vunpack.c.l.b16 %v945
    %v1583 = vunpack.c.h.b16 %v945
    %v1584 = vunpack.c.l.b16 %v946
    %v1585 = vunpack.c.h.b16 %v946
    %v1586 = vunpack.c.l.b16 %v947
    %v1587 = vunpack.c.h.b16 %v947
    %v1588 = vunpack.c.l.b16 %v948
    %v1589 = vunpack.c.h.b16 %v948
    %v1590 = vunpack.c.l.b16 %v949
    %v1591 = vunpack.c.h.b16 %v949
    %v1592 = vunpack.c.l.b16 %v950
    %v1593 = vunpack.c.h.b16 %v950
    %v1594 = vunpack.c.l.b16 %v951
    %v1595 = vunpack.c.h.b16 %v951
    %v1596 = vunpack.c.l.b16 %v952
    %v1597 = vunpack.c.h.b16 %v952
    %v1598 = vunpack.c.l.b16 %v953
    %v1599 = vunpack.c.h.b16 %v953
    %v1600 = vunpack.c.l.b16 %v954
    %v1601 = vunpack.c.h.b16 %v954
    %v1602 = vunpack.c.l.b16 %v955
    %v1603 = vunpack.c.h.b16 %v955
    %v1604 = vunpack.c.l.b16 %v956
    %v1605 = vunpack.c.h.b16 %v956
    %v1606 = vunpack.c.l.b16 %v957
    %v1607 = vunpack.c.h.b16 %v957
    %v1608 = vunpack.c.l.b16 %v958
    %v1609 = vunpack.c.h.b16 %v958
    %v1610 = vunpack.c.l.b16 %v959
    %v1611 = vunpack.c.h.b16 %v959
    %v1612 = vunpack.c.l.b16 %v960
    %v1613 = vunpack.c.h.b16 %v960
    %v1614 = vunpack.c.l.b16 %v961
    %v1615 = vunpack.c.h.b16 %v961
    %v1616 = vunpack.c.l.b16 %v962
    %v1617 = vunpack.c.h.b16 %v962
    %v1618 = vunpack.c.l.b16 %v963
    %v1619 = vunpack.c.h.b16 %v963
    %v1620 = vunpack.c.l.b16 %v964
    %v1621 = vunpack.c.h.b16 %v964
    %v1622 = vunpack.c.l.b16 %v965
    %v1623 = vunpack.c.h.b16 %v965
    %v1624 = vunpack.c.l.b16 %v966
    %v1625 = vunpack.c.h.b16 %v966
    %v1626 = vunpack.c.l.b16 %v967
    %v1627 = vunpack.c.h.b16 %v967
    %v1628 = vunpack.c.l.b16 %v968
    %v1629 = vunpack.c.h.b16 %v968
    %v1630 = vunpack.c.l.b16 %v969
    %v1631 = vunpack.c.h.b16 %v969
    %v1632 = vunpack.c.l.b16 %v970
    %v1633 = vunpack.c.h.b16 %v970
    %v1634 = vunpack.c.l.b16 %v971
    %v1635 = vunpack.c.h.b16 %v971
    %v1636 = vunpack.c.l.b16 %v972
    %v1637 = vunpack.c.h.b16 %v972
    %v1638 = vunpack.c.l.b16 %v973
    %v1639 = vunpack.c.h.b16 %v973
    %v1640 = vunpack.c.l.b16 %v974
    %v1641 = vunpack.c.h.b16 %v974
    %v1642 = vunpack.c.l.b16 %v975
    %v1643 = vunpack.c.h.b16 %v975
    %v1644 = vunpack.c.l.b16 %v976
    %v1645 = vunpack.c.h.b16 %v976
    %v1646 = vunpack.c.l.b16 %v977
    %v1647 = vunpack.c.h.b16 %v977
    %v1648 = vunpack.c.l.b16 %v978
    %v1649 = vunpack.c.h.b16 %v978
    %v1650 = vunpack.c.l.b16 %v979
    %v1651 = vunpack.c.h.b16 %v979
    %v1652 = vunpack.c.l.b16 %v980
    %v1653 = vunpack.c.h.b16 %v980
    %v1654 = vunpack.c.l.b16 %v981
    %v1655 = vunpack.c.h.b16 %v981
    %v1656 = vunpack.c.l.b16 %v982
    %v1657 = vunpack.c.h.b16 %v982
    %v1658 = vunpack.c.l.b16 %v983
    %v1659 = vunpack.c.h.b16 %v983
    %v1660 = vunpack.c.l.b16 %v984
    %v1661 = vunpack.c.h.b16 %v984
    %v1662 = vunpack.c.l.b16 %v985
    %v1663 = vunpack.c.h.b16 %v985
    %v1664 = vunpack.c.l.b16 %v986
    %v1665 = vunpack.c.h.b16 %v986
    %v1666 = vunpack.c.l.b16 %v987
    %v1667 = vunpack.c.h.b16 %v987
    %v1668 = vunpack.c.l.b16 %v988
    %v1669 = vunpack.c.h.b16 %v988
    %v1670 = vunpack.c.l.b16 %v989
    %v1671 = vunpack.c.h.b16 %v989
    %v1672 = vunpack.c.l.b16 %v990
    %v1673 = vunpack.c.h.b16 %v990
    %v1674 = vunpack.c.l.b16 %v991
    %v1675 = vunpack.c.h.b16 %v991
    %v1676 = vunpack.c.l.b16 %v992
    %v1677 = vunpack.c.h.b16 %v992
    %v1678 = vunpack.c.l.b16 %v993
    %v1679 = vunpack.c.h.b16 %v993
    %v1680 = vunpack.c.l.b16 %v994
    %v1681 = vunpack.c.h.b16 %v994
    %v1682 = vunpack.c.l.b16 %v995
    %v1683 = vunpack.c.h.b16 %v995
    %v1684 = vunpack.c.l.b16 %v996
    %v1685 = vunpack.c.h.b16 %v996
    %v1686 = vunpack.c.l.b16 %v997
    %v1687 = vunpack.c.h.b16 %v997
    %v1688 = vunpack.c.l.b16 %v998
    %v1689 = vunpack.c.h.b16 %v998
    %v1690 = vunpack.c.l.b16 %v999
    %v1691 = vunpack.c.h.b16 %v999
    %v1692 = vunpack.c.l.b16 %v1000
    %v1693 = vunpack.c.h.b16 %v1000
    %v1694 = vunpack.c.l.b16 %v1001
    %v1695 = vunpack.c.h.b16 %v1001
    %v1696 = vunpack.c.l.b16 %v1002
    %v1697 = vunpack.c.h.b16 %v1002
    %v1698 = vunpack.c.l.b16 %v1003
    %v1699 = vunpack.c.h.b16 %v1003
    %v1700 = vunpack.c.l.b16 %v1004
    %v1701 = vunpack.c.h.b16 %v1004
    %v1702 = vunpack.c.l.b16 %v1005
    %v1703 = vunpack.c.h.b16 %v1005
    %v1704 = vunpack.c.l.b16 %v1006
    %v1705 = vunpack.c.h.b16 %v1006
    %v1706 = vunpack.c.l.b16 %v1007
    %v1707 = vunpack.c.h.b16 %v1007
    %v1708 = vunpack.c.l.b16 %v1008
    %v1709 = vunpack.c.h.b16 %v1008
    %v1710 = vunpack.c.l.b16 %v1009
    %v1711 = vunpack.c.h.b16 %v1009
    %v1712 = vunpack.c.l.b16 %v1010
    %v1713 = vunpack.c.h.b16 %v1010
    %v1714 = vunpack.c.l.b16 %v1011
    %v1715 = vunpack.c.h.b16 %v1011
    %v1716 = vunpack.c.l.b16 %v1012
    %v1717 = vunpack.c.h.b16 %v1012
    %v1718 = vunpack.c.l.b16 %v1013
    %v1719 = vunpack.c.h.b16 %v1013
    %v1720 = vunpack.c.l.b16 %v1014
    %v1721 = vunpack.c.h.b16 %v1014
    %v1722 = vunpack.c.l.b16 %v1015
    %v1723 = vunpack.c.h.b16 %v1015
    %v1724 = vunpack.c.l.b16 %v1016
    %v1725 = vunpack.c.h.b16 %v1016
    %v1726 = vunpack.c.l.b16 %v1017
    %v1727 = vunpack.c.h.b16 %v1017
    %v1728 = vunpack.c.l.b16 %v1018
    %v1729 = vunpack.c.h.b16 %v1018
    %v1730 = vunpack.c.l.b16 %v1019
    %v1731 = vunpack.c.h.b16 %v1019
    %v1732 = vunpack.c.l.b16 %v1020
    %v1733 = vunpack.c.h.b16 %v1020
    %v1734 = vunpack.c.l.b16 %v1021
    %v1735 = vunpack.c.h.b16 %v1021
    %v1736 = vunpack.c.l.b16 %v1022
    %v1737 = vunpack.c.h.b16 %v1022
    %v1738 = vunpack.c.l.b16 %v1023
    %v1739 = vunpack.c.h.b16 %v1023
    %v1740 = vunpack.c.l.b16 %v1024
    %v1741 = vunpack.c.h.b16 %v1024
    %v1742 = vunpack.c.l.b16 %v1025
    %v1743 = vunpack.c.h.b16 %v1025
    %v1744 = vunpack.c.l.b16 %v1026
    %v1745 = vunpack.c.h.b16 %v1026
    %v1746 = vunpack.c.l.b16 %v1027
    %v1747 = vunpack.c.h.b16 %v1027
    %v1748 = vunpack.c.l.b16 %v1028
    %v1749 = vunpack.c.h.b16 %v1028
    %v1750 = vunpack.c.l.b16 %v1029
    %v1751 = vunpack.c.h.b16 %v1029
    %v1752 = vunpack.c.l.b16 %v1030
    %v1753 = vunpack.c.h.b16 %v1030
    %v1754 = vunpack.c.l.b16 %v1031
    %v1755 = vunpack.c.h.b16 %v1031
    %v1756 = vunpack.c.l.b16 %v1032
    %v1757 = vunpack.c.h.b16 %v1032
    %v1758 = vunpack.c.l.b16 %v1033
    %v1759 = vunpack.c.h.b16 %v1033
    %v1760 = vunpack.c.l.b16 %v1034
    %v1761 = vunpack.c.h.b16 %v1034
    %v1762 = vunpack.c.l.b16 %v1035
    %v1763 = vunpack.c.h.b16 %v1035
    %v1764 = vunpack.c.l.b16 %v1036
    %v1765 = vunpack.c.h.b16 %v1036
    %v1766 = vunpack.c.l.b16 %v1037
    %v1767 = vunpack.c.h.b16 %v1037
    %v1768 = vunpack.c.l.b16 %v1038
    %v1769 = vunpack.c.h.b16 %v1038
    %v1770 = vunpack.c.l.b16 %v1039
    %v1771 = vunpack.c.h.b16 %v1039
    %v1772 = vunpack.c.l.b16 %v1040
    %v1773 = vunpack.c.h.b16 %v1040
    %v1774 = vunpack.c.l.b16 %v1041
    %v1775 = vunpack.c.h.b16 %v1041
    %v1776 = vunpack.c.l.b16 %v1042
    %v1777 = vunpack.c.h.b16 %v1042
    %v1778 = vunpack.c.l.b16 %v1043
    %v1779 = vunpack.c.h.b16 %v1043
    %v1780 = vunpack.c.l.b16 %v1044
    %v1781 = vunpack.c.h.b16 %v1044
    %v1782 = vunpack.c.l.b16 %v1045
    %v1783 = vunpack.c.h.b16 %v1045
    %v1784 = vunpack.c.l.b16 %v1046
    %v1785 = vunpack.c.h.b16 %v1046
    %v1786 = vunpack.c.l.b16 %v1047
    %v1787 = vunpack.c.h.b16 %v1047
    %v1788 = vunpack.c.l.b16 %v1048
    %v1789 = vunpack.c.h.b16 %v1048
    %v1790 = vunpack.c.l.b16 %v1049
    %v1791 = vunpack.c.h.b16 %v1049
    %v1792 = vunpack.c.l.b16 %v1050
    %v1793 = vunpack.c.h.b16 %v1050
    %v1794 = vunpack.c.l.b16 %v1051
    %v1795 = vunpack.c.h.b16 %v1051
    %v1796 = vunpack.c.l.b16 %v1052
    %v1797 = vunpack.c.h.b16 %v1052
    %v1798 = vunpack.c.l.b16 %v1053
    %v1799 = vunpack.c.h.b16 %v1053
    %v1800 = vunpack.c.l.b16 %v1054
    %v1801 = vunpack.c.h.b16 %v1054
    %v1802 = vunpack.c.l.b16 %v1055
    %v1803 = vunpack.c.h.b16 %v1055
    %v1804 = vunpack.c.l.b16 %v1056
    %v1805 = vunpack.c.h.b16 %v1056
    %v1806 = vunpack.c.l.b16 %v1057
    %v1807 = vunpack.c.h.b16 %v1057
    %v1808 = vunpack.c.l.b16 %v1058
    %v1809 = vunpack.c.h.b16 %v1058
    %v1810 = vunpack.c.l.b16 %v1059
    %v1811 = vunpack.c.h.b16 %v1059
    %v1812 = vunpack.c.l.b16 %v1060
    %v1813 = vunpack.c.h.b16 %v1060
    %v1814 = vunpack.c.l.b16 %v1061
    %v1815 = vunpack.c.h.b16 %v1061
    %v1816 = vunpack.c.l.b16 %v1062
    %v1817 = vunpack.c.h.b16 %v1062
    %v1818 = vunpack.c.l.b16 %v1063
    %v1819 = vunpack.c.h.b16 %v1063
    %v1820 = vunpack.c.l.b16 %v1064
    %v1821 = vunpack.c.h.b16 %v1064
    %v1822 = vunpack.c.l.b16 %v1065
    %v1823 = vunpack.c.h.b16 %v1065
    %v1824 = vunpack.c.l.b16 %v1066
    %v1825 = vunpack.c.h.b16 %v1066
    %v1826 = vunpack.c.l.b16 %v1067
    %v1827 = vunpack.c.h.b16 %v1067
    %v1828 = vunpack.c.l.b16 %v1068
    %v1829 = vunpack.c.h.b16 %v1068
    %v1830 = vunpack.c.l.b16 %v1069
    %v1831 = vunpack.c.h.b16 %v1069
    %v1832 = vunpack.c.l.b16 %v1070
    %v1833 = vunpack.c.h.b16 %v1070
    %v1834 = vunpack.c.l.b16 %v1071
    %v1835 = vunpack.c.h.b16 %v1071
    %v1836 = vunpack.c.l.b16 %v1072
    %v1837 = vunpack.c.h.b16 %v1072
    %v1838 = vunpack.c.l.b16 %v1073
    %v1839 = vunpack.c.h.b16 %v1073
    %v1840 = vunpack.c.l.b16 %v1074
    %v1841 = vunpack.c.h.b16 %v1074
    %v1842 = vunpack.c.l.b16 %v1075
    %v1843 = vunpack.c.h.b16 %v1075
    %v1844 = vunpack.c.l.b16 %v1076
    %v1845 = vunpack.c.h.b16 %v1076
    %v1846 = vunpack.c.l.b16 %v1077
    %v1847 = vunpack.c.h.b16 %v1077
    %v1848 = vunpack.c.l.b16 %v1078
    %v1849 = vunpack.c.h.b16 %v1078
    %v1850 = vunpack.c.l.b16 %v1079
    %v1851 = vunpack.c.h.b16 %v1079
    %v1852 = vunpack.c.l.b16 %v1080
    %v1853 = vunpack.c.h.b16 %v1080
    %v1854 = vunpack.c.l.b16 %v1081
    %v1855 = vunpack.c.h.b16 %v1081
    %v1856 = vunpack.c.l.b16 %v1082
    %v1857 = vunpack.c.h.b16 %v1082
    %v1858 = vunpack.c.l.b16 %v1083
    %v1859 = vunpack.c.h.b16 %v1083
    %v1860 = vunpack.c.l.b16 %v1084
    %v1861 = vunpack.c.h.b16 %v1084
    %v1862 = vunpack.c.l.b16 %v1085
    %v1863 = vunpack.c.h.b16 %v1085
    %v1864 = vunpack.c.l.b16 %v1086
    %v1865 = vunpack.c.h.b16 %v1086
    %v1866 = vunpack.c.l.b16 %v1087
    %v1867 = vunpack.c.h.b16 %v1087
    %v1868 = vunpack.c.l.b16 %v1088
    %v1869 = vunpack.c.h.b16 %v1088
    %v1870 = vunpack.c.l.b16 %v1089
    %v1871 = vunpack.c.h.b16 %v1089
    %v1872 = vunpack.c.l.b16 %v1090
    %v1873 = vunpack.c.h.b16 %v1090
    %v1874 = vunpack.c.l.b16 %v1091
    %v1875 = vunpack.c.h.b16 %v1091
    %v1876 = vunpack.c.l.b16 %v1092
    %v1877 = vunpack.c.h.b16 %v1092
    %v1878 = vunpack.c.l.b16 %v1093
    %v1879 = vunpack.c.h.b16 %v1093
    %v1880 = vpack.c.b16 %v1376, %v1368
    %v1881 = vpack.c.b16 %v1377, %v1369
    %v1882 = vpack.c.b16 %v1378, %v1370
    %v1883 = vpack.c.b16 %v1379, %v1371
    %v1884 = vpack.c.b16 %v1380, %v1372
    %v1885 = vpack.c.b16 %v1381, %v1373
    %v1886 = vpack.c.b16 %v1382, %v1374
    %v1887 = vpack.c.b16 %v1383, %v1375
    %v1888 = vpack.c.b16 %v1392, %v1384
    %v1889 = vpack.c.b16 %v1393, %v1385
    %v1890 = vpack.c.b16 %v1394, %v1386
    %v1891 = vpack.c.b16 %v1395, %v1387
    %v1892 = vpack.c.b16 %v1396, %v1388
    %v1893 = vpack.c.b16 %v1397, %v1389
    %v1894 = vpack.c.b16 %v1398, %v1390
    %v1895 = vpack.c.b16 %v1399, %v1391
    %v1896 = vpack.c.b16 %v1408, %v1400
    %v1897 = vpack.c.b16 %v1409, %v1401
    %v1898 = vpack.c.b16 %v1410, %v1402
    %v1899 = vpack.c.b16 %v1411, %v1403
    %v1900 = vpack.c.b16 %v1412, %v1404
    %v1901 = vpack.c.b16 %v1413, %v1405
    %v1902 = vpack.c.b16 %v1414, %v1406
    %v1903 = vpack.c.b16 %v1415, %v1407
    %v1904 = vpack.c.b16 %v1424, %v1416
    %v1905 = vpack.c.b16 %v1425, %v1417
    %v1906 = vpack.c.b16 %v1426, %v1418
    %v1907 = vpack.c.b16 %v1427, %v1419
    %v1908 = vpack.c.b16 %v1428, %v1420
    %v1909 = vpack.c.b16 %v1429, %v1421
    %v1910 = vpack.c.b16 %v1430, %v1422
    %v1911 = vpack.c.b16 %v1431, %v1423
    %v1912 = vpack.c.b16 %v1440, %v1432
    %v1913 = vpack.c.b16 %v1441, %v1433
    %v1914 = vpack.c.b16 %v1442, %v1434
    %v1915 = vpack.c.b16 %v1443, %v1435
    %v1916 = vpack.c.b16 %v1444, %v1436
    %v1917 = vpack.c.b16 %v1445, %v1437
    %v1918 = vpack.c.b16 %v1446, %v1438
    %v1919 = vpack.c.b16 %v1447, %v1439
    %v1920 = vpack.c.b16 %v1456, %v1448
    %v1921 = vpack.c.b16 %v1457, %v1449
    %v1922 = vpack.c.b16 %v1458, %v1450
    %v1923 = vpack.c.b16 %v1459, %v1451
    %v1924 = vpack.c.b16 %v1460, %v1452
    %v1925 = vpack.c.b16 %v1461, %v1453
    %v1926 = vpack.c.b16 %v1462, %v1454
    %v1927 = vpack.c.b16 %v1463, %v1455
    %v1928 = vpack.c.b16 %v1472, %v1464
    %v1929 = vpack.c.b16 %v1473, %v1465
    %v1930 = vpack.c.b16 %v1474, %v1466
    %v1931 = vpack.c.b16 %v1475, %v1467
    %v1932 = vpack.c.b16 %v1476, %v1468
    %v1933 = vpack.c.b16 %v1477, %v1469
    %v1934 = vpack.c.b16 %v1478, %v1470
    %v1935 = vpack.c.b16 %v1479, %v1471
    %v1936 = vpack.c.b16 %v1488, %v1480
    %v1937 = vpack.c.b16 %v1489, %v1481
    %v1938 = vpack.c.b16 %v1490, %v1482
    %v1939 = vpack.c.b16 %v1491, %v1483
    %v1940 = vpack.c.b16 %v1492, %v1484
    %v1941 = vpack.c.b16 %v1493, %v1485
    %v1942 = vpack.c.b16 %v1494, %v1486
    %v1943 = vpack.c.b16 %v1495, %v1487
    %v1944 = vpack.c.b16 %v1504, %v1496
    %v1945 = vpack.c.b16 %v1505, %v1497
    %v1946 = vpack.c.b16 %v1506, %v1498
    %v1947 = vpack.c.b16 %v1507, %v1499
    %v1948 = vpack.c.b16 %v1508, %v1500
    %v1949 = vpack.c.b16 %v1509, %v1501
    %v1950 = vpack.c.b16 %v1510, %v1502
    %v1951 = vpack.c.b16 %v1511, %v1503
    %v1952 = vpack.c.b16 %v1520, %v1512
    %v1953 = vpack.c.b16 %v1521, %v1513
    %v1954 = vpack.c.b16 %v1522, %v1514
    %v1955 = vpack.c.b16 %v1523, %v1515
    %v1956 = vpack.c.b16 %v1524, %v1516
    %v1957 = vpack.c.b16 %v1525, %v1517
    %v1958 = vpack.c.b16 %v1526, %v1518
    %v1959 = vpack.c.b16 %v1527, %v1519
    %v1960 = vpack.c.b16 %v1536, %v1528
    %v1961 = vpack.c.b16 %v1537, %v1529
    %v1962 = vpack.c.b16 %v1538, %v1530
    %v1963 = vpack.c.b16 %v1539, %v1531
    %v1964 = vpack.c.b16 %v1540, %v1532
    %v1965 = vpack.c.b16 %v1541, %v1533
    %v1966 = vpack.c.b16 %v1542, %v1534
    %v1967 = vpack.c.b16 %v1543, %v1535
    %v1968 = vpack.c.b16 %v1552, %v1544
    %v1969 = vpack.c.b16 %v1553, %v1545
    %v1970 = vpack.c.b16 %v1554, %v1546
    %v1971 = vpack.c.b16 %v1555, %v1547
    %v1972 = vpack.c.b16 %v1556, %v1548
    %v1973 = vpack.c.b16 %v1557, %v1549
    %v1974 = vpack.c.b16 %v1558, %v1550
    %v1975 = vpack.c.b16 %v1559, %v1551
    %v1976 = vpack.c.b16 %v1568, %v1560
    %v1977 = vpack.c.b16 %v1569, %v1561
    %v1978 = vpack.c.b16 %v1570, %v1562
    %v1979 = vpack.c.b16 %v1571, %v1563
    %v1980 = vpack.c.b16 %v1572, %v1564
    %v1981 = vpack.c.b16 %v1573, %v1565
    %v1982 = vpack.c.b16 %v1574, %v1566
    %v1983 = vpack.c.b16 %v1575, %v1567
    %v1984 = vpack.c.b16 %v1584, %v1576
    %v1985 = vpack.c.b16 %v1585, %v1577
    %v1986 = vpack.c.b16 %v1586, %v1578
    %v1987 = vpack.c.b16 %v1587, %v1579
    %v1988 = vpack.c.b16 %v1588, %v1580
    %v1989 = vpack.c.b16 %v1589, %v1581
    %v1990 = vpack.c.b16 %v1590, %v1582
    %v1991 = vpack.c.b16 %v1591, %v1583
    %v1992 = vpack.c.b16 %v1600, %v1592
    %v1993 = vpack.c.b16 %v1601, %v1593
    %v1994 = vpack.c.b16 %v1602, %v1594
    %v1995 = vpack.c.b16 %v1603, %v1595
    %v1996 = vpack.c.b16 %v1604, %v1596
    %v1997 = vpack.c.b16 %v1605, %v1597
    %v1998 = vpack.c.b16 %v1606, %v1598
    %v1999 = vpack.c.b16 %v1607, %v1599
    %v2000 = vpack.c.b16 %v1616, %v1608
    %v2001 = vpack.c.b16 %v1617, %v1609
    %v2002 = vpack.c.b16 %v1618, %v1610
    %v2003 = vpack.c.b16 %v1619, %v1611
    %v2004 = vpack.c.b16 %v1620, %v1612
    %v2005 = vpack.c.b16 %v1621, %v1613
    %v2006 = vpack.c.b16 %v1622, %v1614
    %v2007 = vpack.c.b16 %v1623, %v1615
    %v2008 = vpack.c.b16 %v1632, %v1624
    %v2009 = vpack.c.b16 %v1633, %v1625
    %v2010 = vpack.c.b16 %v1634, %v1626
    %v2011 = vpack.c.b16 %v1635, %v1627
    %v2012 = vpack.c.b16 %v1636, %v1628
    %v2013 = vpack.c.b16 %v1637, %v1629
    %v2014 = vpack.c.b16 %v1638, %v1630
    %v2015 = vpack.c.b16 %v1639, %v1631
    %v2016 = vpack.c.b16 %v1648, %v1640
    %v2017 = vpack.c.b16 %v1649, %v1641
    %v2018 = vpack.c.b16 %v1650, %v1642
    %v2019 = vpack.c.b16 %v1651, %v1643
    %v2020 = vpack.c.b16 %v1652, %v1644
    %v2021 = vpack.c.b16 %v1653, %v1645
    %v2022 = vpack.c.b16 %v1654, %v1646
    %v2023 = vpack.c.b16 %v1655, %v1647
    %v2024 = vpack.c.b16 %v1664, %v1656
    %v2025 = vpack.c.b16 %v1665, %v1657
    %v2026 = vpack.c.b16 %v1666, %v1658
    %v2027 = vpack.c.b16 %v1667, %v1659
    %v2028 = vpack.c.b16 %v1668, %v1660
    %v2029 = vpack.c.b16 %v1669, %v1661
    %v2030 = vpack.c.b16 %v1670, %v1662
    %v2031 = vpack.c.b16 %v1671, %v1663
    %v2032 = vpack.c.b16 %v1680, %v1672
    %v2033 = vpack.c.b16 %v1681, %v1673
    %v2034 = vpack.c.b16 %v1682, %v1674
    %v2035 = vpack.c.b16 %v1683, %v1675
    %v2036 = vpack.c.b16 %v1684, %v1676
    %v2037 = vpack.c.b16 %v1685, %v1677
    %v2038 = vpack.c.b16 %v1686, %v1678
    %v2039 = vpack.c.b16 %v1687, %v1679
    %v2040 = vpack.c.b16 %v1696, %v1688
    %v2041 = vpack.c.b16 %v1697, %v1689
    %v2042 = vpack.c.b16 %v1698, %v1690
    %v2043 = vpack.c.b16 %v1699, %v1691
    %v2044 = vpack.c.b16 %v1700, %v1692
    %v2045 = vpack.c.b16 %v1701, %v1693
    %v2046 = vpack.c.b16 %v1702, %v1694
    %v2047 = vpack.c.b16 %v1703, %v1695
    %v2048 = vpack.c.b16 %v1712, %v1704
    %v2049 = vpack.c.b16 %v1713, %v1705
    %v2050 = vpack.c.b16 %v1714, %v1706
    %v2051 = vpack.c.b16 %v1715, %v1707
    %v2052 = vpack.c.b16 %v1716, %v1708
    %v2053 = vpack.c.b16 %v1717, %v1709
    %v2054 = vpack.c.b16 %v1718, %v1710
    %v2055 = vpack.c.b16 %v1719, %v1711
    %v2056 = vpack.c.b16 %v1728, %v1720
    %v2057 = vpack.c.b16 %v1729, %v1721
    %v2058 = vpack.c.b16 %v1730, %v1722
    %v2059 = vpack.c.b16 %v1731, %v1723
    %v2060 = vpack.c.b16 %v1732, %v1724
    %v2061 = vpack.c.b16 %v1733, %v1725
    %v2062 = vpack.c.b16 %v1734, %v1726
    %v2063 = vpack.c.b16 %v1735, %v1727
    %v2064 = vpack.c.b16 %v1744, %v1736
    %v2065 = vpack.c.b16 %v1745, %v1737
    %v2066 = vpack.c.b16 %v1746, %v1738
    %v2067 = vpack.c.b16 %v1747, %v1739
    %v2068 = vpack.c.b16 %v1748, %v1740
    %v2069 = vpack.c.b16 %v1749, %v1741
    %v2070 = vpack.c.b16 %v1750, %v1742
    %v2071 = vpack.c.b16 %v1751, %v1743
    %v2072 = vpack.c.b16 %v1760, %v1752
    %v2073 = vpack.c.b16 %v1761, %v1753
    %v2074 = vpack.c.b16 %v1762, %v1754
    %v2075 = vpack.c.b16 %v1763, %v1755
    %v2076 = vpack.c.b16 %v1764, %v1756
    %v2077 = vpack.c.b16 %v1765, %v1757
    %v2078 = vpack.c.b16 %v1766, %v1758
    %v2079 = vpack.c.b16 %v1767, %v1759
    %v2080 = vpack.c.b16 %v1776, %v1768
    %v2081 = vpack.c.b16 %v1777, %v1769
    %v2082 = vpack.c.b16 %v1778, %v1770
    %v2083 = vpack.c.b16 %v1779, %v1771
    %v2084 = vpack.c.b16 %v1780, %v1772
    %v2085 = vpack.c.b16 %v1781, %v1773
    %v2086 = vpack.c.b16 %v1782, %v1774
    %v2087 = vpack.c.b16 %v1783, %v1775
    %v2088 = vpack.c.b16 %v1792, %v1784
    %v2089 = vpack.c.b16 %v1793, %v1785
    %v2090 = vpack.c.b16 %v1794, %v1786
    %v2091 = vpack.c.b16 %v1795, %v1787
    %v2092 = vpack.c.b16 %v1796, %v1788
    %v2093 = vpack.c.b16 %v1797, %v1789
    %v2094 = vpack.c.b16 %v1798, %v1790
    %v2095 = vpack.c.b16 %v1799, %v1791
    %v2096 = vpack.c.b16 %v1808, %v1800
    %v2097 = vpack.c.b16 %v1809, %v1801
    %v2098 = vpack.c.b16 %v1810, %v1802
    %v2099 = vpack.c.b16 %v1811, %v1803
    %v2100 = vpack.c.b16 %v1812, %v1804
    %v2101 = vpack.c.b16 %v1813, %v1805
    %v2102 = vpack.c.b16 %v1814, %v1806
    %v2103 = vpack.c.b16 %v1815, %v1807
    %v2104 = vpack.c.b16 %v1824, %v1816
    %v2105 = vpack.c.b16 %v1825, %v1817
    %v2106 = vpack.c.b16 %v1826, %v1818
    %v2107 = vpack.c.b16 %v1827, %v1819
    %v2108 = vpack.c.b16 %v1828, %v1820
    %v2109 = vpack.c.b16 %v1829, %v1821
    %v2110 = vpack.c.b16 %v1830, %v1822
    %v2111 = vpack.c.b16 %v1831, %v1823
    %v2112 = vpack.c.b16 %v1840, %v1832
    %v2113 = vpack.c.b16 %v1841, %v1833
    %v2114 = vpack.c.b16 %v1842, %v1834
    %v2115 = vpack.c.b16 %v1843, %v1835
    %v2116 = vpack.c.b16 %v1844, %v1836
    %v2117 = vpack.c.b16 %v1845, %v1837
    %v2118 = vpack.c.b16 %v1846, %v1838
    %v2119 = vpack.c.b16 %v1847, %v1839
    %v2120 = vpack.c.b16 %v1856, %v1848
    %v2121 = vpack.c.b16 %v1857, %v1849
    %v2122 = vpack.c.b16 %v1858, %v1850
    %v2123 = vpack.c.b16 %v1859, %v1851
    %v2124 = vpack.c.b16 %v1860, %v1852
    %v2125 = vpack.c.b16 %v1861, %v1853
    %v2126 = vpack.c.b16 %v1862, %v1854
    %v2127 = vpack.c.b16 %v1863, %v1855
    %v2128 = vpack.c.b16 %v1872, %v1864
    %v2129 = vpack.c.b16 %v1873, %v1865
    %v2130 = vpack.c.b16 %v1874, %v1866
    %v2131 = vpack.c.b16 %v1875, %v1867
    %v2132 = vpack.c.b16 %v1876, %v1868
    %v2133 = vpack.c.b16 %v1877, %v1869
    %v2134 = vpack.c.b16 %v1878, %v1870
    %v2135 = vpack.c.b16 %v1879, %v1871
    %2392 = vmatpush.bf16.msra.mxu0 %v1936
    %2393 = vmatpush.bf16.msra.mxu0 %v1928
    %2394 = vmatpush.bf16.msra.mxu0 %v1920
    %2395 = vmatpush.bf16.msra.mxu0 %v1912
    %2396 = vmatpush.bf16.msra.mxu0 %v1904
    %2397 = vmatpush.bf16.msra.mxu0 %v1896
    %2398 = vmatpush.bf16.msra.mxu0 %v1888
    %2399 = vmatpush.bf16.msra.mxu0 %v1880
    %2400 = vmatmul.bf16.gmra.mxu0 %v834
    %v2401 = vpop.f32.mrf.mxu0
    %v2402 = vadd.f32 %v1096, %v2401
    %v2403 = vpop.f32.mrf.mxu0
    %v2404 = vadd.f32 %v1096, %v2403
    %2405 = vdwg.mxu0
    %2406 = vmatpush.bf16.msra.mxu0 %v2000
    %2407 = vmatpush.bf16.msra.mxu0 %v1992
    %2408 = vmatpush.bf16.msra.mxu0 %v1984
    %2409 = vmatpush.bf16.msra.mxu0 %v1976
    %2410 = vmatpush.bf16.msra.mxu0 %v1968
    %2411 = vmatpush.bf16.msra.mxu0 %v1960
    %2412 = vmatpush.bf16.msra.mxu0 %v1952
    %2413 = vmatpush.bf16.msra.mxu0 %v1944
    %2414 = vmatmul.bf16.gmra.mxu0 %v835
    %v2415 = vpop.f32.mrf.mxu0
    %v2416 = vadd.f32 %v2402, %v2415
    %v2417 = vpop.f32.mrf.mxu0
    %v2418 = vadd.f32 %v2404, %v2417
    %2419 = vdwg.mxu0
    %2420 = vmatpush.bf16.msra.mxu0 %v2064
    %2421 = vmatpush.bf16.msra.mxu0 %v2056
    %2422 = vmatpush.bf16.msra.mxu0 %v2048
    %2423 = vmatpush.bf16.msra.mxu0 %v2040
    %2424 = vmatpush.bf16.msra.mxu0 %v2032
    %2425 = vmatpush.bf16.msra.mxu0 %v2024
    %2426 = vmatpush.bf16.msra.mxu0 %v2016
    %2427 = vmatpush.bf16.msra.mxu0 %v2008
    %2428 = vmatmul.bf16.gmra.mxu0 %v836
    %v2429 = vpop.f32.mrf.mxu0
    %v2430 = vadd.f32 %v2416, %v2429
    %v2431 = vpop.f32.mrf.mxu0
    %v2432 = vadd.f32 %v2418, %v2431
    %2433 = vdwg.mxu0
    %2434 = vmatpush.bf16.msra.mxu0 %v2128
    %2435 = vmatpush.bf16.msra.mxu0 %v2120
    %2436 = vmatpush.bf16.msra.mxu0 %v2112
    %2437 = vmatpush.bf16.msra.mxu0 %v2104
    %2438 = vmatpush.bf16.msra.mxu0 %v2096
    %2439 = vmatpush.bf16.msra.mxu0 %v2088
    %2440 = vmatpush.bf16.msra.mxu0 %v2080
    %2441 = vmatpush.bf16.msra.mxu0 %v2072
    %2442 = vmatmul.bf16.gmra.mxu0 %v837
    %v2443 = vpop.f32.mrf.mxu0
    %v2444 = vadd.f32 %v2430, %v2443
    %v2445 = vpop.f32.mrf.mxu0
    %v2446 = vadd.f32 %v2432, %v2445
    %2447 = vdwg.mxu0
    %2448 = vmatpush.bf16.msra.mxu0 %v1937
    %2449 = vmatpush.bf16.msra.mxu0 %v1929
    %2450 = vmatpush.bf16.msra.mxu0 %v1921
    %2451 = vmatpush.bf16.msra.mxu0 %v1913
    %2452 = vmatpush.bf16.msra.mxu0 %v1905
    %2453 = vmatpush.bf16.msra.mxu0 %v1897
    %2454 = vmatpush.bf16.msra.mxu0 %v1889
    %2455 = vmatpush.bf16.msra.mxu0 %v1881
    %2456 = vmatmul.bf16.gmra.mxu0 %v834
    %v2457 = vpop.f32.mrf.mxu0
    %v2458 = vadd.f32 %v1097, %v2457
    %v2459 = vpop.f32.mrf.mxu0
    %v2460 = vadd.f32 %v1097, %v2459
    %2461 = vdwg.mxu0
    %2462 = vmatpush.bf16.msra.mxu0 %v2001
    %2463 = vmatpush.bf16.msra.mxu0 %v1993
    %2464 = vmatpush.bf16.msra.mxu0 %v1985
    %2465 = vmatpush.bf16.msra.mxu0 %v1977
    %2466 = vmatpush.bf16.msra.mxu0 %v1969
    %2467 = vmatpush.bf16.msra.mxu0 %v1961
    %2468 = vmatpush.bf16.msra.mxu0 %v1953
    %2469 = vmatpush.bf16.msra.mxu0 %v1945
    %2470 = vmatmul.bf16.gmra.mxu0 %v835
    %v2471 = vpop.f32.mrf.mxu0
    %v2472 = vadd.f32 %v2458, %v2471
    %v2473 = vpop.f32.mrf.mxu0
    %v2474 = vadd.f32 %v2460, %v2473
    %2475 = vdwg.mxu0
    %2476 = vmatpush.bf16.msra.mxu0 %v2065
    %2477 = vmatpush.bf16.msra.mxu0 %v2057
    %2478 = vmatpush.bf16.msra.mxu0 %v2049
    %2479 = vmatpush.bf16.msra.mxu0 %v2041
    %2480 = vmatpush.bf16.msra.mxu0 %v2033
    %2481 = vmatpush.bf16.msra.mxu0 %v2025
    %2482 = vmatpush.bf16.msra.mxu0 %v2017
    %2483 = vmatpush.bf16.msra.mxu0 %v2009
    %2484 = vmatmul.bf16.gmra.mxu0 %v836
    %v2485 = vpop.f32.mrf.mxu0
    %v2486 = vadd.f32 %v2472, %v2485
    %v2487 = vpop.f32.mrf.mxu0
    %v2488 = vadd.f32 %v2474, %v2487
    %2489 = vdwg.mxu0
    %2490 = vmatpush.bf16.msra.mxu0 %v2129
    %2491 = vmatpush.bf16.msra.mxu0 %v2121
    %2492 = vmatpush.bf16.msra.mxu0 %v2113
    %2493 = vmatpush.bf16.msra.mxu0 %v2105
    %2494 = vmatpush.bf16.msra.mxu0 %v2097
    %2495 = vmatpush.bf16.msra.mxu0 %v2089
    %2496 = vmatpush.bf16.msra.mxu0 %v2081
    %2497 = vmatpush.bf16.msra.mxu0 %v2073
    %2498 = vmatmul.bf16.gmra.mxu0 %v837
    %v2499 = vpop.f32.mrf.mxu0
    %v2500 = vadd.f32 %v2486, %v2499
    %v2501 = vpop.f32.mrf.mxu0
    %v2502 = vadd.f32 %v2488, %v2501
    %2503 = vdwg.mxu0
    %2504 = vmatpush.bf16.msra.mxu0 %v1938
    %2505 = vmatpush.bf16.msra.mxu0 %v1930
    %2506 = vmatpush.bf16.msra.mxu0 %v1922
    %2507 = vmatpush.bf16.msra.mxu0 %v1914
    %2508 = vmatpush.bf16.msra.mxu0 %v1906
    %2509 = vmatpush.bf16.msra.mxu0 %v1898
    %2510 = vmatpush.bf16.msra.mxu0 %v1890
    %2511 = vmatpush.bf16.msra.mxu0 %v1882
    %2512 = vmatmul.bf16.gmra.mxu0 %v834
    %v2513 = vpop.f32.mrf.mxu0
    %v2514 = vadd.f32 %v1098, %v2513
    %v2515 = vpop.f32.mrf.mxu0
    %v2516 = vadd.f32 %v1098, %v2515
    %2517 = vdwg.mxu0
    %2518 = vmatpush.bf16.msra.mxu0 %v2002
    %2519 = vmatpush.bf16.msra.mxu0 %v1994
    %2520 = vmatpush.bf16.msra.mxu0 %v1986
    %2521 = vmatpush.bf16.msra.mxu0 %v1978
    %2522 = vmatpush.bf16.msra.mxu0 %v1970
    %2523 = vmatpush.bf16.msra.mxu0 %v1962
    %2524 = vmatpush.bf16.msra.mxu0 %v1954
    %2525 = vmatpush.bf16.msra.mxu0 %v1946
    %2526 = vmatmul.bf16.gmra.mxu0 %v835
    %v2527 = vpop.f32.mrf.mxu0
    %v2528 = vadd.f32 %v2514, %v2527
    %v2529 = vpop.f32.mrf.mxu0
    %v2530 = vadd.f32 %v2516, %v2529
    %2531 = vdwg.mxu0
    %2532 = vmatpush.bf16.msra.mxu0 %v2066
    %2533 = vmatpush.bf16.msra.mxu0 %v2058
    %2534 = vmatpush.bf16.msra.mxu0 %v2050
    %2535 = vmatpush.bf16.msra.mxu0 %v2042
    %2536 = vmatpush.bf16.msra.mxu0 %v2034
    %2537 = vmatpush.bf16.msra.mxu0 %v2026
    %2538 = vmatpush.bf16.msra.mxu0 %v2018
    %2539 = vmatpush.bf16.msra.mxu0 %v2010
    %2540 = vmatmul.bf16.gmra.mxu0 %v836
    %v2541 = vpop.f32.mrf.mxu0
    %v2542 = vadd.f32 %v2528, %v2541
    %v2543 = vpop.f32.mrf.mxu0
    %v2544 = vadd.f32 %v2530, %v2543
    %2545 = vdwg.mxu0
    %2546 = vmatpush.bf16.msra.mxu0 %v2130
    %2547 = vmatpush.bf16.msra.mxu0 %v2122
    %2548 = vmatpush.bf16.msra.mxu0 %v2114
    %2549 = vmatpush.bf16.msra.mxu0 %v2106
    %2550 = vmatpush.bf16.msra.mxu0 %v2098
    %2551 = vmatpush.bf16.msra.mxu0 %v2090
    %2552 = vmatpush.bf16.msra.mxu0 %v2082
    %2553 = vmatpush.bf16.msra.mxu0 %v2074
    %2554 = vmatmul.bf16.gmra.mxu0 %v837
    %v2555 = vpop.f32.mrf.mxu0
    %v2556 = vadd.f32 %v2542, %v2555
    %v2557 = vpop.f32.mrf.mxu0
    %v2558 = vadd.f32 %v2544, %v2557
    %2559 = vdwg.mxu0
    %2560 = vmatpush.bf16.msra.mxu0 %v1939
    %2561 = vmatpush.bf16.msra.mxu0 %v1931
    %2562 = vmatpush.bf16.msra.mxu0 %v1923
    %2563 = vmatpush.bf16.msra.mxu0 %v1915
    %2564 = vmatpush.bf16.msra.mxu0 %v1907
    %2565 = vmatpush.bf16.msra.mxu0 %v1899
    %2566 = vmatpush.bf16.msra.mxu0 %v1891
    %2567 = vmatpush.bf16.msra.mxu0 %v1883
    %2568 = vmatmul.bf16.gmra.mxu0 %v834
    %v2569 = vpop.f32.mrf.mxu0
    %v2570 = vadd.f32 %v1099, %v2569
    %v2571 = vpop.f32.mrf.mxu0
    %v2572 = vadd.f32 %v1099, %v2571
    %2573 = vdwg.mxu0
    %2574 = vmatpush.bf16.msra.mxu0 %v2003
    %2575 = vmatpush.bf16.msra.mxu0 %v1995
    %2576 = vmatpush.bf16.msra.mxu0 %v1987
    %2577 = vmatpush.bf16.msra.mxu0 %v1979
    %2578 = vmatpush.bf16.msra.mxu0 %v1971
    %2579 = vmatpush.bf16.msra.mxu0 %v1963
    %2580 = vmatpush.bf16.msra.mxu0 %v1955
    %2581 = vmatpush.bf16.msra.mxu0 %v1947
    %2582 = vmatmul.bf16.gmra.mxu0 %v835
    %v2583 = vpop.f32.mrf.mxu0
    %v2584 = vadd.f32 %v2570, %v2583
    %v2585 = vpop.f32.mrf.mxu0
    %v2586 = vadd.f32 %v2572, %v2585
    %2587 = vdwg.mxu0
    %2588 = vmatpush.bf16.msra.mxu0 %v2067
    %2589 = vmatpush.bf16.msra.mxu0 %v2059
    %2590 = vmatpush.bf16.msra.mxu0 %v2051
    %2591 = vmatpush.bf16.msra.mxu0 %v2043
    %2592 = vmatpush.bf16.msra.mxu0 %v2035
    %2593 = vmatpush.bf16.msra.mxu0 %v2027
    %2594 = vmatpush.bf16.msra.mxu0 %v2019
    %2595 = vmatpush.bf16.msra.mxu0 %v2011
    %2596 = vmatmul.bf16.gmra.mxu0 %v836
    %v2597 = vpop.f32.mrf.mxu0
    %v2598 = vadd.f32 %v2584, %v2597
    %v2599 = vpop.f32.mrf.mxu0
    %v2600 = vadd.f32 %v2586, %v2599
    %2601 = vdwg.mxu0
    %2602 = vmatpush.bf16.msra.mxu0 %v2131
    %2603 = vmatpush.bf16.msra.mxu0 %v2123
    %2604 = vmatpush.bf16.msra.mxu0 %v2115
    %2605 = vmatpush.bf16.msra.mxu0 %v2107
    %2606 = vmatpush.bf16.msra.mxu0 %v2099
    %2607 = vmatpush.bf16.msra.mxu0 %v2091
    %2608 = vmatpush.bf16.msra.mxu0 %v2083
    %2609 = vmatpush.bf16.msra.mxu0 %v2075
    %2610 = vmatmul.bf16.gmra.mxu0 %v837
    %v2611 = vpop.f32.mrf.mxu0
    %v2612 = vadd.f32 %v2598, %v2611
    %v2613 = vpop.f32.mrf.mxu0
    %v2614 = vadd.f32 %v2600, %v2613
    %2615 = vdwg.mxu0
    %2616 = vmatpush.bf16.msra.mxu0 %v1940
    %2617 = vmatpush.bf16.msra.mxu0 %v1932
    %2618 = vmatpush.bf16.msra.mxu0 %v1924
    %2619 = vmatpush.bf16.msra.mxu0 %v1916
    %2620 = vmatpush.bf16.msra.mxu0 %v1908
    %2621 = vmatpush.bf16.msra.mxu0 %v1900
    %2622 = vmatpush.bf16.msra.mxu0 %v1892
    %2623 = vmatpush.bf16.msra.mxu0 %v1884
    %2624 = vmatmul.bf16.gmra.mxu0 %v834
    %v2625 = vpop.f32.mrf.mxu0
    %v2626 = vadd.f32 %v1100, %v2625
    %v2627 = vpop.f32.mrf.mxu0
    %v2628 = vadd.f32 %v1100, %v2627
    %2629 = vdwg.mxu0
    %2630 = vmatpush.bf16.msra.mxu0 %v2004
    %2631 = vmatpush.bf16.msra.mxu0 %v1996
    %2632 = vmatpush.bf16.msra.mxu0 %v1988
    %2633 = vmatpush.bf16.msra.mxu0 %v1980
    %2634 = vmatpush.bf16.msra.mxu0 %v1972
    %2635 = vmatpush.bf16.msra.mxu0 %v1964
    %2636 = vmatpush.bf16.msra.mxu0 %v1956
    %2637 = vmatpush.bf16.msra.mxu0 %v1948
    %2638 = vmatmul.bf16.gmra.mxu0 %v835
    %v2639 = vpop.f32.mrf.mxu0
    %v2640 = vadd.f32 %v2626, %v2639
    %v2641 = vpop.f32.mrf.mxu0
    %v2642 = vadd.f32 %v2628, %v2641
    %2643 = vdwg.mxu0
    %2644 = vmatpush.bf16.msra.mxu0 %v2068
    %2645 = vmatpush.bf16.msra.mxu0 %v2060
    %2646 = vmatpush.bf16.msra.mxu0 %v2052
    %2647 = vmatpush.bf16.msra.mxu0 %v2044
    %2648 = vmatpush.bf16.msra.mxu0 %v2036
    %2649 = vmatpush.bf16.msra.mxu0 %v2028
    %2650 = vmatpush.bf16.msra.mxu0 %v2020
    %2651 = vmatpush.bf16.msra.mxu0 %v2012
    %2652 = vmatmul.bf16.gmra.mxu0 %v836
    %v2653 = vpop.f32.mrf.mxu0
    %v2654 = vadd.f32 %v2640, %v2653
    %v2655 = vpop.f32.mrf.mxu0
    %v2656 = vadd.f32 %v2642, %v2655
    %2657 = vdwg.mxu0
    %2658 = vmatpush.bf16.msra.mxu0 %v2132
    %2659 = vmatpush.bf16.msra.mxu0 %v2124
    %2660 = vmatpush.bf16.msra.mxu0 %v2116
    %2661 = vmatpush.bf16.msra.mxu0 %v2108
    %2662 = vmatpush.bf16.msra.mxu0 %v2100
    %2663 = vmatpush.bf16.msra.mxu0 %v2092
    %2664 = vmatpush.bf16.msra.mxu0 %v2084
    %2665 = vmatpush.bf16.msra.mxu0 %v2076
    %2666 = vmatmul.bf16.gmra.mxu0 %v837
    %v2667 = vpop.f32.mrf.mxu0
    %v2668 = vadd.f32 %v2654, %v2667
    %v2669 = vpop.f32.mrf.mxu0
    %v2670 = vadd.f32 %v2656, %v2669
    %2671 = vdwg.mxu0
    %2672 = vmatpush.bf16.msra.mxu0 %v1941
    %2673 = vmatpush.bf16.msra.mxu0 %v1933
    %2674 = vmatpush.bf16.msra.mxu0 %v1925
    %2675 = vmatpush.bf16.msra.mxu0 %v1917
    %2676 = vmatpush.bf16.msra.mxu0 %v1909
    %2677 = vmatpush.bf16.msra.mxu0 %v1901
    %2678 = vmatpush.bf16.msra.mxu0 %v1893
    %2679 = vmatpush.bf16.msra.mxu0 %v1885
    %2680 = vmatmul.bf16.gmra.mxu0 %v834
    %v2681 = vpop.f32.mrf.mxu0
    %v2682 = vadd.f32 %v1101, %v2681
    %v2683 = vpop.f32.mrf.mxu0
    %v2684 = vadd.f32 %v1101, %v2683
    %2685 = vdwg.mxu0
    %2686 = vmatpush.bf16.msra.mxu0 %v2005
    %2687 = vmatpush.bf16.msra.mxu0 %v1997
    %2688 = vmatpush.bf16.msra.mxu0 %v1989
    %2689 = vmatpush.bf16.msra.mxu0 %v1981
    %2690 = vmatpush.bf16.msra.mxu0 %v1973
    %2691 = vmatpush.bf16.msra.mxu0 %v1965
    %2692 = vmatpush.bf16.msra.mxu0 %v1957
    %2693 = vmatpush.bf16.msra.mxu0 %v1949
    %2694 = vmatmul.bf16.gmra.mxu0 %v835
    %v2695 = vpop.f32.mrf.mxu0
    %v2696 = vadd.f32 %v2682, %v2695
    %v2697 = vpop.f32.mrf.mxu0
    %v2698 = vadd.f32 %v2684, %v2697
    %2699 = vdwg.mxu0
    %2700 = vmatpush.bf16.msra.mxu0 %v2069
    %2701 = vmatpush.bf16.msra.mxu0 %v2061
    %2702 = vmatpush.bf16.msra.mxu0 %v2053
    %2703 = vmatpush.bf16.msra.mxu0 %v2045
    %2704 = vmatpush.bf16.msra.mxu0 %v2037
    %2705 = vmatpush.bf16.msra.mxu0 %v2029
    %2706 = vmatpush.bf16.msra.mxu0 %v2021
    %2707 = vmatpush.bf16.msra.mxu0 %v2013
    %2708 = vmatmul.bf16.gmra.mxu0 %v836
    %v2709 = vpop.f32.mrf.mxu0
    %v2710 = vadd.f32 %v2696, %v2709
    %v2711 = vpop.f32.mrf.mxu0
    %v2712 = vadd.f32 %v2698, %v2711
    %2713 = vdwg.mxu0
    %2714 = vmatpush.bf16.msra.mxu0 %v2133
    %2715 = vmatpush.bf16.msra.mxu0 %v2125
    %2716 = vmatpush.bf16.msra.mxu0 %v2117
    %2717 = vmatpush.bf16.msra.mxu0 %v2109
    %2718 = vmatpush.bf16.msra.mxu0 %v2101
    %2719 = vmatpush.bf16.msra.mxu0 %v2093
    %2720 = vmatpush.bf16.msra.mxu0 %v2085
    %2721 = vmatpush.bf16.msra.mxu0 %v2077
    %2722 = vmatmul.bf16.gmra.mxu0 %v837
    %v2723 = vpop.f32.mrf.mxu0
    %v2724 = vadd.f32 %v2710, %v2723
    %v2725 = vpop.f32.mrf.mxu0
    %v2726 = vadd.f32 %v2712, %v2725
    %2727 = vdwg.mxu0
    %2728 = vmatpush.bf16.msra.mxu0 %v1942
    %2729 = vmatpush.bf16.msra.mxu0 %v1934
    %2730 = vmatpush.bf16.msra.mxu0 %v1926
    %2731 = vmatpush.bf16.msra.mxu0 %v1918
    %2732 = vmatpush.bf16.msra.mxu0 %v1910
    %2733 = vmatpush.bf16.msra.mxu0 %v1902
    %2734 = vmatpush.bf16.msra.mxu0 %v1894
    %2735 = vmatpush.bf16.msra.mxu0 %v1886
    %2736 = vmatmul.bf16.gmra.mxu0 %v834
    %v2737 = vpop.f32.mrf.mxu0
    %v2738 = vadd.f32 %v1102, %v2737
    %v2739 = vpop.f32.mrf.mxu0
    %v2740 = vadd.f32 %v1102, %v2739
    %2741 = vdwg.mxu0
    %2742 = vmatpush.bf16.msra.mxu0 %v2006
    %2743 = vmatpush.bf16.msra.mxu0 %v1998
    %2744 = vmatpush.bf16.msra.mxu0 %v1990
    %2745 = vmatpush.bf16.msra.mxu0 %v1982
    %2746 = vmatpush.bf16.msra.mxu0 %v1974
    %2747 = vmatpush.bf16.msra.mxu0 %v1966
    %2748 = vmatpush.bf16.msra.mxu0 %v1958
    %2749 = vmatpush.bf16.msra.mxu0 %v1950
    %2750 = vmatmul.bf16.gmra.mxu0 %v835
    %v2751 = vpop.f32.mrf.mxu0
    %v2752 = vadd.f32 %v2738, %v2751
    %v2753 = vpop.f32.mrf.mxu0
    %v2754 = vadd.f32 %v2740, %v2753
    %2755 = vdwg.mxu0
    %2756 = vmatpush.bf16.msra.mxu0 %v2070
    %2757 = vmatpush.bf16.msra.mxu0 %v2062
    %2758 = vmatpush.bf16.msra.mxu0 %v2054
    %2759 = vmatpush.bf16.msra.mxu0 %v2046
    %2760 = vmatpush.bf16.msra.mxu0 %v2038
    %2761 = vmatpush.bf16.msra.mxu0 %v2030
    %2762 = vmatpush.bf16.msra.mxu0 %v2022
    %2763 = vmatpush.bf16.msra.mxu0 %v2014
    %2764 = vmatmul.bf16.gmra.mxu0 %v836
    %v2765 = vpop.f32.mrf.mxu0
    %v2766 = vadd.f32 %v2752, %v2765
    %v2767 = vpop.f32.mrf.mxu0
    %v2768 = vadd.f32 %v2754, %v2767
    %2769 = vdwg.mxu0
    %2770 = vmatpush.bf16.msra.mxu0 %v2134
    %2771 = vmatpush.bf16.msra.mxu0 %v2126
    %2772 = vmatpush.bf16.msra.mxu0 %v2118
    %2773 = vmatpush.bf16.msra.mxu0 %v2110
    %2774 = vmatpush.bf16.msra.mxu0 %v2102
    %2775 = vmatpush.bf16.msra.mxu0 %v2094
    %2776 = vmatpush.bf16.msra.mxu0 %v2086
    %2777 = vmatpush.bf16.msra.mxu0 %v2078
    %2778 = vmatmul.bf16.gmra.mxu0 %v837
    %v2779 = vpop.f32.mrf.mxu0
    %v2780 = vadd.f32 %v2766, %v2779
    %v2781 = vpop.f32.mrf.mxu0
    %v2782 = vadd.f32 %v2768, %v2781
    %2783 = vdwg.mxu0
    %2784 = vmatpush.bf16.msra.mxu0 %v1943
    %2785 = vmatpush.bf16.msra.mxu0 %v1935
    %2786 = vmatpush.bf16.msra.mxu0 %v1927
    %2787 = vmatpush.bf16.msra.mxu0 %v1919
    %2788 = vmatpush.bf16.msra.mxu0 %v1911
    %2789 = vmatpush.bf16.msra.mxu0 %v1903
    %2790 = vmatpush.bf16.msra.mxu0 %v1895
    %2791 = vmatpush.bf16.msra.mxu0 %v1887
    %2792 = vmatmul.bf16.gmra.mxu0 %v834
    %v2793 = vpop.f32.mrf.mxu0
    %v2794 = vadd.f32 %v1103, %v2793
    %v2795 = vpop.f32.mrf.mxu0
    %v2796 = vadd.f32 %v1103, %v2795
    %2797 = vdwg.mxu0
    %2798 = vmatpush.bf16.msra.mxu0 %v2007
    %2799 = vmatpush.bf16.msra.mxu0 %v1999
    %2800 = vmatpush.bf16.msra.mxu0 %v1991
    %2801 = vmatpush.bf16.msra.mxu0 %v1983
    %2802 = vmatpush.bf16.msra.mxu0 %v1975
    %2803 = vmatpush.bf16.msra.mxu0 %v1967
    %2804 = vmatpush.bf16.msra.mxu0 %v1959
    %2805 = vmatpush.bf16.msra.mxu0 %v1951
    %2806 = vmatmul.bf16.gmra.mxu0 %v835
    %v2807 = vpop.f32.mrf.mxu0
    %v2808 = vadd.f32 %v2794, %v2807
    %v2809 = vpop.f32.mrf.mxu0
    %v2810 = vadd.f32 %v2796, %v2809
    %2811 = vdwg.mxu0
    %2812 = vmatpush.bf16.msra.mxu0 %v2071
    %2813 = vmatpush.bf16.msra.mxu0 %v2063
    %2814 = vmatpush.bf16.msra.mxu0 %v2055
    %2815 = vmatpush.bf16.msra.mxu0 %v2047
    %2816 = vmatpush.bf16.msra.mxu0 %v2039
    %2817 = vmatpush.bf16.msra.mxu0 %v2031
    %2818 = vmatpush.bf16.msra.mxu0 %v2023
    %2819 = vmatpush.bf16.msra.mxu0 %v2015
    %2820 = vmatmul.bf16.gmra.mxu0 %v836
    %v2821 = vpop.f32.mrf.mxu0
    %v2822 = vadd.f32 %v2808, %v2821
    %v2823 = vpop.f32.mrf.mxu0
    %v2824 = vadd.f32 %v2810, %v2823
    %2825 = vdwg.mxu0
    %2826 = vmatpush.bf16.msra.mxu0 %v2135
    %2827 = vmatpush.bf16.msra.mxu0 %v2127
    %2828 = vmatpush.bf16.msra.mxu0 %v2119
    %2829 = vmatpush.bf16.msra.mxu0 %v2111
    %2830 = vmatpush.bf16.msra.mxu0 %v2103
    %2831 = vmatpush.bf16.msra.mxu0 %v2095
    %2832 = vmatpush.bf16.msra.mxu0 %v2087
    %2833 = vmatpush.bf16.msra.mxu0 %v2079
    %2834 = vmatmul.bf16.gmra.mxu0 %v837
    %v2835 = vpop.f32.mrf.mxu0
    %v2836 = vadd.f32 %v2822, %v2835
    %v2837 = vpop.f32.mrf.mxu0
    %v2838 = vadd.f32 %v2824, %v2837
    %2839 = vdwg.mxu0
    %vm2840 = vcmp.gt.f32.partialorder %v2444, 0.0
    %vm2841 = vcmp.gt.f32.partialorder %v2500, 0.0
    %vm2842 = vcmp.gt.f32.partialorder %v2556, 0.0
    %vm2843 = vcmp.gt.f32.partialorder %v2612, 0.0
    %vm2844 = vcmp.gt.f32.partialorder %v2668, 0.0
    %vm2845 = vcmp.gt.f32.partialorder %v2724, 0.0
    %vm2846 = vcmp.gt.f32.partialorder %v2780, 0.0
    %vm2847 = vcmp.gt.f32.partialorder %v2836, 0.0
    %vm2848 = vcmp.gt.f32.partialorder %v2446, 0.0
    %vm2849 = vcmp.gt.f32.partialorder %v2502, 0.0
    %vm2850 = vcmp.gt.f32.partialorder %v2558, 0.0
    %vm2851 = vcmp.gt.f32.partialorder %v2614, 0.0
    %vm2852 = vcmp.gt.f32.partialorder %v2670, 0.0
    %vm2853 = vcmp.gt.f32.partialorder %v2726, 0.0
    %vm2854 = vcmp.gt.f32.partialorder %v2782, 0.0
    %vm2855 = vcmp.gt.f32.partialorder %v2838, 0.0
    %v2856 = vmul.f32 %v2444, 0.2
    %v2857 = vmul.f32 %v2500, 0.2
    %v2858 = vmul.f32 %v2556, 0.2
    %v2859 = vmul.f32 %v2612, 0.2
    %v2860 = vmul.f32 %v2668, 0.2
    %v2861 = vmul.f32 %v2724, 0.2
    %v2862 = vmul.f32 %v2780, 0.2
    %v2863 = vmul.f32 %v2836, 0.2
    %v2864 = vmul.f32 %v2446, 0.2
    %v2865 = vmul.f32 %v2502, 0.2
    %v2866 = vmul.f32 %v2558, 0.2
    %v2867 = vmul.f32 %v2614, 0.2
    %v2868 = vmul.f32 %v2670, 0.2
    %v2869 = vmul.f32 %v2726, 0.2
    %v2870 = vmul.f32 %v2782, 0.2
    %v2871 = vmul.f32 %v2838, 0.2
    %v2872 = vsel %vm2840, %v2444, %v2856
    %v2873 = vsel %vm2841, %v2500, %v2857
    %v2874 = vsel %vm2842, %v2556, %v2858
    %v2875 = vsel %vm2843, %v2612, %v2859
    %v2876 = vsel %vm2844, %v2668, %v2860
    %v2877 = vsel %vm2845, %v2724, %v2861
    %v2878 = vsel %vm2846, %v2780, %v2862
    %v2879 = vsel %vm2847, %v2836, %v2863
    %v2880 = vsel %vm2848, %v2446, %v2864
    %v2881 = vsel %vm2849, %v2502, %v2865
    %v2882 = vsel %vm2850, %v2558, %v2866
    %v2883 = vsel %vm2851, %v2614, %v2867
    %v2884 = vsel %vm2852, %v2670, %v2868
    %v2885 = vsel %vm2853, %v2726, %v2869
    %v2886 = vsel %vm2854, %v2782, %v2870
    %v2887 = vsel %vm2855, %v2838, %v2871
    %v2888 = vpack.c.bf16 %v2880, %v2872
    %v2889 = vpack.c.bf16 %v2881, %v2873
    %v2890 = vpack.c.bf16 %v2882, %v2874
    %v2891 = vpack.c.bf16 %v2883, %v2875
    %v2892 = vpack.c.bf16 %v2884, %v2876
    %v2893 = vpack.c.bf16 %v2885, %v2877
    %v2894 = vpack.c.bf16 %v2886, %v2878
    %v2895 = vpack.c.bf16 %v2887, %v2879
    %v2896 = vld [vmem:[#allocation14] sm:$0xf]
    %v2897 = vld [vmem:[#allocation14 + $0x4] sm:$0xf]
    %v2898 = vld [vmem:[#allocation14 + $0x8] sm:$0xf]
    %v2899 = vld [vmem:[#allocation14 + $0xc] sm:$0xf]
    %v2900 = vld [vmem:[#allocation14 + $0x10] sm:$0xf]
    %v2901 = vld [vmem:[#allocation14 + $0x14] sm:$0xf]
    %v2902 = vld [vmem:[#allocation14 + $0x18] sm:$0xf]
    %v2903 = vld [vmem:[#allocation14 + $0x1c] sm:$0xf]
    %v2904 = vld [vmem:[#allocation14 + $0x20] sm:$0xf]
    %v2905 = vld [vmem:[#allocation14 + $0x24] sm:$0xf]
    %v2906 = vld [vmem:[#allocation14 + $0x28] sm:$0xf]
    %v2907 = vld [vmem:[#allocation14 + $0x2c] sm:$0xf]
    %v2908 = vld [vmem:[#allocation14 + $0x30] sm:$0xf]
    %v2909 = vld [vmem:[#allocation14 + $0x34] sm:$0xf]
    %v2910 = vld [vmem:[#allocation14 + $0x38] sm:$0xf]
    %v2911 = vld [vmem:[#allocation14 + $0x3c] sm:$0xf]
    %v2912 = vld [vmem:[#allocation14 + $0x40] sm:$0xf]
    %v2913 = vld [vmem:[#allocation14 + $0x44] sm:$0xf]
    %v2914 = vld [vmem:[#allocation14 + $0x48] sm:$0xf]
    %v2915 = vld [vmem:[#allocation14 + $0x4c] sm:$0xf]
    %v2916 = vld [vmem:[#allocation14 + $0x50] sm:$0xf]
    %v2917 = vld [vmem:[#allocation14 + $0x54] sm:$0xf]
    %v2918 = vld [vmem:[#allocation14 + $0x58] sm:$0xf]
    %v2919 = vld [vmem:[#allocation14 + $0x5c] sm:$0xf]
    %v2920 = vld [vmem:[#allocation14 + $0x60] sm:$0xf]
    %v2921 = vld [vmem:[#allocation14 + $0x64] sm:$0xf]
    %v2922 = vld [vmem:[#allocation14 + $0x68] sm:$0xf]
    %v2923 = vld [vmem:[#allocation14 + $0x6c] sm:$0xf]
    %v2924 = vld [vmem:[#allocation14 + $0x70] sm:$0xf]
    %v2925 = vld [vmem:[#allocation14 + $0x74] sm:$0xf]
    %v2926 = vld [vmem:[#allocation14 + $0x78] sm:$0xf]
    %v2927 = vld [vmem:[#allocation14 + $0x7c] sm:$0xf]
    %v2928 = vld [vmem:[#allocation14 + $0x80] sm:$0xf]
    %v2929 = vld [vmem:[#allocation14 + $0x84] sm:$0xf]
    %v2930 = vld [vmem:[#allocation14 + $0x88] sm:$0xf]
    %v2931 = vld [vmem:[#allocation14 + $0x8c] sm:$0xf]
    %v2932 = vld [vmem:[#allocation14 + $0x90] sm:$0xf]
    %v2933 = vld [vmem:[#allocation14 + $0x94] sm:$0xf]
    %v2934 = vld [vmem:[#allocation14 + $0x98] sm:$0xf]
    %v2935 = vld [vmem:[#allocation14 + $0x9c] sm:$0xf]
    %v2936 = vld [vmem:[#allocation14 + $0xa0] sm:$0xf]
    %v2937 = vld [vmem:[#allocation14 + $0xa4] sm:$0xf]
    %v2938 = vld [vmem:[#allocation14 + $0xa8] sm:$0xf]
    %v2939 = vld [vmem:[#allocation14 + $0xac] sm:$0xf]
    %v2940 = vld [vmem:[#allocation14 + $0xb0] sm:$0xf]
    %v2941 = vld [vmem:[#allocation14 + $0xb4] sm:$0xf]
    %v2942 = vld [vmem:[#allocation14 + $0xb8] sm:$0xf]
    %v2943 = vld [vmem:[#allocation14 + $0xbc] sm:$0xf]
    %v2944 = vld [vmem:[#allocation14 + $0xc0] sm:$0xf]
    %v2945 = vld [vmem:[#allocation14 + $0xc4] sm:$0xf]
    %v2946 = vld [vmem:[#allocation14 + $0xc8] sm:$0xf]
    %v2947 = vld [vmem:[#allocation14 + $0xcc] sm:$0xf]
    %v2948 = vld [vmem:[#allocation14 + $0xd0] sm:$0xf]
    %v2949 = vld [vmem:[#allocation14 + $0xd4] sm:$0xf]
    %v2950 = vld [vmem:[#allocation14 + $0xd8] sm:$0xf]
    %v2951 = vld [vmem:[#allocation14 + $0xdc] sm:$0xf]
    %v2952 = vld [vmem:[#allocation14 + $0xe0] sm:$0xf]
    %v2953 = vld [vmem:[#allocation14 + $0xe4] sm:$0xf]
    %v2954 = vld [vmem:[#allocation14 + $0xe8] sm:$0xf]
    %v2955 = vld [vmem:[#allocation14 + $0xec] sm:$0xf]
    %v2956 = vld [vmem:[#allocation14 + $0xf0] sm:$0xf]
    %v2957 = vld [vmem:[#allocation14 + $0xf4] sm:$0xf]
    %v2958 = vld [vmem:[#allocation14 + $0xf8] sm:$0xf]
    %v2959 = vld [vmem:[#allocation14 + $0xfc] sm:$0xf]
    %v2960 = vld [vmem:[#allocation14 + $0x100] sm:$0xf]
    %v2961 = vld [vmem:[#allocation14 + $0x104] sm:$0xf]
    %v2962 = vld [vmem:[#allocation14 + $0x108] sm:$0xf]
    %v2963 = vld [vmem:[#allocation14 + $0x10c] sm:$0xf]
    %v2964 = vld [vmem:[#allocation14 + $0x110] sm:$0xf]
    %v2965 = vld [vmem:[#allocation14 + $0x114] sm:$0xf]
    %v2966 = vld [vmem:[#allocation14 + $0x118] sm:$0xf]
    %v2967 = vld [vmem:[#allocation14 + $0x11c] sm:$0xf]
    %v2968 = vld [vmem:[#allocation14 + $0x120] sm:$0xf]
    %v2969 = vld [vmem:[#allocation14 + $0x124] sm:$0xf]
    %v2970 = vld [vmem:[#allocation14 + $0x128] sm:$0xf]
    %v2971 = vld [vmem:[#allocation14 + $0x12c] sm:$0xf]
    %v2972 = vld [vmem:[#allocation14 + $0x130] sm:$0xf]
    %v2973 = vld [vmem:[#allocation14 + $0x134] sm:$0xf]
    %v2974 = vld [vmem:[#allocation14 + $0x138] sm:$0xf]
    %v2975 = vld [vmem:[#allocation14 + $0x13c] sm:$0xf]
    %v2976 = vld [vmem:[#allocation14 + $0x140] sm:$0xf]
    %v2977 = vld [vmem:[#allocation14 + $0x144] sm:$0xf]
    %v2978 = vld [vmem:[#allocation14 + $0x148] sm:$0xf]
    %v2979 = vld [vmem:[#allocation14 + $0x14c] sm:$0xf]
    %v2980 = vld [vmem:[#allocation14 + $0x150] sm:$0xf]
    %v2981 = vld [vmem:[#allocation14 + $0x154] sm:$0xf]
    %v2982 = vld [vmem:[#allocation14 + $0x158] sm:$0xf]
    %v2983 = vld [vmem:[#allocation14 + $0x15c] sm:$0xf]
    %v2984 = vld [vmem:[#allocation14 + $0x160] sm:$0xf]
    %v2985 = vld [vmem:[#allocation14 + $0x164] sm:$0xf]
    %v2986 = vld [vmem:[#allocation14 + $0x168] sm:$0xf]
    %v2987 = vld [vmem:[#allocation14 + $0x16c] sm:$0xf]
    %v2988 = vld [vmem:[#allocation14 + $0x170] sm:$0xf]
    %v2989 = vld [vmem:[#allocation14 + $0x174] sm:$0xf]
    %v2990 = vld [vmem:[#allocation14 + $0x178] sm:$0xf]
    %v2991 = vld [vmem:[#allocation14 + $0x17c] sm:$0xf]
    %v2992 = vld [vmem:[#allocation14 + $0x180] sm:$0xf]
    %v2993 = vld [vmem:[#allocation14 + $0x184] sm:$0xf]
    %v2994 = vld [vmem:[#allocation14 + $0x188] sm:$0xf]
    %v2995 = vld [vmem:[#allocation14 + $0x18c] sm:$0xf]
    %v2996 = vld [vmem:[#allocation14 + $0x190] sm:$0xf]
    %v2997 = vld [vmem:[#allocation14 + $0x194] sm:$0xf]
    %v2998 = vld [vmem:[#allocation14 + $0x198] sm:$0xf]
    %v2999 = vld [vmem:[#allocation14 + $0x19c] sm:$0xf]
    %v3000 = vld [vmem:[#allocation14 + $0x1a0] sm:$0xf]
    %v3001 = vld [vmem:[#allocation14 + $0x1a4] sm:$0xf]
    %v3002 = vld [vmem:[#allocation14 + $0x1a8] sm:$0xf]
    %v3003 = vld [vmem:[#allocation14 + $0x1ac] sm:$0xf]
    %v3004 = vld [vmem:[#allocation14 + $0x1b0] sm:$0xf]
    %v3005 = vld [vmem:[#allocation14 + $0x1b4] sm:$0xf]
    %v3006 = vld [vmem:[#allocation14 + $0x1b8] sm:$0xf]
    %v3007 = vld [vmem:[#allocation14 + $0x1bc] sm:$0xf]
    %v3008 = vld [vmem:[#allocation14 + $0x1c0] sm:$0xf]
    %v3009 = vld [vmem:[#allocation14 + $0x1c4] sm:$0xf]
    %v3010 = vld [vmem:[#allocation14 + $0x1c8] sm:$0xf]
    %v3011 = vld [vmem:[#allocation14 + $0x1cc] sm:$0xf]
    %v3012 = vld [vmem:[#allocation14 + $0x1d0] sm:$0xf]
    %v3013 = vld [vmem:[#allocation14 + $0x1d4] sm:$0xf]
    %v3014 = vld [vmem:[#allocation14 + $0x1d8] sm:$0xf]
    %v3015 = vld [vmem:[#allocation14 + $0x1dc] sm:$0xf]
    %v3016 = vld [vmem:[#allocation14 + $0x1e0] sm:$0xf]
    %v3017 = vld [vmem:[#allocation14 + $0x1e4] sm:$0xf]
    %v3018 = vld [vmem:[#allocation14 + $0x1e8] sm:$0xf]
    %v3019 = vld [vmem:[#allocation14 + $0x1ec] sm:$0xf]
    %v3020 = vld [vmem:[#allocation14 + $0x1f0] sm:$0xf]
    %v3021 = vld [vmem:[#allocation14 + $0x1f4] sm:$0xf]
    %v3022 = vld [vmem:[#allocation14 + $0x1f8] sm:$0xf]
    %v3023 = vld [vmem:[#allocation14 + $0x1fc] sm:$0xf]
    %v3024 = vld [vmem:[%s8] sm:$0x1]
    %v3026 = vperm.slane %v3024, 0
    %v3156 = vunpack.c.l.b16 %v2896
    %v3157 = vunpack.c.l.b16 %v2897
    %v3158 = vunpack.c.l.b16 %v2898
    %v3159 = vunpack.c.l.b16 %v2899
    %v3160 = vunpack.c.l.b16 %v2900
    %v3161 = vunpack.c.l.b16 %v2901
    %v3162 = vunpack.c.l.b16 %v2902
    %v3163 = vunpack.c.l.b16 %v2903
    %v3164 = vunpack.c.l.b16 %v2904
    %v3165 = vunpack.c.l.b16 %v2905
    %v3166 = vunpack.c.l.b16 %v2906
    %v3167 = vunpack.c.l.b16 %v2907
    %v3168 = vunpack.c.l.b16 %v2908
    %v3169 = vunpack.c.l.b16 %v2909
    %v3170 = vunpack.c.l.b16 %v2910
    %v3171 = vunpack.c.l.b16 %v2911
    %v3172 = vunpack.c.l.b16 %v2912
    %v3173 = vunpack.c.l.b16 %v2913
    %v3174 = vunpack.c.l.b16 %v2914
    %v3175 = vunpack.c.l.b16 %v2915
    %v3176 = vunpack.c.l.b16 %v2916
    %v3177 = vunpack.c.l.b16 %v2917
    %v3178 = vunpack.c.l.b16 %v2918
    %v3179 = vunpack.c.l.b16 %v2919
    %v3180 = vunpack.c.l.b16 %v2920
    %v3181 = vunpack.c.l.b16 %v2921
    %v3182 = vunpack.c.l.b16 %v2922
    %v3183 = vunpack.c.l.b16 %v2923
    %v3184 = vunpack.c.l.b16 %v2924
    %v3185 = vunpack.c.l.b16 %v2925
    %v3186 = vunpack.c.l.b16 %v2926
    %v3187 = vunpack.c.l.b16 %v2927
    %v3188 = vunpack.c.l.b16 %v2928
    %v3189 = vunpack.c.l.b16 %v2929
    %v3190 = vunpack.c.l.b16 %v2930
    %v3191 = vunpack.c.l.b16 %v2931
    %v3192 = vunpack.c.l.b16 %v2932
    %v3193 = vunpack.c.l.b16 %v2933
    %v3194 = vunpack.c.l.b16 %v2934
    %v3195 = vunpack.c.l.b16 %v2935
    %v3196 = vunpack.c.l.b16 %v2936
    %v3197 = vunpack.c.l.b16 %v2937
    %v3198 = vunpack.c.l.b16 %v2938
    %v3199 = vunpack.c.l.b16 %v2939
    %v3200 = vunpack.c.l.b16 %v2940
    %v3201 = vunpack.c.l.b16 %v2941
    %v3202 = vunpack.c.l.b16 %v2942
    %v3203 = vunpack.c.l.b16 %v2943
    %v3204 = vunpack.c.l.b16 %v2944
    %v3205 = vunpack.c.l.b16 %v2945
    %v3206 = vunpack.c.l.b16 %v2946
    %v3207 = vunpack.c.l.b16 %v2947
    %v3208 = vunpack.c.l.b16 %v2948
    %v3209 = vunpack.c.l.b16 %v2949
    %v3210 = vunpack.c.l.b16 %v2950
    %v3211 = vunpack.c.l.b16 %v2951
    %v3212 = vunpack.c.l.b16 %v2952
    %v3213 = vunpack.c.l.b16 %v2953
    %v3214 = vunpack.c.l.b16 %v2954
    %v3215 = vunpack.c.l.b16 %v2955
    %v3216 = vunpack.c.l.b16 %v2956
    %v3217 = vunpack.c.l.b16 %v2957
    %v3218 = vunpack.c.l.b16 %v2958
    %v3219 = vunpack.c.l.b16 %v2959
    %v3220 = vunpack.c.l.b16 %v2960
    %v3221 = vunpack.c.l.b16 %v2961
    %v3222 = vunpack.c.l.b16 %v2962
    %v3223 = vunpack.c.l.b16 %v2963
    %v3224 = vunpack.c.l.b16 %v2964
    %v3225 = vunpack.c.l.b16 %v2965
    %v3226 = vunpack.c.l.b16 %v2966
    %v3227 = vunpack.c.l.b16 %v2967
    %v3228 = vunpack.c.l.b16 %v2968
    %v3229 = vunpack.c.l.b16 %v2969
    %v3230 = vunpack.c.l.b16 %v2970
    %v3231 = vunpack.c.l.b16 %v2971
    %v3232 = vunpack.c.l.b16 %v2972
    %v3233 = vunpack.c.l.b16 %v2973
    %v3234 = vunpack.c.l.b16 %v2974
    %v3235 = vunpack.c.l.b16 %v2975
    %v3236 = vunpack.c.l.b16 %v2976
    %v3237 = vunpack.c.l.b16 %v2977
    %v3238 = vunpack.c.l.b16 %v2978
    %v3239 = vunpack.c.l.b16 %v2979
    %v3240 = vunpack.c.l.b16 %v2980
    %v3241 = vunpack.c.l.b16 %v2981
    %v3242 = vunpack.c.l.b16 %v2982
    %v3243 = vunpack.c.l.b16 %v2983
    %v3244 = vunpack.c.l.b16 %v2984
    %v3245 = vunpack.c.l.b16 %v2985
    %v3246 = vunpack.c.l.b16 %v2986
    %v3247 = vunpack.c.l.b16 %v2987
    %v3248 = vunpack.c.l.b16 %v2988
    %v3249 = vunpack.c.l.b16 %v2989
    %v3250 = vunpack.c.l.b16 %v2990
    %v3251 = vunpack.c.l.b16 %v2991
    %v3252 = vunpack.c.l.b16 %v2992
    %v3253 = vunpack.c.l.b16 %v2993
    %v3254 = vunpack.c.l.b16 %v2994
    %v3255 = vunpack.c.l.b16 %v2995
    %v3256 = vunpack.c.l.b16 %v2996
    %v3257 = vunpack.c.l.b16 %v2997
    %v3258 = vunpack.c.l.b16 %v2998
    %v3259 = vunpack.c.l.b16 %v2999
    %v3260 = vunpack.c.l.b16 %v3000
    %v3261 = vunpack.c.l.b16 %v3001
    %v3262 = vunpack.c.l.b16 %v3002
    %v3263 = vunpack.c.l.b16 %v3003
    %v3264 = vunpack.c.l.b16 %v3004
    %v3265 = vunpack.c.l.b16 %v3005
    %v3266 = vunpack.c.l.b16 %v3006
    %v3267 = vunpack.c.l.b16 %v3007
    %v3268 = vunpack.c.l.b16 %v3008
    %v3269 = vunpack.c.l.b16 %v3009
    %v3270 = vunpack.c.l.b16 %v3010
    %v3271 = vunpack.c.l.b16 %v3011
    %v3272 = vunpack.c.l.b16 %v3012
    %v3273 = vunpack.c.l.b16 %v3013
    %v3274 = vunpack.c.l.b16 %v3014
    %v3275 = vunpack.c.l.b16 %v3015
    %v3276 = vunpack.c.l.b16 %v3016
    %v3277 = vunpack.c.l.b16 %v3017
    %v3278 = vunpack.c.l.b16 %v3018
    %v3279 = vunpack.c.l.b16 %v3019
    %v3280 = vunpack.c.l.b16 %v3020
    %v3281 = vunpack.c.l.b16 %v3021
    %v3282 = vunpack.c.l.b16 %v3022
    %v3283 = vunpack.c.l.b16 %v3023
    %v3284 = vpack.c.b16 %v3157, %v3156
    %v3285 = vpack.c.b16 %v3159, %v3158
    %v3286 = vpack.c.b16 %v3161, %v3160
    %v3287 = vpack.c.b16 %v3163, %v3162
    %v3288 = vpack.c.b16 %v3165, %v3164
    %v3289 = vpack.c.b16 %v3167, %v3166
    %v3290 = vpack.c.b16 %v3169, %v3168
    %v3291 = vpack.c.b16 %v3171, %v3170
    %v3292 = vpack.c.b16 %v3173, %v3172
    %v3293 = vpack.c.b16 %v3175, %v3174
    %v3294 = vpack.c.b16 %v3177, %v3176
    %v3295 = vpack.c.b16 %v3179, %v3178
    %v3296 = vpack.c.b16 %v3181, %v3180
    %v3297 = vpack.c.b16 %v3183, %v3182
    %v3298 = vpack.c.b16 %v3185, %v3184
    %v3299 = vpack.c.b16 %v3187, %v3186
    %v3300 = vpack.c.b16 %v3189, %v3188
    %v3301 = vpack.c.b16 %v3191, %v3190
    %v3302 = vpack.c.b16 %v3193, %v3192
    %v3303 = vpack.c.b16 %v3195, %v3194
    %v3304 = vpack.c.b16 %v3197, %v3196
    %v3305 = vpack.c.b16 %v3199, %v3198
    %v3306 = vpack.c.b16 %v3201, %v3200
    %v3307 = vpack.c.b16 %v3203, %v3202
    %v3308 = vpack.c.b16 %v3205, %v3204
    %v3309 = vpack.c.b16 %v3207, %v3206
    %v3310 = vpack.c.b16 %v3209, %v3208
    %v3311 = vpack.c.b16 %v3211, %v3210
    %v3312 = vpack.c.b16 %v3213, %v3212
    %v3313 = vpack.c.b16 %v3215, %v3214
    %v3314 = vpack.c.b16 %v3217, %v3216
    %v3315 = vpack.c.b16 %v3219, %v3218
    %v3316 = vpack.c.b16 %v3221, %v3220
    %v3317 = vpack.c.b16 %v3223, %v3222
    %v3318 = vpack.c.b16 %v3225, %v3224
    %v3319 = vpack.c.b16 %v3227, %v3226
    %v3320 = vpack.c.b16 %v3229, %v3228
    %v3321 = vpack.c.b16 %v3231, %v3230
    %v3322 = vpack.c.b16 %v3233, %v3232
    %v3323 = vpack.c.b16 %v3235, %v3234
    %v3324 = vpack.c.b16 %v3237, %v3236
    %v3325 = vpack.c.b16 %v3239, %v3238
    %v3326 = vpack.c.b16 %v3241, %v3240
    %v3327 = vpack.c.b16 %v3243, %v3242
    %v3328 = vpack.c.b16 %v3245, %v3244
    %v3329 = vpack.c.b16 %v3247, %v3246
    %v3330 = vpack.c.b16 %v3249, %v3248
    %v3331 = vpack.c.b16 %v3251, %v3250
    %v3332 = vpack.c.b16 %v3253, %v3252
    %v3333 = vpack.c.b16 %v3255, %v3254
    %v3334 = vpack.c.b16 %v3257, %v3256
    %v3335 = vpack.c.b16 %v3259, %v3258
    %v3336 = vpack.c.b16 %v3261, %v3260
    %v3337 = vpack.c.b16 %v3263, %v3262
    %v3338 = vpack.c.b16 %v3265, %v3264
    %v3339 = vpack.c.b16 %v3267, %v3266
    %v3340 = vpack.c.b16 %v3269, %v3268
    %v3341 = vpack.c.b16 %v3271, %v3270
    %v3342 = vpack.c.b16 %v3273, %v3272
    %v3343 = vpack.c.b16 %v3275, %v3274
    %v3344 = vpack.c.b16 %v3277, %v3276
    %v3345 = vpack.c.b16 %v3279, %v3278
    %v3346 = vpack.c.b16 %v3281, %v3280
    %v3347 = vpack.c.b16 %v3283, %v3282
    %3412 = vmatpush.bf16.msra.mxu0 %v3291
    %3413 = vmatpush.bf16.msra.mxu0 %v3290
    %3414 = vmatpush.bf16.msra.mxu0 %v3289
    %3415 = vmatpush.bf16.msra.mxu0 %v3288
    %3416 = vmatpush.bf16.msra.mxu0 %v3287
    %3417 = vmatpush.bf16.msra.mxu0 %v3286
    %3418 = vmatpush.bf16.msra.mxu0 %v3285
    %3419 = vmatpush.bf16.msra.mxu0 %v3284
    %3420 = vmatmul.bf16.gmra.mxu0 %v2888
    %v3421 = vpop.f32.mrf.mxu0
    %v3422 = vadd.f32 %v3026, %v3421
    %v3423 = vpop.f32.mrf.mxu0
    %v3424 = vadd.f32 %v3026, %v3423
    %3425 = vdwg.mxu0
    %3426 = vmatpush.bf16.msra.mxu0 %v3299
    %3427 = vmatpush.bf16.msra.mxu0 %v3298
    %3428 = vmatpush.bf16.msra.mxu0 %v3297
    %3429 = vmatpush.bf16.msra.mxu0 %v3296
    %3430 = vmatpush.bf16.msra.mxu0 %v3295
    %3431 = vmatpush.bf16.msra.mxu0 %v3294
    %3432 = vmatpush.bf16.msra.mxu0 %v3293
    %3433 = vmatpush.bf16.msra.mxu0 %v3292
    %3434 = vmatmul.bf16.gmra.mxu0 %v2889
    %v3435 = vpop.f32.mrf.mxu0
    %v3436 = vadd.f32 %v3422, %v3435
    %v3437 = vpop.f32.mrf.mxu0
    %v3438 = vadd.f32 %v3424, %v3437
    %3439 = vdwg.mxu0
    %3440 = vmatpush.bf16.msra.mxu0 %v3307
    %3441 = vmatpush.bf16.msra.mxu0 %v3306
    %3442 = vmatpush.bf16.msra.mxu0 %v3305
    %3443 = vmatpush.bf16.msra.mxu0 %v3304
    %3444 = vmatpush.bf16.msra.mxu0 %v3303
    %3445 = vmatpush.bf16.msra.mxu0 %v3302
    %3446 = vmatpush.bf16.msra.mxu0 %v3301
    %3447 = vmatpush.bf16.msra.mxu0 %v3300
    %3448 = vmatmul.bf16.gmra.mxu0 %v2890
    %v3449 = vpop.f32.mrf.mxu0
    %v3450 = vadd.f32 %v3436, %v3449
    %v3451 = vpop.f32.mrf.mxu0
    %v3452 = vadd.f32 %v3438, %v3451
    %3453 = vdwg.mxu0
    %3454 = vmatpush.bf16.msra.mxu0 %v3315
    %3455 = vmatpush.bf16.msra.mxu0 %v3314
    %3456 = vmatpush.bf16.msra.mxu0 %v3313
    %3457 = vmatpush.bf16.msra.mxu0 %v3312
    %3458 = vmatpush.bf16.msra.mxu0 %v3311
    %3459 = vmatpush.bf16.msra.mxu0 %v3310
    %3460 = vmatpush.bf16.msra.mxu0 %v3309
    %3461 = vmatpush.bf16.msra.mxu0 %v3308
    %3462 = vmatmul.bf16.gmra.mxu0 %v2891
    %v3463 = vpop.f32.mrf.mxu0
    %v3464 = vadd.f32 %v3450, %v3463
    %v3465 = vpop.f32.mrf.mxu0
    %v3466 = vadd.f32 %v3452, %v3465
    %3467 = vdwg.mxu0
    %3468 = vmatpush.bf16.msra.mxu0 %v3323
    %3469 = vmatpush.bf16.msra.mxu0 %v3322
    %3470 = vmatpush.bf16.msra.mxu0 %v3321
    %3471 = vmatpush.bf16.msra.mxu0 %v3320
    %3472 = vmatpush.bf16.msra.mxu0 %v3319
    %3473 = vmatpush.bf16.msra.mxu0 %v3318
    %3474 = vmatpush.bf16.msra.mxu0 %v3317
    %3475 = vmatpush.bf16.msra.mxu0 %v3316
    %3476 = vmatmul.bf16.gmra.mxu0 %v2892
    %v3477 = vpop.f32.mrf.mxu0
    %v3478 = vadd.f32 %v3464, %v3477
    %v3479 = vpop.f32.mrf.mxu0
    %v3480 = vadd.f32 %v3466, %v3479
    %3481 = vdwg.mxu0
    %3482 = vmatpush.bf16.msra.mxu0 %v3331
    %3483 = vmatpush.bf16.msra.mxu0 %v3330
    %3484 = vmatpush.bf16.msra.mxu0 %v3329
    %3485 = vmatpush.bf16.msra.mxu0 %v3328
    %3486 = vmatpush.bf16.msra.mxu0 %v3327
    %3487 = vmatpush.bf16.msra.mxu0 %v3326
    %3488 = vmatpush.bf16.msra.mxu0 %v3325
    %3489 = vmatpush.bf16.msra.mxu0 %v3324
    %3490 = vmatmul.bf16.gmra.mxu0 %v2893
    %v3491 = vpop.f32.mrf.mxu0
    %v3492 = vadd.f32 %v3478, %v3491
    %v3493 = vpop.f32.mrf.mxu0
    %v3494 = vadd.f32 %v3480, %v3493
    %3495 = vdwg.mxu0
    %3496 = vmatpush.bf16.msra.mxu0 %v3339
    %3497 = vmatpush.bf16.msra.mxu0 %v3338
    %3498 = vmatpush.bf16.msra.mxu0 %v3337
    %3499 = vmatpush.bf16.msra.mxu0 %v3336
    %3500 = vmatpush.bf16.msra.mxu0 %v3335
    %3501 = vmatpush.bf16.msra.mxu0 %v3334
    %3502 = vmatpush.bf16.msra.mxu0 %v3333
    %3503 = vmatpush.bf16.msra.mxu0 %v3332
    %3504 = vmatmul.bf16.gmra.mxu0 %v2894
    %v3505 = vpop.f32.mrf.mxu0
    %v3506 = vadd.f32 %v3492, %v3505
    %v3507 = vpop.f32.mrf.mxu0
    %v3508 = vadd.f32 %v3494, %v3507
    %3509 = vdwg.mxu0
    %3510 = vmatpush.bf16.msra.mxu0 %v3347
    %3511 = vmatpush.bf16.msra.mxu0 %v3346
    %3512 = vmatpush.bf16.msra.mxu0 %v3345
    %3513 = vmatpush.bf16.msra.mxu0 %v3344
    %3514 = vmatpush.bf16.msra.mxu0 %v3343
    %3515 = vmatpush.bf16.msra.mxu0 %v3342
    %3516 = vmatpush.bf16.msra.mxu0 %v3341
    %3517 = vmatpush.bf16.msra.mxu0 %v3340
    %3518 = vmatmul.bf16.gmra.mxu0 %v2895
    %v3519 = vpop.f32.mrf.mxu0
    %v3520 = vadd.f32 %v3506, %v3519
    %v3521 = vpop.f32.mrf.mxu0
    %v3522 = vadd.f32 %v3508, %v3521
    %3523 = vdwg.mxu0
    %v3524 = vtanh.pop %v3520
    %v3525 = vtanh.pop %v3522
    %v3526 = vpack.c.bf16 %v3524, %v3524
    %v3527 = vpack.c.bf16 %v3525, %v3525
    %3528 = vst [vmem:[#allocation16] sm:$0xf] %v3526
    %3529 = vst [vmem:[#allocation16 + $0x4] sm:$0xf] %v3527
    // Predicated region
    $region70: #{tpu_custom_call.1} parent=1 // pred_check
      _
    $region71: #{tpu_custom_call.1} parent=1 // pred_check_branch
      %3531 = sbr.rel (0) target = $region73
    $region72: #{tpu_custom_call.1} parent=1 // pred_region
      %3533 = vsyncadd [#allocation4], 0
      %s3534 = sshll.u32 [#allocation16], 4
      %s3535 = int_to_ptr.vmem [resolvable:$true] %s3534
      %s3536 = sshll.u32 %s9, 4
      %s3537 = int_to_ptr.hbm [resolvable:$true] %s3536
      %3542 = dma.vmem_to_hbm [thread:$0]  %s3535, 128, %s3537, [#allocation4], 64, 64, 4
    $region73: #{tpu_custom_call.1} parent=1 // pred_fallthru
      _
    // Predicated region
    $region74: #{tpu_custom_call.1} parent=1 // pred_check
      _
    $region75: #{tpu_custom_call.1} parent=1 // pred_check_branch
      %3544 = sbr.rel (0) target = $region77
    $region76: #{tpu_custom_call.1} parent=1 // pred_region
      %3546 = dma.done [#allocation4], 128
    $region77: #{tpu_custom_call.1} parent=1 // pred_fallthru
      _
    %3547 = vsyncpa [#allocation3], 1
    %3548 = vsyncpa [#allocation6], 1
    %3549 = vsyncpa [#allocation9], 1
    %3550 = vsyncpa [#allocation12], 1
    %3551 = vsyncpa [#allocation15], 1
    %3552 = vsyncpa [#allocation4], 1

</llo_original>
